<compile_context>
chip_gen: v6e
topology: v6e:2x2x1
jax: 0.10.0
libtpu: 0.0.40
codegen_flags: <defaults>
</compile_context>

<pallas_src>
import math
from functools import partial

import numpy as np

import jax
import jax.numpy as jnp
from jax import lax
from jax.experimental import pallas as pl
from jax.experimental.pallas import tpu as pltpu


def _gaussian_1d(window_size: int, sigma: float = 1.5) -> np.ndarray:
    """Mirror of torch `gaussian()`: normalized 1D gaussian."""
    g = np.array(
        [math.exp(-((x - window_size // 2) ** 2) / float(2 * sigma ** 2))
         for x in range(window_size)],
        dtype=np.float64,
    )
    return (g / g.sum()).astype(np.float32)


def _planes_per_group(bc: int, w: int) -> int:
    """Pack multiple (H, W) planes per grid step when W is lane-sparse (<128)."""
    target = min(bc, max(1, 128 // max(w, 1)), 16)
    for p in range(target, 0, -1):
        if bc % p == 0:
            return p
    return 1


def _make_ssim_kernel(P: int, H: int, W: int, OH: int, OW: int):
    N = P * OH  # rows per filtered map inside one group

    def kernel(c_ref, avb_ref, ah_ref, x1_ref, x2_ref, out_ref):
        C1 = c_ref[0]
        C2 = c_ref[1]

        x1 = x1_ref[...].astype(jnp.float32)   # (P*H, W), planes stacked on sublanes
        x2 = x2_ref[...].astype(jnp.float32)

        avb = avb_ref[...]                     # (P*OH, P*H) block-diag vertical taps
        ah = ah_ref[...]                       # (W, OW)     banded horizontal taps

        # --- vertical Gaussian pass on the MXU: one matmul per fused map -------
        maps = (x1, x2, x1 * x1, x2 * x2, x1 * x2)
        vparts = [
            jnp.dot(avb, m,
                    preferred_element_type=jnp.float32,
                    precision=lax.Precision.HIGHEST)
            for m in maps
        ]                                      # 5 x (P*OH, W)

        # --- horizontal pass: stack the 5 maps on sublanes, single MXU matmul --
        vstack = jnp.concatenate(vparts, axis=0)               # (5*P*OH, W)
        h = jnp.dot(vstack, ah,
                    preferred_element_type=jnp.float32,
                    precision=lax.Precision.HIGHEST)           # (5*P*OH, OW)

        mu1 = h[0 * N:1 * N]
        mu2 = h[1 * N:2 * N]
        s11 = h[2 * N:3 * N]
        s22 = h[3 * N:4 * N]
        s12 = h[4 * N:5 * N]

        mu1_sq = mu1 * mu1
        mu2_sq = mu2 * mu2
        mu1_mu2 = mu1 * mu2
        sigma1_sq = s11 - mu1_sq
        sigma2_sq = s22 - mu2_sq
        sigma12 = s12 - mu1_mu2

        v1 = 2.0 * sigma12 + C2
        v2 = sigma1_sq + sigma2_sq + C2
        num = (2.0 * mu1_mu2 + C1) * v1
        den = (mu1_sq + mu2_sq + C1) * v2

        # EUP approx reciprocal + one Newton-Raphson step (back to ~f32 accuracy).
        r = pl.reciprocal(den, approx=True)
        r = r * (2.0 - den * r)
        ssim_map = num * r

        # Per-group partial sum into its own lane-dense output block; the grid
        # axis is "parallel", final reduction happens in the wrapper.
        out_ref[...] = jnp.full((1, 8, 128), jnp.sum(ssim_map), dtype=jnp.float32)

    return kernel


def _ssim_impl(img1: jax.Array, img2: jax.Array, window_size: int = 11) -> jax.Array:
    """Equivalent of SSIM(window_size=11, size_average=True)(img1, img2)."""
    B, C, H, W = img1.shape
    WS = window_size
    OH, OW = H - WS + 1, W - WS + 1
    assert OH > 0 and OW > 0, "spatial dims must be >= window_size"

    BC = B * C
    P = _planes_per_group(BC, W)
    G = BC // P

    # --- constant banded taps matrices (built at trace time) -------------------
    w1d = _gaussian_1d(WS)
    av = np.zeros((OH, H), np.float32)
    for o in range(OH):
        av[o, o:o + WS] = w1d
    ah = np.zeros((W, OW), np.float32)
    for q in range(OW):
        ah[q:q + WS, q] = w1d
    avb = np.kron(np.eye(P, dtype=np.float32), av)       # (P*OH, P*H) block-diag

    # --- dynamic value range L (same rule as the torch module) -----------------
    # Under jit, XLA fuses the max and min into a single pass over img1.
    mx = jnp.max(img1)
    mn = jnp.min(img1)
    max_val = jnp.where(mx > 128.0, 255.0, 1.0)
    min_val = jnp.where(mn < -0.5, -1.0, 0.0)
    L = (max_val - min_val).astype(jnp.float32)
    c1c2 = jnp.stack([(0.01 * L) ** 2, (0.03 * L) ** 2]).astype(jnp.float32)

    # planes folded into the sublane axis: (BC, H, W) -> (BC*H, W)
    i1 = img1.reshape(BC * H, W)
    i2 = img2.reshape(BC * H, W)

    # --- VMEM budget from the chosen block sizes --------------------------------
    est = 4 * (2 * 2 * P * H * W                      # 2 inputs x 2 buffers
               + 2 * (P * OH * P * H + W * OW)        # taps constants (2-buffered)
               + 2 * 8 * 128                          # output block
               + 5 * P * H * W                        # fused maps
               + 2 * 5 * P * OH * W                   # vparts + vstack
               + 10 * P * OH * OW)                    # h + elementwise temps
    vmem_limit = int(min(64 * 1024 * 1024, max(16 * 1024 * 1024, 2 * est)))

    kernel = _make_ssim_kernel(P, H, W, OH, OW)

    out = pl.pallas_call(
        kernel,
        out_shape=jax.ShapeDtypeStruct((G, 8, 128), jnp.float32),
        grid_spec=pltpu.PrefetchScalarGridSpec(
            num_scalar_prefetch=1,                    # c1c2 -> SMEM scalars
            grid=(G,),
            in_specs=[
                pl.BlockSpec((P * OH, P * H), lambda g, c: (0, 0)),   # avb
                pl.BlockSpec((W, OW), lambda g, c: (0, 0)),           # ah
                pl.BlockSpec((P * H, W), lambda g, c: (g, 0)),        # img1 group
                pl.BlockSpec((P * H, W), lambda g, c: (g, 0)),        # img2 group
            ],
            out_specs=pl.BlockSpec((1, 8, 128), lambda g, c: (g, 0, 0)),
        ),
        compiler_params=pltpu.CompilerParams(
            dimension_semantics=("parallel",),        # per-group partials -> 2nd TC on v7x
            vmem_limit_bytes=vmem_limit,
        ),
    )(c1c2, avb, ah, i1, i2)

    inv_count = 1.0 / float(BC * OH * OW)
    return jnp.sum(out[:, 0, 0]) * inv_count


ssim_pallas = jax.jit(_ssim_impl, static_argnames=("window_size",))


def _ssim_reference(img1, img2, window_size=11):
    """Plain-JAX reference mirroring the PyTorch module (121-tap 2D conv)."""
    w1d = _gaussian_1d(window_size)
    window_np = np.outer(w1d, w1d).astype(np.float32)
    B, C, H, W = img1.shape
    WS = window_size
    OH, OW = H - WS + 1, W - WS + 1

    max_val = jnp.where(jnp.max(img1) > 128.0, 255.0, 1.0)
    min_val = jnp.where(jnp.min(img1) < -0.5, -1.0, 0.0)
    L = max_val - min_val
    C1 = (0.01 * L) ** 2
    C2 = (0.03 * L) ** 2

    i11, i22, i12 = img1 * img1, img2 * img2, img1 * img2
    mu1 = jnp.zeros((B, C, OH, OW), jnp.float32)
    mu2 = jnp.zeros((B, C, OH, OW), jnp.float32)
    s11 = jnp.zeros((B, C, OH, OW), jnp.float32)
    s22 = jnp.zeros((B, C, OH, OW), jnp.float32)
    s12 = jnp.zeros((B, C, OH, OW), jnp.float32)
    for i in range(WS):
        for j in range(WS):
            w = float(window_np[i, j])
            mu1 = mu1 + w * img1[:, :, i:i + OH, j:j + OW]
            mu2 = mu2 + w * img2[:, :, i:i + OH, j:j + OW]
            s11 = s11 + w * i11[:, :, i:i + OH, j:j + OW]
            s22 = s22 + w * i22[:, :, i:i + OH, j:j + OW]
            s12 = s12 + w * i12[:, :, i:i + OH, j:j + OW]
    mu1_sq, mu2_sq, mu1_mu2 = mu1 * mu1, mu2 * mu2, mu1 * mu2
    v1 = 2.0 * (s12 - mu1_mu2) + C2
    v2 = (s11 - mu1_sq) + (s22 - mu2_sq) + C2
    ssim_map = (2 * mu1_mu2 + C1) * v1 / ((mu1_sq + mu2_sq + C1) * v2)
    return jnp.mean(ssim_map)


if __name__ == "__main__":
    key = jax.random.PRNGKey(0)
    k1, k2 = jax.random.split(key)
    B, C, H, W = 2, 4, 16, 16
    img1 = jax.random.uniform(k1, (B, C, H, W), dtype=jnp.float32)
    img2 = jax.random.uniform(k2, (B, C, H, W), dtype=jnp.float32)

    out = ssim_pallas(img1, img2)
    jax.block_until_ready(out)

    ref = _ssim_reference(img1, img2)
    np.testing.assert_allclose(np.asarray(out), np.asarray(ref), rtol=1e-4, atol=1e-5)

    print("KERNEL_OK")
</pallas_src>

<mosaic_0001>
module attributes {stable_mosaic.version = 11 : i64} {
  func.func @kernel(%arg0: i32, %arg1: memref<2xf32, #tpu.memory_space<smem>>, %arg2: memref<48x128xf32, #tpu.memory_space<vmem>>, %arg3: memref<16x6xf32, #tpu.memory_space<vmem>>, %arg4: memref<128x16xf32, #tpu.memory_space<vmem>>, %arg5: memref<128x16xf32, #tpu.memory_space<vmem>>, %arg6: memref<1x8x128xf32, #tpu.memory_space<vmem>>) attributes {dimension_semantics = [#tpu.dimension_semantics<parallel>], iteration_bounds = array<i64: 1>, scalar_prefetch = 1 : i64, scratch_operands = 0 : i64, tpu.core_type = #tpu.core_type<tc>, window_params = [{pipeline_mode = #tpu.pipeline_mode<synchronous>, transform_indices = @transform_0, window_bounds = array<i64: 48, 128>}, {pipeline_mode = #tpu.pipeline_mode<synchronous>, transform_indices = @transform_1, window_bounds = array<i64: 16, 6>}, {transform_indices = @transform_2, window_bounds = array<i64: 128, 16>}, {transform_indices = @transform_3, window_bounds = array<i64: 128, 16>}, {transform_indices = @transform_4, window_bounds = array<i64: 1, 8, 128>}]} {
    %c0 = arith.constant 0 : index
    %0 = memref.load %arg1[%c0] : memref<2xf32, #tpu.memory_space<smem>>
    %c1 = arith.constant 1 : index
    %1 = memref.load %arg1[%c1] : memref<2xf32, #tpu.memory_space<smem>>
    %c0_0 = arith.constant 0 : index
    %c0_1 = arith.constant 0 : index
    %2 = vector.load %arg4[%c0_0, %c0_1] : memref<128x16xf32, #tpu.memory_space<vmem>>, vector<128x16xf32>
    %c0_2 = arith.constant 0 : index
    %c0_3 = arith.constant 0 : index
    %3 = vector.load %arg5[%c0_2, %c0_3] : memref<128x16xf32, #tpu.memory_space<vmem>>, vector<128x16xf32>
    %c0_4 = arith.constant 0 : index
    %c0_5 = arith.constant 0 : index
    %4 = vector.load %arg2[%c0_4, %c0_5] : memref<48x128xf32, #tpu.memory_space<vmem>>, vector<48x128xf32>
    %c0_6 = arith.constant 0 : index
    %c0_7 = arith.constant 0 : index
    %5 = vector.load %arg3[%c0_6, %c0_7] : memref<16x6xf32, #tpu.memory_space<vmem>>, vector<16x6xf32>
    %6 = arith.mulf %2, %2 : vector<128x16xf32>
    %7 = arith.mulf %3, %3 : vector<128x16xf32>
    %8 = arith.mulf %2, %3 : vector<128x16xf32>
    %cst = arith.constant dense<0.000000e+00> : vector<48x16xf32>
    %9 = tpu.matmul %4, %2, %cst {dimension_numbers = #tpu.dot_dimension_numbers<[1], [0], [0], [1], [0, 0, 1, 1], [], []>, precision = #tpu.contract_precision<fp32>} : vector<48x128xf32>, vector<128x16xf32>, vector<48x16xf32> -> vector<48x16xf32>
    %cst_8 = arith.constant dense<0.000000e+00> : vector<48x16xf32>
    %10 = tpu.matmul %4, %3, %cst_8 {dimension_numbers = #tpu.dot_dimension_numbers<[1], [0], [0], [1], [0, 0, 1, 1], [], []>, precision = #tpu.contract_precision<fp32>} : vector<48x128xf32>, vector<128x16xf32>, vector<48x16xf32> -> vector<48x16xf32>
    %cst_9 = arith.constant dense<0.000000e+00> : vector<48x16xf32>
    %11 = tpu.matmul %4, %6, %cst_9 {dimension_numbers = #tpu.dot_dimension_numbers<[1], [0], [0], [1], [0, 0, 1, 1], [], []>, precision = #tpu.contract_precision<fp32>} : vector<48x128xf32>, vector<128x16xf32>, vector<48x16xf32> -> vector<48x16xf32>
    %cst_10 = arith.constant dense<0.000000e+00> : vector<48x16xf32>
    %12 = tpu.matmul %4, %7, %cst_10 {dimension_numbers = #tpu.dot_dimension_numbers<[1], [0], [0], [1], [0, 0, 1, 1], [], []>, precision = #tpu.contract_precision<fp32>} : vector<48x128xf32>, vector<128x16xf32>, vector<48x16xf32> -> vector<48x16xf32>
    %cst_11 = arith.constant dense<0.000000e+00> : vector<48x16xf32>
    %13 = tpu.matmul %4, %8, %cst_11 {dimension_numbers = #tpu.dot_dimension_numbers<[1], [0], [0], [1], [0, 0, 1, 1], [], []>, precision = #tpu.contract_precision<fp32>} : vector<48x128xf32>, vector<128x16xf32>, vector<48x16xf32> -> vector<48x16xf32>
    %14 = tpu.concatenate %9, %10, %11, %12, %13 in 0 : vector<48x16xf32>, vector<48x16xf32>, vector<48x16xf32>, vector<48x16xf32>, vector<48x16xf32> -> vector<240x16xf32>
    %cst_12 = arith.constant dense<0.000000e+00> : vector<240x6xf32>
    %15 = tpu.matmul %14, %5, %cst_12 {dimension_numbers = #tpu.dot_dimension_numbers<[1], [0], [0], [1], [0, 0, 1, 1], [], []>, precision = #tpu.contract_precision<fp32>} : vector<240x16xf32>, vector<16x6xf32>, vector<240x6xf32> -> vector<240x6xf32>
    %16 = vector.extract_strided_slice %15 {offsets = [0, 0], sizes = [48, 6], strides = [1, 1]} : vector<240x6xf32> to vector<48x6xf32>
    %17 = vector.extract_strided_slice %15 {offsets = [48, 0], sizes = [48, 6], strides = [1, 1]} : vector<240x6xf32> to vector<48x6xf32>
    %18 = vector.extract_strided_slice %15 {offsets = [96, 0], sizes = [48, 6], strides = [1, 1]} : vector<240x6xf32> to vector<48x6xf32>
    %19 = vector.extract_strided_slice %15 {offsets = [144, 0], sizes = [48, 6], strides = [1, 1]} : vector<240x6xf32> to vector<48x6xf32>
    %20 = vector.extract_strided_slice %15 {offsets = [192, 0], sizes = [48, 6], strides = [1, 1]} : vector<240x6xf32> to vector<48x6xf32>
    %21 = arith.mulf %16, %16 : vector<48x6xf32>
    %22 = arith.mulf %17, %17 : vector<48x6xf32>
    %23 = arith.mulf %16, %17 : vector<48x6xf32>
    %24 = arith.subf %18, %21 : vector<48x6xf32>
    %25 = arith.subf %19, %22 : vector<48x6xf32>
    %26 = arith.subf %20, %23 : vector<48x6xf32>
    %cst_13 = arith.constant 2.000000e+00 : f32
    %27 = vector.broadcast %cst_13 : f32 to vector<48x6xf32>
    %28 = arith.mulf %27, %26 : vector<48x6xf32>
    %29 = vector.broadcast %1 : f32 to vector<48x6xf32>
    %30 = arith.addf %28, %29 : vector<48x6xf32>
    %31 = arith.addf %24, %25 : vector<48x6xf32>
    %32 = vector.broadcast %1 : f32 to vector<48x6xf32>
    %33 = arith.addf %31, %32 : vector<48x6xf32>
    %cst_14 = arith.constant 2.000000e+00 : f32
    %34 = vector.broadcast %cst_14 : f32 to vector<48x6xf32>
    %35 = arith.mulf %34, %23 : vector<48x6xf32>
    %36 = vector.broadcast %0 : f32 to vector<48x6xf32>
    %37 = arith.addf %35, %36 : vector<48x6xf32>
    %38 = arith.mulf %37, %30 : vector<48x6xf32>
    %39 = arith.addf %21, %22 : vector<48x6xf32>
    %40 = vector.broadcast %0 : f32 to vector<48x6xf32>
    %41 = arith.addf %39, %40 : vector<48x6xf32>
    %42 = arith.mulf %41, %33 : vector<48x6xf32>
    %43 = tpu.reciprocal %42 {approx = true} : vector<48x6xf32> -> vector<48x6xf32>
    %44 = arith.mulf %42, %43 : vector<48x6xf32>
    %cst_15 = arith.constant 2.000000e+00 : f32
    %45 = vector.broadcast %cst_15 : f32 to vector<48x6xf32>
    %46 = arith.subf %45, %44 : vector<48x6xf32>
    %47 = arith.mulf %43, %46 : vector<48x6xf32>
    %48 = arith.mulf %38, %47 : vector<48x6xf32>
    %49 = vector.shape_cast %48 : vector<48x6xf32> to vector<1x48x6xf32>
    %cst_16 = arith.constant dense<0.000000e+00> : vector<1xf32>
    %50 = vector.multi_reduction <add>, %49, %cst_16 [1, 2] : vector<1x48x6xf32> to vector<1xf32>
    %51 = vector.shape_cast %50 : vector<1xf32> to vector<1x1x1xf32>
    %52 = vector.extract %51[0, 0, 0] : f32 from vector<1x1x1xf32>
    %53 = vector.broadcast %52 : f32 to vector<1x8x128xf32>
    %c0_17 = arith.constant 0 : index
    %c0_18 = arith.constant 0 : index
    %c0_19 = arith.constant 0 : index
    %54 = vector.load %arg6[%c0_17, %c0_18, %c0_19] : memref<1x8x128xf32, #tpu.memory_space<vmem>>, vector<1x8x128xf32>
    tpu.vector_store %arg6[%c0_17, %c0_18, %c0_19], %53 {strides = array<i32>} : memref<1x8x128xf32, #tpu.memory_space<vmem>>, vector<1x8x128xf32>,
    return
  }
  func.func @transform_0(%arg0: i32, %arg1: memref<2xf32, #tpu.memory_space<smem>>) -> (i32, i32) {
    %c0_i32 = arith.constant 0 : i32
    %c0_i32_0 = arith.constant 0 : i32
    %c0_i32_1 = arith.constant 0 : i32
    return %c0_i32, %c0_i32_0 : i32, i32
  }
  func.func @transform_1(%arg0: i32, %arg1: memref<2xf32, #tpu.memory_space<smem>>) -> (i32, i32) {
    %c0_i32 = arith.constant 0 : i32
    %c0_i32_0 = arith.constant 0 : i32
    %c0_i32_1 = arith.constant 0 : i32
    return %c0_i32, %c0_i32_0 : i32, i32
  }
  func.func @transform_2(%arg0: i32, %arg1: memref<2xf32, #tpu.memory_space<smem>>) -> (i32, i32) {
    %c0_i32 = arith.constant 0 : i32
    %c0_i32_0 = arith.constant 0 : i32
    return %arg0, %c0_i32 : i32, i32
  }
  func.func @transform_3(%arg0: i32, %arg1: memref<2xf32, #tpu.memory_space<smem>>) -> (i32, i32) {
    %c0_i32 = arith.constant 0 : i32
    %c0_i32_0 = arith.constant 0 : i32
    return %arg0, %c0_i32 : i32, i32
  }
  func.func @transform_4(%arg0: i32, %arg1: memref<2xf32, #tpu.memory_space<smem>>) -> (i32, i32, i32) {
    %c0_i32 = arith.constant 0 : i32
    %c0_i32_0 = arith.constant 0 : i32
    %c0_i32_1 = arith.constant 0 : i32
    return %arg0, %c0_i32, %c0_i32_0 : i32, i32, i32
  }
}

</mosaic_0001>

<llo_original>
// kernel: _ssim_impl.1
$region0: #{_ssim_impl.1}
  #allocation0 [shape = 'u32[]', space=smem, size = 0x4, offset = 0x4, fixed_abs, tag = 'smem constant byte address 0x4 - core index']
  #allocation1 [shape = 'u32[144,128]{1,0:T(1,128)}', space=vmem, size = 0x12000, scoped, tag = 'internal scratch']
  #allocation2 [shape = 's32[1]{0}', space=sflag, size = 0x4, scoped, tag = 'scoped memory for _ssim_impl.1']
  #allocation3 [shape = 'u8[512]{0}', space=smem, size = 0x200, scoped, tag = 'prefetched SMEM operand 0']
  %s0 = inlined_call_operand.vmem [shape: f32[2], index: 0, kind: input, shape index: {}]
  %s1 = inlined_call_operand.hbm [shape: f32[48,128], index: 1, kind: input, shape index: {}]
  %s2 = inlined_call_operand.vmem [shape: f32[16,6], index: 2, kind: input, shape index: {}]
  %s3 = inlined_call_operand.vmem [shape: f32[128,16], index: 3, kind: input, shape index: {}]
  %s4 = inlined_call_operand.hbm [shape: f32[128,16], index: 4, kind: input, shape index: {}]
  %s5 = inlined_call_operand.vmem [shape: f32[1,8,128], index: 5, kind: output, shape index: {}]
  %s6 = sld [smem:[#allocation0]]
  $region34: #{_ssim_impl.1} parent=0
    _
  %s8 = ssub.s32 1, %s6
  %s9 = scalar_select 0, %s8, %s6
  %s10 = sshll.u32 %s0, 4
  %s11 = int_to_ptr.vmem [resolvable:$true] %s10
  %13 = dma.vmem_to_smem %s11, 16, [#allocation3], [#allocation2]
  %14 = dma.done [#allocation2], 16
  %15 = sfence
  $region1: #{_ssim_impl.1} parent=0
    #allocation4 [shape = 'u8[24576]{0}', space=vmem, size = 0x6000, scoped, tag = 'input window, operand 1, single buffered']
    #allocation5 [shape = 's32[1]{0}', space=sflag, size = 0x4, scoped, tag = 'scoped memory for _ssim_impl.1']
    #allocation6 [shape = 'u8[65536]{0}', space=vmem, size = 0x10000, scoped, tag = 'input window, operand 4, single buffered']
    #allocation7 [shape = 's32[1]{0}', space=sflag, size = 0x4, scoped, tag = 'scoped memory for _ssim_impl.1']
    %16 = vsyncpa [#allocation5], 0
    %17 = vsyncpa [#allocation7], 0
    // Predicated region
    $region2: #{_ssim_impl.1} parent=1 // pred_check
      _
    $region3: #{_ssim_impl.1} parent=1 // pred_check_branch
      %19 = sbr.rel (0) target = $region5
    $region4: #{_ssim_impl.1} parent=1 // pred_region
      %s21 = ssub.s32 768, 768
      %22 = vsyncadd [#allocation5], %s21
      %s23 = sshll.u32 [#allocation4], 4
      %s24 = int_to_ptr.vmem [resolvable:$true] %s23
      %29 = dma.hbm_to_vmem [thread:$0]  %s1, 768, %s24, [#allocation5], 128, 128, 8
    $region5: #{_ssim_impl.1} parent=1 // pred_fallthru
      _
    // Predicated region
    $region6: #{_ssim_impl.1} parent=1 // pred_check
      _
    $region7: #{_ssim_impl.1} parent=1 // pred_check_branch
      %31 = sbr.rel (0) target = $region9
    $region8: #{_ssim_impl.1} parent=1 // pred_region
      _
    $region9: #{_ssim_impl.1} parent=1 // pred_fallthru
      _
    // Predicated region
    $region10: #{_ssim_impl.1} parent=1 // pred_check
      _
    $region11: #{_ssim_impl.1} parent=1 // pred_check_branch
      %33 = sbr.rel (0) target = $region13
    $region12: #{_ssim_impl.1} parent=1 // pred_region
      _
    $region13: #{_ssim_impl.1} parent=1 // pred_fallthru
      _
    // Predicated region
    $region14: #{_ssim_impl.1} parent=1 // pred_check
      _
    $region15: #{_ssim_impl.1} parent=1 // pred_check_branch
      %35 = sbr.rel (0) target = $region17
    $region16: #{_ssim_impl.1} parent=1 // pred_region
      %s37 = ssub.s32 2048, 2048
      %38 = vsyncadd [#allocation7], %s37
      %s39 = sshll.u32 [#allocation6], 4
      %s40 = int_to_ptr.vmem [resolvable:$true] %s39
      %45 = dma.hbm_to_vmem [thread:$0]  %s4, 2048, %s40, [#allocation7], 128, 128, 8
    $region17: #{_ssim_impl.1} parent=1 // pred_fallthru
      _
    // Predicated region
    $region18: #{_ssim_impl.1} parent=1 // pred_check
      _
    $region19: #{_ssim_impl.1} parent=1 // pred_check_branch
      %47 = sbr.rel (0) target = $region21
    $region20: #{_ssim_impl.1} parent=1 // pred_region
      %48 = dma.done [#allocation5], 768
    $region21: #{_ssim_impl.1} parent=1 // pred_fallthru
      _
    // Predicated region
    $region22: #{_ssim_impl.1} parent=1 // pred_check
      _
    $region23: #{_ssim_impl.1} parent=1 // pred_check_branch
      %50 = sbr.rel (0) target = $region25
    $region24: #{_ssim_impl.1} parent=1 // pred_region
      %51 = dma.done [#allocation7], 2048
    $region25: #{_ssim_impl.1} parent=1 // pred_fallthru
      _
    %s52 = sld [smem:[#allocation3]]
    %s53 = sld [smem:[#allocation3 + $0x1]]
    %v54 = vld [vmem:[%s3] sm:$0xff]
    %v55 = vld [vmem:[%s3 + $0x8] sm:$0xff]
    %v56 = vld [vmem:[%s3 + $0x10] sm:$0xff]
    %v57 = vld [vmem:[%s3 + $0x18] sm:$0xff]
    %v58 = vld [vmem:[%s3 + $0x20] sm:$0xff]
    %v59 = vld [vmem:[%s3 + $0x28] sm:$0xff]
    %v60 = vld [vmem:[%s3 + $0x30] sm:$0xff]
    %v61 = vld [vmem:[%s3 + $0x38] sm:$0xff]
    %v62 = vld [vmem:[%s3 + $0x40] sm:$0xff]
    %v63 = vld [vmem:[%s3 + $0x48] sm:$0xff]
    %v64 = vld [vmem:[%s3 + $0x50] sm:$0xff]
    %v65 = vld [vmem:[%s3 + $0x58] sm:$0xff]
    %v66 = vld [vmem:[%s3 + $0x60] sm:$0xff]
    %v67 = vld [vmem:[%s3 + $0x68] sm:$0xff]
    %v68 = vld [vmem:[%s3 + $0x70] sm:$0xff]
    %v69 = vld [vmem:[%s3 + $0x78] sm:$0xff]
    %v70 = vld [vmem:[#allocation6] sm:$0xff]
    %v71 = vld [vmem:[#allocation6 + $0x8] sm:$0xff]
    %v72 = vld [vmem:[#allocation6 + $0x10] sm:$0xff]
    %v73 = vld [vmem:[#allocation6 + $0x18] sm:$0xff]
    %v74 = vld [vmem:[#allocation6 + $0x20] sm:$0xff]
    %v75 = vld [vmem:[#allocation6 + $0x28] sm:$0xff]
    %v76 = vld [vmem:[#allocation6 + $0x30] sm:$0xff]
    %v77 = vld [vmem:[#allocation6 + $0x38] sm:$0xff]
    %v78 = vld [vmem:[#allocation6 + $0x40] sm:$0xff]
    %v79 = vld [vmem:[#allocation6 + $0x48] sm:$0xff]
    %v80 = vld [vmem:[#allocation6 + $0x50] sm:$0xff]
    %v81 = vld [vmem:[#allocation6 + $0x58] sm:$0xff]
    %v82 = vld [vmem:[#allocation6 + $0x60] sm:$0xff]
    %v83 = vld [vmem:[#allocation6 + $0x68] sm:$0xff]
    %v84 = vld [vmem:[#allocation6 + $0x70] sm:$0xff]
    %v85 = vld [vmem:[#allocation6 + $0x78] sm:$0xff]
    %v86 = vld [vmem:[#allocation4] sm:$0xff]
    %v87 = vld [vmem:[#allocation4 + $0x8] sm:$0xff]
    %v88 = vld [vmem:[#allocation4 + $0x10] sm:$0xff]
    %v89 = vld [vmem:[#allocation4 + $0x18] sm:$0xff]
    %v90 = vld [vmem:[#allocation4 + $0x20] sm:$0xff]
    %v91 = vld [vmem:[#allocation4 + $0x28] sm:$0xff]
    %v92 = vld [vmem:[%s2] sm:$0xff]
    %v93 = vld [vmem:[%s2 + $0x8] sm:$0xff]
    %v94 = vmul.f32 %v54, %v54
    %v95 = vmul.f32 %v55, %v55
    %v96 = vmul.f32 %v56, %v56
    %v97 = vmul.f32 %v57, %v57
    %v98 = vmul.f32 %v58, %v58
    %v99 = vmul.f32 %v59, %v59
    %v100 = vmul.f32 %v60, %v60
    %v101 = vmul.f32 %v61, %v61
    %v102 = vmul.f32 %v62, %v62
    %v103 = vmul.f32 %v63, %v63
    %v104 = vmul.f32 %v64, %v64
    %v105 = vmul.f32 %v65, %v65
    %v106 = vmul.f32 %v66, %v66
    %v107 = vmul.f32 %v67, %v67
    %v108 = vmul.f32 %v68, %v68
    %v109 = vmul.f32 %v69, %v69
    %v110 = vmul.f32 %v70, %v70
    %v111 = vmul.f32 %v71, %v71
    %v112 = vmul.f32 %v72, %v72
    %v113 = vmul.f32 %v73, %v73
    %v114 = vmul.f32 %v74, %v74
    %v115 = vmul.f32 %v75, %v75
    %v116 = vmul.f32 %v76, %v76
    %v117 = vmul.f32 %v77, %v77
    %v118 = vmul.f32 %v78, %v78
    %v119 = vmul.f32 %v79, %v79
    %v120 = vmul.f32 %v80, %v80
    %v121 = vmul.f32 %v81, %v81
    %v122 = vmul.f32 %v82, %v82
    %v123 = vmul.f32 %v83, %v83
    %v124 = vmul.f32 %v84, %v84
    %v125 = vmul.f32 %v85, %v85
    %v126 = vmul.f32 %v54, %v70
    %v127 = vmul.f32 %v55, %v71
    %v128 = vmul.f32 %v56, %v72
    %v129 = vmul.f32 %v57, %v73
    %v130 = vmul.f32 %v58, %v74
    %v131 = vmul.f32 %v59, %v75
    %v132 = vmul.f32 %v60, %v76
    %v133 = vmul.f32 %v61, %v77
    %v134 = vmul.f32 %v62, %v78
    %v135 = vmul.f32 %v63, %v79
    %v136 = vmul.f32 %v64, %v80
    %v137 = vmul.f32 %v65, %v81
    %v138 = vmul.f32 %v66, %v82
    %v139 = vmul.f32 %v67, %v83
    %v140 = vmul.f32 %v68, %v84
    %v141 = vmul.f32 %v69, %v85
    %142 = vmatprep.subr.mxu0 0.0
    %v143 = vand.u32 %v69, 4294901760
    %144 = vmatpush1.msra.mxu0 %v143
    %145 = vmatprep.subr.mxu0 0.0
    %v146 = vand.u32 %v68, 4294901760
    %147 = vmatpush1.msra.mxu0 %v146
    %148 = vmatprep.subr.mxu0 0.0
    %v149 = vand.u32 %v67, 4294901760
    %150 = vmatpush1.msra.mxu0 %v149
    %151 = vmatprep.subr.mxu0 0.0
    %v152 = vand.u32 %v66, 4294901760
    %153 = vmatpush1.msra.mxu0 %v152
    %154 = vmatprep.subr.mxu0 0.0
    %v155 = vand.u32 %v65, 4294901760
    %156 = vmatpush1.msra.mxu0 %v155
    %157 = vmatprep.subr.mxu0 0.0
    %v158 = vand.u32 %v64, 4294901760
    %159 = vmatpush1.msra.mxu0 %v158
    %160 = vmatprep.subr.mxu0 0.0
    %v161 = vand.u32 %v63, 4294901760
    %162 = vmatpush1.msra.mxu0 %v161
    %163 = vmatprep.subr.mxu0 0.0
    %v164 = vand.u32 %v62, 4294901760
    %165 = vmatpush1.msra.mxu0 %v164
    %166 = vmatprep.subr.mxu0 0.0
    %v167 = vand.u32 %v61, 4294901760
    %168 = vmatpush1.msra.mxu0 %v167
    %169 = vmatprep.subr.mxu0 0.0
    %v170 = vand.u32 %v60, 4294901760
    %171 = vmatpush1.msra.mxu0 %v170
    %172 = vmatprep.subr.mxu0 0.0
    %v173 = vand.u32 %v59, 4294901760
    %174 = vmatpush1.msra.mxu0 %v173
    %175 = vmatprep.subr.mxu0 0.0
    %v176 = vand.u32 %v58, 4294901760
    %177 = vmatpush1.msra.mxu0 %v176
    %178 = vmatprep.subr.mxu0 0.0
    %v179 = vand.u32 %v57, 4294901760
    %180 = vmatpush1.msra.mxu0 %v179
    %181 = vmatprep.subr.mxu0 0.0
    %v182 = vand.u32 %v56, 4294901760
    %183 = vmatpush1.msra.mxu0 %v182
    %184 = vmatprep.subr.mxu0 0.0
    %v185 = vand.u32 %v55, 4294901760
    %186 = vmatpush1.msra.mxu0 %v185
    %187 = vmatprep.subr.mxu0 0.0
    %v188 = vand.u32 %v54, 4294901760
    %189 = vmatpush1.msra.mxu0 %v188
    %190 = vmatprep.subr.mxu0 0.0
    %191 = vmatpush2.msra.mxu0 0.0
    %192 = vmatprep.subr.mxu0 0.0
    %193 = vmatpush2.msra.mxu0 0.0
    %194 = vmatprep.subr.mxu0 0.0
    %195 = vmatpush2.msra.mxu0 0.0
    %196 = vmatprep.subr.mxu0 0.0
    %197 = vmatpush2.msra.mxu0 0.0
    %198 = vmatprep.subr.mxu0 0.0
    %199 = vmatpush2.msra.mxu0 0.0
    %200 = vmatprep.subr.mxu0 0.0
    %201 = vmatpush2.msra.mxu0 0.0
    %202 = vmatprep.subr.mxu0 0.0
    %203 = vmatpush2.msra.mxu0 0.0
    %204 = vmatprep.subr.mxu0 0.0
    %205 = vmatpush2.msra.mxu0 0.0
    %206 = vmatprep.subr.mxu0 0.0
    %207 = vmatpush2.msra.mxu0 0.0
    %208 = vmatprep.subr.mxu0 0.0
    %209 = vmatpush2.msra.mxu0 0.0
    %210 = vmatprep.subr.mxu0 0.0
    %211 = vmatpush2.msra.mxu0 0.0
    %212 = vmatprep.subr.mxu0 0.0
    %213 = vmatpush2.msra.mxu0 0.0
    %214 = vmatprep.subr.mxu0 0.0
    %215 = vmatpush2.msra.mxu0 0.0
    %216 = vmatprep.subr.mxu0 0.0
    %217 = vmatpush2.msra.mxu0 0.0
    %218 = vmatprep.subr.mxu0 0.0
    %219 = vmatpush2.msra.mxu0 0.0
    %220 = vmatprep.subr.mxu0 0.0
    %221 = vmatpush2.msra.mxu0 0.0
    %222 = vmatprep.mubr.f32.mxu0 0.0
    %v223 = vand.u32 %v86, 4294901760
    %v224 = vsub.f32 %v86, %v223
    %v225 = vand.u32 %v224, 4294901760
    %v226 = vsub.f32 %v224, %v225
    %v227 = vand.u32 %v226, 4294901760
    %228 = vmatmul.mubr.f32.gmra.mxu0 %v227
    %v229 = vpop.f32.mrf.mxu0
    %v230 = vadd.f32 0.0, %v229
    %v231 = vpop.f32.mrf.mxu0
    %232 = vmatprep.mubr.f32.mxu0 0.0
    %v233 = vand.u32 %v87, 4294901760
    %v234 = vsub.f32 %v87, %v233
    %v235 = vand.u32 %v234, 4294901760
    %v236 = vsub.f32 %v234, %v235
    %v237 = vand.u32 %v236, 4294901760
    %238 = vmatmul.mubr.f32.gmra.mxu0 %v237
    %v239 = vpop.f32.mrf.mxu0
    %v240 = vadd.f32 0.0, %v239
    %v241 = vpop.f32.mrf.mxu0
    %242 = vmatprep.mubr.f32.mxu0 0.0
    %v243 = vand.u32 %v88, 4294901760
    %v244 = vsub.f32 %v88, %v243
    %v245 = vand.u32 %v244, 4294901760
    %v246 = vsub.f32 %v244, %v245
    %v247 = vand.u32 %v246, 4294901760
    %248 = vmatmul.mubr.f32.gmra.mxu0 %v247
    %v249 = vpop.f32.mrf.mxu0
    %v250 = vadd.f32 0.0, %v249
    %v251 = vpop.f32.mrf.mxu0
    %252 = vmatprep.mubr.f32.mxu0 0.0
    %v253 = vand.u32 %v89, 4294901760
    %v254 = vsub.f32 %v89, %v253
    %v255 = vand.u32 %v254, 4294901760
    %v256 = vsub.f32 %v254, %v255
    %v257 = vand.u32 %v256, 4294901760
    %258 = vmatmul.mubr.f32.gmra.mxu0 %v257
    %v259 = vpop.f32.mrf.mxu0
    %v260 = vadd.f32 0.0, %v259
    %v261 = vpop.f32.mrf.mxu0
    %262 = vmatprep.mubr.f32.mxu0 0.0
    %v263 = vand.u32 %v90, 4294901760
    %v264 = vsub.f32 %v90, %v263
    %v265 = vand.u32 %v264, 4294901760
    %v266 = vsub.f32 %v264, %v265
    %v267 = vand.u32 %v266, 4294901760
    %268 = vmatmul.mubr.f32.gmra.mxu0 %v267
    %v269 = vpop.f32.mrf.mxu0
    %v270 = vadd.f32 0.0, %v269
    %v271 = vpop.f32.mrf.mxu0
    %272 = vmatprep.mubr.f32.mxu0 0.0
    %v273 = vand.u32 %v91, 4294901760
    %v274 = vsub.f32 %v91, %v273
    %v275 = vand.u32 %v274, 4294901760
    %v276 = vsub.f32 %v274, %v275
    %v277 = vand.u32 %v276, 4294901760
    %278 = vmatmul.mubr.f32.gmra.mxu0 %v277
    %v279 = vpop.f32.mrf.mxu0
    %v280 = vadd.f32 0.0, %v279
    %v281 = vpop.f32.mrf.mxu0
    %282 = vdwg.mxu0
    %283 = vmatprep.subr.mxu0 0.0
    %v284 = vand.u32 %v69, 4294901760
    %v285 = vsub.f32 %v69, %v284
    %v286 = vand.u32 %v285, 4294901760
    %v287 = vsub.f32 %v285, %v286
    %v288 = vand.u32 %v287, 4294901760
    %289 = vmatpush1.msra.mxu0 %v288
    %290 = vmatprep.subr.mxu0 0.0
    %v291 = vand.u32 %v68, 4294901760
    %v292 = vsub.f32 %v68, %v291
    %v293 = vand.u32 %v292, 4294901760
    %v294 = vsub.f32 %v292, %v293
    %v295 = vand.u32 %v294, 4294901760
    %296 = vmatpush1.msra.mxu0 %v295
    %297 = vmatprep.subr.mxu0 0.0
    %v298 = vand.u32 %v67, 4294901760
    %v299 = vsub.f32 %v67, %v298
    %v300 = vand.u32 %v299, 4294901760
    %v301 = vsub.f32 %v299, %v300
    %v302 = vand.u32 %v301, 4294901760
    %303 = vmatpush1.msra.mxu0 %v302
    %304 = vmatprep.subr.mxu0 0.0
    %v305 = vand.u32 %v66, 4294901760
    %v306 = vsub.f32 %v66, %v305
    %v307 = vand.u32 %v306, 4294901760
    %v308 = vsub.f32 %v306, %v307
    %v309 = vand.u32 %v308, 4294901760
    %310 = vmatpush1.msra.mxu0 %v309
    %311 = vmatprep.subr.mxu0 0.0
    %v312 = vand.u32 %v65, 4294901760
    %v313 = vsub.f32 %v65, %v312
    %v314 = vand.u32 %v313, 4294901760
    %v315 = vsub.f32 %v313, %v314
    %v316 = vand.u32 %v315, 4294901760
    %317 = vmatpush1.msra.mxu0 %v316
    %318 = vmatprep.subr.mxu0 0.0
    %v319 = vand.u32 %v64, 4294901760
    %v320 = vsub.f32 %v64, %v319
    %v321 = vand.u32 %v320, 4294901760
    %v322 = vsub.f32 %v320, %v321
    %v323 = vand.u32 %v322, 4294901760
    %324 = vmatpush1.msra.mxu0 %v323
    %325 = vmatprep.subr.mxu0 0.0
    %v326 = vand.u32 %v63, 4294901760
    %v327 = vsub.f32 %v63, %v326
    %v328 = vand.u32 %v327, 4294901760
    %v329 = vsub.f32 %v327, %v328
    %v330 = vand.u32 %v329, 4294901760
    %331 = vmatpush1.msra.mxu0 %v330
    %332 = vmatprep.subr.mxu0 0.0
    %v333 = vand.u32 %v62, 4294901760
    %v334 = vsub.f32 %v62, %v333
    %v335 = vand.u32 %v334, 4294901760
    %v336 = vsub.f32 %v334, %v335
    %v337 = vand.u32 %v336, 4294901760
    %338 = vmatpush1.msra.mxu0 %v337
    %339 = vmatprep.subr.mxu0 0.0
    %v340 = vand.u32 %v61, 4294901760
    %v341 = vsub.f32 %v61, %v340
    %v342 = vand.u32 %v341, 4294901760
    %v343 = vsub.f32 %v341, %v342
    %v344 = vand.u32 %v343, 4294901760
    %345 = vmatpush1.msra.mxu0 %v344
    %346 = vmatprep.subr.mxu0 0.0
    %v347 = vand.u32 %v60, 4294901760
    %v348 = vsub.f32 %v60, %v347
    %v349 = vand.u32 %v348, 4294901760
    %v350 = vsub.f32 %v348, %v349
    %v351 = vand.u32 %v350, 4294901760
    %352 = vmatpush1.msra.mxu0 %v351
    %353 = vmatprep.subr.mxu0 0.0
    %v354 = vand.u32 %v59, 4294901760
    %v355 = vsub.f32 %v59, %v354
    %v356 = vand.u32 %v355, 4294901760
    %v357 = vsub.f32 %v355, %v356
    %v358 = vand.u32 %v357, 4294901760
    %359 = vmatpush1.msra.mxu0 %v358
    %360 = vmatprep.subr.mxu0 0.0
    %v361 = vand.u32 %v58, 4294901760
    %v362 = vsub.f32 %v58, %v361
    %v363 = vand.u32 %v362, 4294901760
    %v364 = vsub.f32 %v362, %v363
    %v365 = vand.u32 %v364, 4294901760
    %366 = vmatpush1.msra.mxu0 %v365
    %367 = vmatprep.subr.mxu0 0.0
    %v368 = vand.u32 %v57, 4294901760
    %v369 = vsub.f32 %v57, %v368
    %v370 = vand.u32 %v369, 4294901760
    %v371 = vsub.f32 %v369, %v370
    %v372 = vand.u32 %v371, 4294901760
    %373 = vmatpush1.msra.mxu0 %v372
    %374 = vmatprep.subr.mxu0 0.0
    %v375 = vand.u32 %v56, 4294901760
    %v376 = vsub.f32 %v56, %v375
    %v377 = vand.u32 %v376, 4294901760
    %v378 = vsub.f32 %v376, %v377
    %v379 = vand.u32 %v378, 4294901760
    %380 = vmatpush1.msra.mxu0 %v379
    %381 = vmatprep.subr.mxu0 0.0
    %v382 = vand.u32 %v55, 4294901760
    %v383 = vsub.f32 %v55, %v382
    %v384 = vand.u32 %v383, 4294901760
    %v385 = vsub.f32 %v383, %v384
    %v386 = vand.u32 %v385, 4294901760
    %387 = vmatpush1.msra.mxu0 %v386
    %388 = vmatprep.subr.mxu0 0.0
    %v389 = vand.u32 %v54, 4294901760
    %v390 = vsub.f32 %v54, %v389
    %v391 = vand.u32 %v390, 4294901760
    %v392 = vsub.f32 %v390, %v391
    %v393 = vand.u32 %v392, 4294901760
    %394 = vmatpush1.msra.mxu0 %v393
    %395 = vmatprep.subr.mxu0 0.0
    %396 = vmatpush2.msra.mxu0 0.0
    %397 = vmatprep.subr.mxu0 0.0
    %398 = vmatpush2.msra.mxu0 0.0
    %399 = vmatprep.subr.mxu0 0.0
    %400 = vmatpush2.msra.mxu0 0.0
    %401 = vmatprep.subr.mxu0 0.0
    %402 = vmatpush2.msra.mxu0 0.0
    %403 = vmatprep.subr.mxu0 0.0
    %404 = vmatpush2.msra.mxu0 0.0
    %405 = vmatprep.subr.mxu0 0.0
    %406 = vmatpush2.msra.mxu0 0.0
    %407 = vmatprep.subr.mxu0 0.0
    %408 = vmatpush2.msra.mxu0 0.0
    %409 = vmatprep.subr.mxu0 0.0
    %410 = vmatpush2.msra.mxu0 0.0
    %411 = vmatprep.subr.mxu0 0.0
    %412 = vmatpush2.msra.mxu0 0.0
    %413 = vmatprep.subr.mxu0 0.0
    %414 = vmatpush2.msra.mxu0 0.0
    %415 = vmatprep.subr.mxu0 0.0
    %416 = vmatpush2.msra.mxu0 0.0
    %417 = vmatprep.subr.mxu0 0.0
    %418 = vmatpush2.msra.mxu0 0.0
    %419 = vmatprep.subr.mxu0 0.0
    %420 = vmatpush2.msra.mxu0 0.0
    %421 = vmatprep.subr.mxu0 0.0
    %422 = vmatpush2.msra.mxu0 0.0
    %423 = vmatprep.subr.mxu0 0.0
    %424 = vmatpush2.msra.mxu0 0.0
    %425 = vmatprep.subr.mxu0 0.0
    %426 = vmatpush2.msra.mxu0 0.0
    %427 = vmatprep.mubr.f32.mxu0 0.0
    %v428 = vand.u32 %v86, 4294901760
    %429 = vmatmul.mubr.f32.gmra.mxu0 %v428
    %v430 = vpop.f32.mrf.mxu0
    %v431 = vadd.f32 %v230, %v430
    %v432 = vpop.f32.mrf.mxu0
    %433 = vmatprep.mubr.f32.mxu0 0.0
    %v434 = vand.u32 %v87, 4294901760
    %435 = vmatmul.mubr.f32.gmra.mxu0 %v434
    %v436 = vpop.f32.mrf.mxu0
    %v437 = vadd.f32 %v240, %v436
    %v438 = vpop.f32.mrf.mxu0
    %439 = vmatprep.mubr.f32.mxu0 0.0
    %v440 = vand.u32 %v88, 4294901760
    %441 = vmatmul.mubr.f32.gmra.mxu0 %v440
    %v442 = vpop.f32.mrf.mxu0
    %v443 = vadd.f32 %v250, %v442
    %v444 = vpop.f32.mrf.mxu0
    %445 = vmatprep.mubr.f32.mxu0 0.0
    %v446 = vand.u32 %v89, 4294901760
    %447 = vmatmul.mubr.f32.gmra.mxu0 %v446
    %v448 = vpop.f32.mrf.mxu0
    %v449 = vadd.f32 %v260, %v448
    %v450 = vpop.f32.mrf.mxu0
    %451 = vmatprep.mubr.f32.mxu0 0.0
    %v452 = vand.u32 %v90, 4294901760
    %453 = vmatmul.mubr.f32.gmra.mxu0 %v452
    %v454 = vpop.f32.mrf.mxu0
    %v455 = vadd.f32 %v270, %v454
    %v456 = vpop.f32.mrf.mxu0
    %457 = vmatprep.mubr.f32.mxu0 0.0
    %v458 = vand.u32 %v91, 4294901760
    %459 = vmatmul.mubr.f32.gmra.mxu0 %v458
    %v460 = vpop.f32.mrf.mxu0
    %v461 = vadd.f32 %v280, %v460
    %v462 = vpop.f32.mrf.mxu0
    %463 = vdwg.mxu0
    %464 = vmatprep.subr.mxu0 0.0
    %v465 = vand.u32 %v69, 4294901760
    %v466 = vsub.f32 %v69, %v465
    %467 = vmatpush1.msra.mxu0 %v466
    %468 = vmatprep.subr.mxu0 0.0
    %v469 = vand.u32 %v68, 4294901760
    %v470 = vsub.f32 %v68, %v469
    %471 = vmatpush1.msra.mxu0 %v470
    %472 = vmatprep.subr.mxu0 0.0
    %v473 = vand.u32 %v67, 4294901760
    %v474 = vsub.f32 %v67, %v473
    %475 = vmatpush1.msra.mxu0 %v474
    %476 = vmatprep.subr.mxu0 0.0
    %v477 = vand.u32 %v66, 4294901760
    %v478 = vsub.f32 %v66, %v477
    %479 = vmatpush1.msra.mxu0 %v478
    %480 = vmatprep.subr.mxu0 0.0
    %v481 = vand.u32 %v65, 4294901760
    %v482 = vsub.f32 %v65, %v481
    %483 = vmatpush1.msra.mxu0 %v482
    %484 = vmatprep.subr.mxu0 0.0
    %v485 = vand.u32 %v64, 4294901760
    %v486 = vsub.f32 %v64, %v485
    %487 = vmatpush1.msra.mxu0 %v486
    %488 = vmatprep.subr.mxu0 0.0
    %v489 = vand.u32 %v63, 4294901760
    %v490 = vsub.f32 %v63, %v489
    %491 = vmatpush1.msra.mxu0 %v490
    %492 = vmatprep.subr.mxu0 0.0
    %v493 = vand.u32 %v62, 4294901760
    %v494 = vsub.f32 %v62, %v493
    %495 = vmatpush1.msra.mxu0 %v494
    %496 = vmatprep.subr.mxu0 0.0
    %v497 = vand.u32 %v61, 4294901760
    %v498 = vsub.f32 %v61, %v497
    %499 = vmatpush1.msra.mxu0 %v498
    %500 = vmatprep.subr.mxu0 0.0
    %v501 = vand.u32 %v60, 4294901760
    %v502 = vsub.f32 %v60, %v501
    %503 = vmatpush1.msra.mxu0 %v502
    %504 = vmatprep.subr.mxu0 0.0
    %v505 = vand.u32 %v59, 4294901760
    %v506 = vsub.f32 %v59, %v505
    %507 = vmatpush1.msra.mxu0 %v506
    %508 = vmatprep.subr.mxu0 0.0
    %v509 = vand.u32 %v58, 4294901760
    %v510 = vsub.f32 %v58, %v509
    %511 = vmatpush1.msra.mxu0 %v510
    %512 = vmatprep.subr.mxu0 0.0
    %v513 = vand.u32 %v57, 4294901760
    %v514 = vsub.f32 %v57, %v513
    %515 = vmatpush1.msra.mxu0 %v514
    %516 = vmatprep.subr.mxu0 0.0
    %v517 = vand.u32 %v56, 4294901760
    %v518 = vsub.f32 %v56, %v517
    %519 = vmatpush1.msra.mxu0 %v518
    %520 = vmatprep.subr.mxu0 0.0
    %v521 = vand.u32 %v55, 4294901760
    %v522 = vsub.f32 %v55, %v521
    %523 = vmatpush1.msra.mxu0 %v522
    %524 = vmatprep.subr.mxu0 0.0
    %v525 = vand.u32 %v54, 4294901760
    %v526 = vsub.f32 %v54, %v525
    %527 = vmatpush1.msra.mxu0 %v526
    %528 = vmatprep.subr.mxu0 0.0
    %529 = vmatpush2.msra.mxu0 0.0
    %530 = vmatprep.subr.mxu0 0.0
    %531 = vmatpush2.msra.mxu0 0.0
    %532 = vmatprep.subr.mxu0 0.0
    %533 = vmatpush2.msra.mxu0 0.0
    %534 = vmatprep.subr.mxu0 0.0
    %535 = vmatpush2.msra.mxu0 0.0
    %536 = vmatprep.subr.mxu0 0.0
    %537 = vmatpush2.msra.mxu0 0.0
    %538 = vmatprep.subr.mxu0 0.0
    %539 = vmatpush2.msra.mxu0 0.0
    %540 = vmatprep.subr.mxu0 0.0
    %541 = vmatpush2.msra.mxu0 0.0
    %542 = vmatprep.subr.mxu0 0.0
    %543 = vmatpush2.msra.mxu0 0.0
    %544 = vmatprep.subr.mxu0 0.0
    %545 = vmatpush2.msra.mxu0 0.0
    %546 = vmatprep.subr.mxu0 0.0
    %547 = vmatpush2.msra.mxu0 0.0
    %548 = vmatprep.subr.mxu0 0.0
    %549 = vmatpush2.msra.mxu0 0.0
    %550 = vmatprep.subr.mxu0 0.0
    %551 = vmatpush2.msra.mxu0 0.0
    %552 = vmatprep.subr.mxu0 0.0
    %553 = vmatpush2.msra.mxu0 0.0
    %554 = vmatprep.subr.mxu0 0.0
    %555 = vmatpush2.msra.mxu0 0.0
    %556 = vmatprep.subr.mxu0 0.0
    %557 = vmatpush2.msra.mxu0 0.0
    %558 = vmatprep.subr.mxu0 0.0
    %559 = vmatpush2.msra.mxu0 0.0
    %560 = vmatprep.mubr.f32.mxu0 0.0
    %v561 = vand.u32 %v86, 4294901760
    %v562 = vsub.f32 %v86, %v561
    %563 = vmatmul.mubr.f32.gmra.mxu0 %v562
    %v564 = vpop.f32.mrf.mxu0
    %v565 = vadd.f32 %v431, %v564
    %v566 = vpop.f32.mrf.mxu0
    %567 = vmatprep.mubr.f32.mxu0 0.0
    %v568 = vand.u32 %v87, 4294901760
    %v569 = vsub.f32 %v87, %v568
    %570 = vmatmul.mubr.f32.gmra.mxu0 %v569
    %v571 = vpop.f32.mrf.mxu0
    %v572 = vadd.f32 %v437, %v571
    %v573 = vpop.f32.mrf.mxu0
    %574 = vmatprep.mubr.f32.mxu0 0.0
    %v575 = vand.u32 %v88, 4294901760
    %v576 = vsub.f32 %v88, %v575
    %577 = vmatmul.mubr.f32.gmra.mxu0 %v576
    %v578 = vpop.f32.mrf.mxu0
    %v579 = vadd.f32 %v443, %v578
    %v580 = vpop.f32.mrf.mxu0
    %581 = vmatprep.mubr.f32.mxu0 0.0
    %v582 = vand.u32 %v89, 4294901760
    %v583 = vsub.f32 %v89, %v582
    %584 = vmatmul.mubr.f32.gmra.mxu0 %v583
    %v585 = vpop.f32.mrf.mxu0
    %v586 = vadd.f32 %v449, %v585
    %v587 = vpop.f32.mrf.mxu0
    %588 = vmatprep.mubr.f32.mxu0 0.0
    %v589 = vand.u32 %v90, 4294901760
    %v590 = vsub.f32 %v90, %v589
    %591 = vmatmul.mubr.f32.gmra.mxu0 %v590
    %v592 = vpop.f32.mrf.mxu0
    %v593 = vadd.f32 %v455, %v592
    %v594 = vpop.f32.mrf.mxu0
    %595 = vmatprep.mubr.f32.mxu0 0.0
    %v596 = vand.u32 %v91, 4294901760
    %v597 = vsub.f32 %v91, %v596
    %598 = vmatmul.mubr.f32.gmra.mxu0 %v597
    %v599 = vpop.f32.mrf.mxu0
    %v600 = vadd.f32 %v461, %v599
    %v601 = vpop.f32.mrf.mxu0
    %602 = vdwg.mxu0
    %603 = vmatprep.subr.mxu0 0.0
    %v604 = vand.u32 %v69, 4294901760
    %605 = vmatpush1.msra.mxu0 %v604
    %606 = vmatprep.subr.mxu0 0.0
    %v607 = vand.u32 %v68, 4294901760
    %608 = vmatpush1.msra.mxu0 %v607
    %609 = vmatprep.subr.mxu0 0.0
    %v610 = vand.u32 %v67, 4294901760
    %611 = vmatpush1.msra.mxu0 %v610
    %612 = vmatprep.subr.mxu0 0.0
    %v613 = vand.u32 %v66, 4294901760
    %614 = vmatpush1.msra.mxu0 %v613
    %615 = vmatprep.subr.mxu0 0.0
    %v616 = vand.u32 %v65, 4294901760
    %617 = vmatpush1.msra.mxu0 %v616
    %618 = vmatprep.subr.mxu0 0.0
    %v619 = vand.u32 %v64, 4294901760
    %620 = vmatpush1.msra.mxu0 %v619
    %621 = vmatprep.subr.mxu0 0.0
    %v622 = vand.u32 %v63, 4294901760
    %623 = vmatpush1.msra.mxu0 %v622
    %624 = vmatprep.subr.mxu0 0.0
    %v625 = vand.u32 %v62, 4294901760
    %626 = vmatpush1.msra.mxu0 %v625
    %627 = vmatprep.subr.mxu0 0.0
    %v628 = vand.u32 %v61, 4294901760
    %629 = vmatpush1.msra.mxu0 %v628
    %630 = vmatprep.subr.mxu0 0.0
    %v631 = vand.u32 %v60, 4294901760
    %632 = vmatpush1.msra.mxu0 %v631
    %633 = vmatprep.subr.mxu0 0.0
    %v634 = vand.u32 %v59, 4294901760
    %635 = vmatpush1.msra.mxu0 %v634
    %636 = vmatprep.subr.mxu0 0.0
    %v637 = vand.u32 %v58, 4294901760
    %638 = vmatpush1.msra.mxu0 %v637
    %639 = vmatprep.subr.mxu0 0.0
    %v640 = vand.u32 %v57, 4294901760
    %641 = vmatpush1.msra.mxu0 %v640
    %642 = vmatprep.subr.mxu0 0.0
    %v643 = vand.u32 %v56, 4294901760
    %644 = vmatpush1.msra.mxu0 %v643
    %645 = vmatprep.subr.mxu0 0.0
    %v646 = vand.u32 %v55, 4294901760
    %647 = vmatpush1.msra.mxu0 %v646
    %648 = vmatprep.subr.mxu0 0.0
    %v649 = vand.u32 %v54, 4294901760
    %650 = vmatpush1.msra.mxu0 %v649
    %651 = vmatprep.subr.mxu0 0.0
    %652 = vmatpush2.msra.mxu0 0.0
    %653 = vmatprep.subr.mxu0 0.0
    %654 = vmatpush2.msra.mxu0 0.0
    %655 = vmatprep.subr.mxu0 0.0
    %656 = vmatpush2.msra.mxu0 0.0
    %657 = vmatprep.subr.mxu0 0.0
    %658 = vmatpush2.msra.mxu0 0.0
    %659 = vmatprep.subr.mxu0 0.0
    %660 = vmatpush2.msra.mxu0 0.0
    %661 = vmatprep.subr.mxu0 0.0
    %662 = vmatpush2.msra.mxu0 0.0
    %663 = vmatprep.subr.mxu0 0.0
    %664 = vmatpush2.msra.mxu0 0.0
    %665 = vmatprep.subr.mxu0 0.0
    %666 = vmatpush2.msra.mxu0 0.0
    %667 = vmatprep.subr.mxu0 0.0
    %668 = vmatpush2.msra.mxu0 0.0
    %669 = vmatprep.subr.mxu0 0.0
    %670 = vmatpush2.msra.mxu0 0.0
    %671 = vmatprep.subr.mxu0 0.0
    %672 = vmatpush2.msra.mxu0 0.0
    %673 = vmatprep.subr.mxu0 0.0
    %674 = vmatpush2.msra.mxu0 0.0
    %675 = vmatprep.subr.mxu0 0.0
    %676 = vmatpush2.msra.mxu0 0.0
    %677 = vmatprep.subr.mxu0 0.0
    %678 = vmatpush2.msra.mxu0 0.0
    %679 = vmatprep.subr.mxu0 0.0
    %680 = vmatpush2.msra.mxu0 0.0
    %681 = vmatprep.subr.mxu0 0.0
    %682 = vmatpush2.msra.mxu0 0.0
    %683 = vmatprep.mubr.f32.mxu0 0.0
    %v684 = vand.u32 %v86, 4294901760
    %v685 = vsub.f32 %v86, %v684
    %v686 = vand.u32 %v685, 4294901760
    %687 = vmatmul.mubr.f32.gmra.mxu0 %v686
    %v688 = vpop.f32.mrf.mxu0
    %v689 = vadd.f32 %v565, %v688
    %v690 = vpop.f32.mrf.mxu0
    %691 = vmatprep.mubr.f32.mxu0 0.0
    %v692 = vand.u32 %v87, 4294901760
    %v693 = vsub.f32 %v87, %v692
    %v694 = vand.u32 %v693, 4294901760
    %695 = vmatmul.mubr.f32.gmra.mxu0 %v694
    %v696 = vpop.f32.mrf.mxu0
    %v697 = vadd.f32 %v572, %v696
    %v698 = vpop.f32.mrf.mxu0
    %699 = vmatprep.mubr.f32.mxu0 0.0
    %v700 = vand.u32 %v88, 4294901760
    %v701 = vsub.f32 %v88, %v700
    %v702 = vand.u32 %v701, 4294901760
    %703 = vmatmul.mubr.f32.gmra.mxu0 %v702
    %v704 = vpop.f32.mrf.mxu0
    %v705 = vadd.f32 %v579, %v704
    %v706 = vpop.f32.mrf.mxu0
    %707 = vmatprep.mubr.f32.mxu0 0.0
    %v708 = vand.u32 %v89, 4294901760
    %v709 = vsub.f32 %v89, %v708
    %v710 = vand.u32 %v709, 4294901760
    %711 = vmatmul.mubr.f32.gmra.mxu0 %v710
    %v712 = vpop.f32.mrf.mxu0
    %v713 = vadd.f32 %v586, %v712
    %v714 = vpop.f32.mrf.mxu0
    %715 = vmatprep.mubr.f32.mxu0 0.0
    %v716 = vand.u32 %v90, 4294901760
    %v717 = vsub.f32 %v90, %v716
    %v718 = vand.u32 %v717, 4294901760
    %719 = vmatmul.mubr.f32.gmra.mxu0 %v718
    %v720 = vpop.f32.mrf.mxu0
    %v721 = vadd.f32 %v593, %v720
    %v722 = vpop.f32.mrf.mxu0
    %723 = vmatprep.mubr.f32.mxu0 0.0
    %v724 = vand.u32 %v91, 4294901760
    %v725 = vsub.f32 %v91, %v724
    %v726 = vand.u32 %v725, 4294901760
    %727 = vmatmul.mubr.f32.gmra.mxu0 %v726
    %v728 = vpop.f32.mrf.mxu0
    %v729 = vadd.f32 %v600, %v728
    %v730 = vpop.f32.mrf.mxu0
    %731 = vdwg.mxu0
    %732 = vmatprep.subr.mxu0 0.0
    %v733 = vand.u32 %v69, 4294901760
    %v734 = vsub.f32 %v69, %v733
    %v735 = vand.u32 %v734, 4294901760
    %736 = vmatpush1.msra.mxu0 %v735
    %737 = vmatprep.subr.mxu0 0.0
    %v738 = vand.u32 %v68, 4294901760
    %v739 = vsub.f32 %v68, %v738
    %v740 = vand.u32 %v739, 4294901760
    %741 = vmatpush1.msra.mxu0 %v740
    %742 = vmatprep.subr.mxu0 0.0
    %v743 = vand.u32 %v67, 4294901760
    %v744 = vsub.f32 %v67, %v743
    %v745 = vand.u32 %v744, 4294901760
    %746 = vmatpush1.msra.mxu0 %v745
    %747 = vmatprep.subr.mxu0 0.0
    %v748 = vand.u32 %v66, 4294901760
    %v749 = vsub.f32 %v66, %v748
    %v750 = vand.u32 %v749, 4294901760
    %751 = vmatpush1.msra.mxu0 %v750
    %752 = vmatprep.subr.mxu0 0.0
    %v753 = vand.u32 %v65, 4294901760
    %v754 = vsub.f32 %v65, %v753
    %v755 = vand.u32 %v754, 4294901760
    %756 = vmatpush1.msra.mxu0 %v755
    %757 = vmatprep.subr.mxu0 0.0
    %v758 = vand.u32 %v64, 4294901760
    %v759 = vsub.f32 %v64, %v758
    %v760 = vand.u32 %v759, 4294901760
    %761 = vmatpush1.msra.mxu0 %v760
    %762 = vmatprep.subr.mxu0 0.0
    %v763 = vand.u32 %v63, 4294901760
    %v764 = vsub.f32 %v63, %v763
    %v765 = vand.u32 %v764, 4294901760
    %766 = vmatpush1.msra.mxu0 %v765
    %767 = vmatprep.subr.mxu0 0.0
    %v768 = vand.u32 %v62, 4294901760
    %v769 = vsub.f32 %v62, %v768
    %v770 = vand.u32 %v769, 4294901760
    %771 = vmatpush1.msra.mxu0 %v770
    %772 = vmatprep.subr.mxu0 0.0
    %v773 = vand.u32 %v61, 4294901760
    %v774 = vsub.f32 %v61, %v773
    %v775 = vand.u32 %v774, 4294901760
    %776 = vmatpush1.msra.mxu0 %v775
    %777 = vmatprep.subr.mxu0 0.0
    %v778 = vand.u32 %v60, 4294901760
    %v779 = vsub.f32 %v60, %v778
    %v780 = vand.u32 %v779, 4294901760
    %781 = vmatpush1.msra.mxu0 %v780
    %782 = vmatprep.subr.mxu0 0.0
    %v783 = vand.u32 %v59, 4294901760
    %v784 = vsub.f32 %v59, %v783
    %v785 = vand.u32 %v784, 4294901760
    %786 = vmatpush1.msra.mxu0 %v785
    %787 = vmatprep.subr.mxu0 0.0
    %v788 = vand.u32 %v58, 4294901760
    %v789 = vsub.f32 %v58, %v788
    %v790 = vand.u32 %v789, 4294901760
    %791 = vmatpush1.msra.mxu0 %v790
    %792 = vmatprep.subr.mxu0 0.0
    %v793 = vand.u32 %v57, 4294901760
    %v794 = vsub.f32 %v57, %v793
    %v795 = vand.u32 %v794, 4294901760
    %796 = vmatpush1.msra.mxu0 %v795
    %797 = vmatprep.subr.mxu0 0.0
    %v798 = vand.u32 %v56, 4294901760
    %v799 = vsub.f32 %v56, %v798
    %v800 = vand.u32 %v799, 4294901760
    %801 = vmatpush1.msra.mxu0 %v800
    %802 = vmatprep.subr.mxu0 0.0
    %v803 = vand.u32 %v55, 4294901760
    %v804 = vsub.f32 %v55, %v803
    %v805 = vand.u32 %v804, 4294901760
    %806 = vmatpush1.msra.mxu0 %v805
    %807 = vmatprep.subr.mxu0 0.0
    %v808 = vand.u32 %v54, 4294901760
    %v809 = vsub.f32 %v54, %v808
    %v810 = vand.u32 %v809, 4294901760
    %811 = vmatpush1.msra.mxu0 %v810
    %812 = vmatprep.subr.mxu0 0.0
    %813 = vmatpush2.msra.mxu0 0.0
    %814 = vmatprep.subr.mxu0 0.0
    %815 = vmatpush2.msra.mxu0 0.0
    %816 = vmatprep.subr.mxu0 0.0
    %817 = vmatpush2.msra.mxu0 0.0
    %818 = vmatprep.subr.mxu0 0.0
    %819 = vmatpush2.msra.mxu0 0.0
    %820 = vmatprep.subr.mxu0 0.0
    %821 = vmatpush2.msra.mxu0 0.0
    %822 = vmatprep.subr.mxu0 0.0
    %823 = vmatpush2.msra.mxu0 0.0
    %824 = vmatprep.subr.mxu0 0.0
    %825 = vmatpush2.msra.mxu0 0.0
    %826 = vmatprep.subr.mxu0 0.0
    %827 = vmatpush2.msra.mxu0 0.0
    %828 = vmatprep.subr.mxu0 0.0
    %829 = vmatpush2.msra.mxu0 0.0
    %830 = vmatprep.subr.mxu0 0.0
    %831 = vmatpush2.msra.mxu0 0.0
    %832 = vmatprep.subr.mxu0 0.0
    %833 = vmatpush2.msra.mxu0 0.0
    %834 = vmatprep.subr.mxu0 0.0
    %835 = vmatpush2.msra.mxu0 0.0
    %836 = vmatprep.subr.mxu0 0.0
    %837 = vmatpush2.msra.mxu0 0.0
    %838 = vmatprep.subr.mxu0 0.0
    %839 = vmatpush2.msra.mxu0 0.0
    %840 = vmatprep.subr.mxu0 0.0
    %841 = vmatpush2.msra.mxu0 0.0
    %842 = vmatprep.subr.mxu0 0.0
    %843 = vmatpush2.msra.mxu0 0.0
    %844 = vmatprep.mubr.f32.mxu0 0.0
    %v845 = vand.u32 %v86, 4294901760
    %846 = vmatmul.mubr.f32.gmra.mxu0 %v845
    %v847 = vpop.f32.mrf.mxu0
    %v848 = vadd.f32 %v689, %v847
    %v849 = vpop.f32.mrf.mxu0
    %850 = vmatprep.mubr.f32.mxu0 0.0
    %v851 = vand.u32 %v87, 4294901760
    %852 = vmatmul.mubr.f32.gmra.mxu0 %v851
    %v853 = vpop.f32.mrf.mxu0
    %v854 = vadd.f32 %v697, %v853
    %v855 = vpop.f32.mrf.mxu0
    %856 = vmatprep.mubr.f32.mxu0 0.0
    %v857 = vand.u32 %v88, 4294901760
    %858 = vmatmul.mubr.f32.gmra.mxu0 %v857
    %v859 = vpop.f32.mrf.mxu0
    %v860 = vadd.f32 %v705, %v859
    %v861 = vpop.f32.mrf.mxu0
    %862 = vmatprep.mubr.f32.mxu0 0.0
    %v863 = vand.u32 %v89, 4294901760
    %864 = vmatmul.mubr.f32.gmra.mxu0 %v863
    %v865 = vpop.f32.mrf.mxu0
    %v866 = vadd.f32 %v713, %v865
    %v867 = vpop.f32.mrf.mxu0
    %868 = vmatprep.mubr.f32.mxu0 0.0
    %v869 = vand.u32 %v90, 4294901760
    %870 = vmatmul.mubr.f32.gmra.mxu0 %v869
    %v871 = vpop.f32.mrf.mxu0
    %v872 = vadd.f32 %v721, %v871
    %v873 = vpop.f32.mrf.mxu0
    %874 = vmatprep.mubr.f32.mxu0 0.0
    %v875 = vand.u32 %v91, 4294901760
    %876 = vmatmul.mubr.f32.gmra.mxu0 %v875
    %v877 = vpop.f32.mrf.mxu0
    %v878 = vadd.f32 %v729, %v877
    %v879 = vpop.f32.mrf.mxu0
    %880 = vdwg.mxu0
    %881 = vmatprep.subr.mxu0 0.0
    %v882 = vand.u32 %v69, 4294901760
    %883 = vmatpush1.msra.mxu0 %v882
    %884 = vmatprep.subr.mxu0 0.0
    %v885 = vand.u32 %v68, 4294901760
    %886 = vmatpush1.msra.mxu0 %v885
    %887 = vmatprep.subr.mxu0 0.0
    %v888 = vand.u32 %v67, 4294901760
    %889 = vmatpush1.msra.mxu0 %v888
    %890 = vmatprep.subr.mxu0 0.0
    %v891 = vand.u32 %v66, 4294901760
    %892 = vmatpush1.msra.mxu0 %v891
    %893 = vmatprep.subr.mxu0 0.0
    %v894 = vand.u32 %v65, 4294901760
    %895 = vmatpush1.msra.mxu0 %v894
    %896 = vmatprep.subr.mxu0 0.0
    %v897 = vand.u32 %v64, 4294901760
    %898 = vmatpush1.msra.mxu0 %v897
    %899 = vmatprep.subr.mxu0 0.0
    %v900 = vand.u32 %v63, 4294901760
    %901 = vmatpush1.msra.mxu0 %v900
    %902 = vmatprep.subr.mxu0 0.0
    %v903 = vand.u32 %v62, 4294901760
    %904 = vmatpush1.msra.mxu0 %v903
    %905 = vmatprep.subr.mxu0 0.0
    %v906 = vand.u32 %v61, 4294901760
    %907 = vmatpush1.msra.mxu0 %v906
    %908 = vmatprep.subr.mxu0 0.0
    %v909 = vand.u32 %v60, 4294901760
    %910 = vmatpush1.msra.mxu0 %v909
    %911 = vmatprep.subr.mxu0 0.0
    %v912 = vand.u32 %v59, 4294901760
    %913 = vmatpush1.msra.mxu0 %v912
    %914 = vmatprep.subr.mxu0 0.0
    %v915 = vand.u32 %v58, 4294901760
    %916 = vmatpush1.msra.mxu0 %v915
    %917 = vmatprep.subr.mxu0 0.0
    %v918 = vand.u32 %v57, 4294901760
    %919 = vmatpush1.msra.mxu0 %v918
    %920 = vmatprep.subr.mxu0 0.0
    %v921 = vand.u32 %v56, 4294901760
    %922 = vmatpush1.msra.mxu0 %v921
    %923 = vmatprep.subr.mxu0 0.0
    %v924 = vand.u32 %v55, 4294901760
    %925 = vmatpush1.msra.mxu0 %v924
    %926 = vmatprep.subr.mxu0 0.0
    %v927 = vand.u32 %v54, 4294901760
    %928 = vmatpush1.msra.mxu0 %v927
    %929 = vmatprep.subr.mxu0 0.0
    %930 = vmatpush2.msra.mxu0 0.0
    %931 = vmatprep.subr.mxu0 0.0
    %932 = vmatpush2.msra.mxu0 0.0
    %933 = vmatprep.subr.mxu0 0.0
    %934 = vmatpush2.msra.mxu0 0.0
    %935 = vmatprep.subr.mxu0 0.0
    %936 = vmatpush2.msra.mxu0 0.0
    %937 = vmatprep.subr.mxu0 0.0
    %938 = vmatpush2.msra.mxu0 0.0
    %939 = vmatprep.subr.mxu0 0.0
    %940 = vmatpush2.msra.mxu0 0.0
    %941 = vmatprep.subr.mxu0 0.0
    %942 = vmatpush2.msra.mxu0 0.0
    %943 = vmatprep.subr.mxu0 0.0
    %944 = vmatpush2.msra.mxu0 0.0
    %945 = vmatprep.subr.mxu0 0.0
    %946 = vmatpush2.msra.mxu0 0.0
    %947 = vmatprep.subr.mxu0 0.0
    %948 = vmatpush2.msra.mxu0 0.0
    %949 = vmatprep.subr.mxu0 0.0
    %950 = vmatpush2.msra.mxu0 0.0
    %951 = vmatprep.subr.mxu0 0.0
    %952 = vmatpush2.msra.mxu0 0.0
    %953 = vmatprep.subr.mxu0 0.0
    %954 = vmatpush2.msra.mxu0 0.0
    %955 = vmatprep.subr.mxu0 0.0
    %956 = vmatpush2.msra.mxu0 0.0
    %957 = vmatprep.subr.mxu0 0.0
    %958 = vmatpush2.msra.mxu0 0.0
    %959 = vmatprep.subr.mxu0 0.0
    %960 = vmatpush2.msra.mxu0 0.0
    %961 = vmatprep.mubr.f32.mxu0 0.0
    %v962 = vand.u32 %v86, 4294901760
    %963 = vmatmul.mubr.f32.gmra.mxu0 %v962
    %v964 = vpop.f32.mrf.mxu0
    %v965 = vadd.f32 %v848, %v964
    %v966 = vpop.f32.mrf.mxu0
    %967 = vmatprep.mubr.f32.mxu0 0.0
    %v968 = vand.u32 %v87, 4294901760
    %969 = vmatmul.mubr.f32.gmra.mxu0 %v968
    %v970 = vpop.f32.mrf.mxu0
    %v971 = vadd.f32 %v854, %v970
    %v972 = vpop.f32.mrf.mxu0
    %973 = vmatprep.mubr.f32.mxu0 0.0
    %v974 = vand.u32 %v88, 4294901760
    %975 = vmatmul.mubr.f32.gmra.mxu0 %v974
    %v976 = vpop.f32.mrf.mxu0
    %v977 = vadd.f32 %v860, %v976
    %v978 = vpop.f32.mrf.mxu0
    %979 = vmatprep.mubr.f32.mxu0 0.0
    %v980 = vand.u32 %v89, 4294901760
    %981 = vmatmul.mubr.f32.gmra.mxu0 %v980
    %v982 = vpop.f32.mrf.mxu0
    %v983 = vadd.f32 %v866, %v982
    %v984 = vpop.f32.mrf.mxu0
    %985 = vmatprep.mubr.f32.mxu0 0.0
    %v986 = vand.u32 %v90, 4294901760
    %987 = vmatmul.mubr.f32.gmra.mxu0 %v986
    %v988 = vpop.f32.mrf.mxu0
    %v989 = vadd.f32 %v872, %v988
    %v990 = vpop.f32.mrf.mxu0
    %991 = vmatprep.mubr.f32.mxu0 0.0
    %v992 = vand.u32 %v91, 4294901760
    %993 = vmatmul.mubr.f32.gmra.mxu0 %v992
    %v994 = vpop.f32.mrf.mxu0
    %v995 = vadd.f32 %v878, %v994
    %v996 = vpop.f32.mrf.mxu0
    %997 = vdwg.mxu0
    %998 = vmatprep.subr.mxu0 0.0
    %v999 = vand.u32 %v85, 4294901760
    %1000 = vmatpush1.msra.mxu0 %v999
    %1001 = vmatprep.subr.mxu0 0.0
    %v1002 = vand.u32 %v84, 4294901760
    %1003 = vmatpush1.msra.mxu0 %v1002
    %1004 = vmatprep.subr.mxu0 0.0
    %v1005 = vand.u32 %v83, 4294901760
    %1006 = vmatpush1.msra.mxu0 %v1005
    %1007 = vmatprep.subr.mxu0 0.0
    %v1008 = vand.u32 %v82, 4294901760
    %1009 = vmatpush1.msra.mxu0 %v1008
    %1010 = vmatprep.subr.mxu0 0.0
    %v1011 = vand.u32 %v81, 4294901760
    %1012 = vmatpush1.msra.mxu0 %v1011
    %1013 = vmatprep.subr.mxu0 0.0
    %v1014 = vand.u32 %v80, 4294901760
    %1015 = vmatpush1.msra.mxu0 %v1014
    %1016 = vmatprep.subr.mxu0 0.0
    %v1017 = vand.u32 %v79, 4294901760
    %1018 = vmatpush1.msra.mxu0 %v1017
    %1019 = vmatprep.subr.mxu0 0.0
    %v1020 = vand.u32 %v78, 4294901760
    %1021 = vmatpush1.msra.mxu0 %v1020
    %1022 = vmatprep.subr.mxu0 0.0
    %v1023 = vand.u32 %v77, 4294901760
    %1024 = vmatpush1.msra.mxu0 %v1023
    %1025 = vmatprep.subr.mxu0 0.0
    %v1026 = vand.u32 %v76, 4294901760
    %1027 = vmatpush1.msra.mxu0 %v1026
    %1028 = vmatprep.subr.mxu0 0.0
    %v1029 = vand.u32 %v75, 4294901760
    %1030 = vmatpush1.msra.mxu0 %v1029
    %1031 = vmatprep.subr.mxu0 0.0
    %v1032 = vand.u32 %v74, 4294901760
    %1033 = vmatpush1.msra.mxu0 %v1032
    %1034 = vmatprep.subr.mxu0 0.0
    %v1035 = vand.u32 %v73, 4294901760
    %1036 = vmatpush1.msra.mxu0 %v1035
    %1037 = vmatprep.subr.mxu0 0.0
    %v1038 = vand.u32 %v72, 4294901760
    %1039 = vmatpush1.msra.mxu0 %v1038
    %1040 = vmatprep.subr.mxu0 0.0
    %v1041 = vand.u32 %v71, 4294901760
    %1042 = vmatpush1.msra.mxu0 %v1041
    %1043 = vmatprep.subr.mxu0 0.0
    %v1044 = vand.u32 %v70, 4294901760
    %1045 = vmatpush1.msra.mxu0 %v1044
    %1046 = vmatprep.subr.mxu0 0.0
    %1047 = vmatpush2.msra.mxu0 0.0
    %1048 = vmatprep.subr.mxu0 0.0
    %1049 = vmatpush2.msra.mxu0 0.0
    %1050 = vmatprep.subr.mxu0 0.0
    %1051 = vmatpush2.msra.mxu0 0.0
    %1052 = vmatprep.subr.mxu0 0.0
    %1053 = vmatpush2.msra.mxu0 0.0
    %1054 = vmatprep.subr.mxu0 0.0
    %1055 = vmatpush2.msra.mxu0 0.0
    %1056 = vmatprep.subr.mxu0 0.0
    %1057 = vmatpush2.msra.mxu0 0.0
    %1058 = vmatprep.subr.mxu0 0.0
    %1059 = vmatpush2.msra.mxu0 0.0
    %1060 = vmatprep.subr.mxu0 0.0
    %1061 = vmatpush2.msra.mxu0 0.0
    %1062 = vmatprep.subr.mxu0 0.0
    %1063 = vmatpush2.msra.mxu0 0.0
    %1064 = vmatprep.subr.mxu0 0.0
    %1065 = vmatpush2.msra.mxu0 0.0
    %1066 = vmatprep.subr.mxu0 0.0
    %1067 = vmatpush2.msra.mxu0 0.0
    %1068 = vmatprep.subr.mxu0 0.0
    %1069 = vmatpush2.msra.mxu0 0.0
    %1070 = vmatprep.subr.mxu0 0.0
    %1071 = vmatpush2.msra.mxu0 0.0
    %1072 = vmatprep.subr.mxu0 0.0
    %1073 = vmatpush2.msra.mxu0 0.0
    %1074 = vmatprep.subr.mxu0 0.0
    %1075 = vmatpush2.msra.mxu0 0.0
    %1076 = vmatprep.subr.mxu0 0.0
    %1077 = vmatpush2.msra.mxu0 0.0
    %1078 = vmatprep.mubr.f32.mxu0 0.0
    %v1079 = vand.u32 %v86, 4294901760
    %v1080 = vsub.f32 %v86, %v1079
    %v1081 = vand.u32 %v1080, 4294901760
    %v1082 = vsub.f32 %v1080, %v1081
    %v1083 = vand.u32 %v1082, 4294901760
    %1084 = vmatmul.mubr.f32.gmra.mxu0 %v1083
    %v1085 = vpop.f32.mrf.mxu0
    %v1086 = vadd.f32 0.0, %v1085
    %v1087 = vpop.f32.mrf.mxu0
    %1088 = vmatprep.mubr.f32.mxu0 0.0
    %v1089 = vand.u32 %v87, 4294901760
    %v1090 = vsub.f32 %v87, %v1089
    %v1091 = vand.u32 %v1090, 4294901760
    %v1092 = vsub.f32 %v1090, %v1091
    %v1093 = vand.u32 %v1092, 4294901760
    %1094 = vmatmul.mubr.f32.gmra.mxu0 %v1093
    %v1095 = vpop.f32.mrf.mxu0
    %v1096 = vadd.f32 0.0, %v1095
    %v1097 = vpop.f32.mrf.mxu0
    %1098 = vmatprep.mubr.f32.mxu0 0.0
    %v1099 = vand.u32 %v88, 4294901760
    %v1100 = vsub.f32 %v88, %v1099
    %v1101 = vand.u32 %v1100, 4294901760
    %v1102 = vsub.f32 %v1100, %v1101
    %v1103 = vand.u32 %v1102, 4294901760
    %1104 = vmatmul.mubr.f32.gmra.mxu0 %v1103
    %v1105 = vpop.f32.mrf.mxu0
    %v1106 = vadd.f32 0.0, %v1105
    %v1107 = vpop.f32.mrf.mxu0
    %1108 = vmatprep.mubr.f32.mxu0 0.0
    %v1109 = vand.u32 %v89, 4294901760
    %v1110 = vsub.f32 %v89, %v1109
    %v1111 = vand.u32 %v1110, 4294901760
    %v1112 = vsub.f32 %v1110, %v1111
    %v1113 = vand.u32 %v1112, 4294901760
    %1114 = vmatmul.mubr.f32.gmra.mxu0 %v1113
    %v1115 = vpop.f32.mrf.mxu0
    %v1116 = vadd.f32 0.0, %v1115
    %v1117 = vpop.f32.mrf.mxu0
    %1118 = vmatprep.mubr.f32.mxu0 0.0
    %v1119 = vand.u32 %v90, 4294901760
    %v1120 = vsub.f32 %v90, %v1119
    %v1121 = vand.u32 %v1120, 4294901760
    %v1122 = vsub.f32 %v1120, %v1121
    %v1123 = vand.u32 %v1122, 4294901760
    %1124 = vmatmul.mubr.f32.gmra.mxu0 %v1123
    %v1125 = vpop.f32.mrf.mxu0
    %v1126 = vadd.f32 0.0, %v1125
    %v1127 = vpop.f32.mrf.mxu0
    %1128 = vmatprep.mubr.f32.mxu0 0.0
    %v1129 = vand.u32 %v91, 4294901760
    %v1130 = vsub.f32 %v91, %v1129
    %v1131 = vand.u32 %v1130, 4294901760
    %v1132 = vsub.f32 %v1130, %v1131
    %v1133 = vand.u32 %v1132, 4294901760
    %1134 = vmatmul.mubr.f32.gmra.mxu0 %v1133
    %v1135 = vpop.f32.mrf.mxu0
    %v1136 = vadd.f32 0.0, %v1135
    %v1137 = vpop.f32.mrf.mxu0
    %1138 = vdwg.mxu0
    %1139 = vmatprep.subr.mxu0 0.0
    %v1140 = vand.u32 %v85, 4294901760
    %v1141 = vsub.f32 %v85, %v1140
    %v1142 = vand.u32 %v1141, 4294901760
    %v1143 = vsub.f32 %v1141, %v1142
    %v1144 = vand.u32 %v1143, 4294901760
    %1145 = vmatpush1.msra.mxu0 %v1144
    %1146 = vmatprep.subr.mxu0 0.0
    %v1147 = vand.u32 %v84, 4294901760
    %v1148 = vsub.f32 %v84, %v1147
    %v1149 = vand.u32 %v1148, 4294901760
    %v1150 = vsub.f32 %v1148, %v1149
    %v1151 = vand.u32 %v1150, 4294901760
    %1152 = vmatpush1.msra.mxu0 %v1151
    %1153 = vmatprep.subr.mxu0 0.0
    %v1154 = vand.u32 %v83, 4294901760
    %v1155 = vsub.f32 %v83, %v1154
    %v1156 = vand.u32 %v1155, 4294901760
    %v1157 = vsub.f32 %v1155, %v1156
    %v1158 = vand.u32 %v1157, 4294901760
    %1159 = vmatpush1.msra.mxu0 %v1158
    %1160 = vmatprep.subr.mxu0 0.0
    %v1161 = vand.u32 %v82, 4294901760
    %v1162 = vsub.f32 %v82, %v1161
    %v1163 = vand.u32 %v1162, 4294901760
    %v1164 = vsub.f32 %v1162, %v1163
    %v1165 = vand.u32 %v1164, 4294901760
    %1166 = vmatpush1.msra.mxu0 %v1165
    %1167 = vmatprep.subr.mxu0 0.0
    %v1168 = vand.u32 %v81, 4294901760
    %v1169 = vsub.f32 %v81, %v1168
    %v1170 = vand.u32 %v1169, 4294901760
    %v1171 = vsub.f32 %v1169, %v1170
    %v1172 = vand.u32 %v1171, 4294901760
    %1173 = vmatpush1.msra.mxu0 %v1172
    %1174 = vmatprep.subr.mxu0 0.0
    %v1175 = vand.u32 %v80, 4294901760
    %v1176 = vsub.f32 %v80, %v1175
    %v1177 = vand.u32 %v1176, 4294901760
    %v1178 = vsub.f32 %v1176, %v1177
    %v1179 = vand.u32 %v1178, 4294901760
    %1180 = vmatpush1.msra.mxu0 %v1179
    %1181 = vmatprep.subr.mxu0 0.0
    %v1182 = vand.u32 %v79, 4294901760
    %v1183 = vsub.f32 %v79, %v1182
    %v1184 = vand.u32 %v1183, 4294901760
    %v1185 = vsub.f32 %v1183, %v1184
    %v1186 = vand.u32 %v1185, 4294901760
    %1187 = vmatpush1.msra.mxu0 %v1186
    %1188 = vmatprep.subr.mxu0 0.0
    %v1189 = vand.u32 %v78, 4294901760
    %v1190 = vsub.f32 %v78, %v1189
    %v1191 = vand.u32 %v1190, 4294901760
    %v1192 = vsub.f32 %v1190, %v1191
    %v1193 = vand.u32 %v1192, 4294901760
    %1194 = vmatpush1.msra.mxu0 %v1193
    %1195 = vmatprep.subr.mxu0 0.0
    %v1196 = vand.u32 %v77, 4294901760
    %v1197 = vsub.f32 %v77, %v1196
    %v1198 = vand.u32 %v1197, 4294901760
    %v1199 = vsub.f32 %v1197, %v1198
    %v1200 = vand.u32 %v1199, 4294901760
    %1201 = vmatpush1.msra.mxu0 %v1200
    %1202 = vmatprep.subr.mxu0 0.0
    %v1203 = vand.u32 %v76, 4294901760
    %v1204 = vsub.f32 %v76, %v1203
    %v1205 = vand.u32 %v1204, 4294901760
    %v1206 = vsub.f32 %v1204, %v1205
    %v1207 = vand.u32 %v1206, 4294901760
    %1208 = vmatpush1.msra.mxu0 %v1207
    %1209 = vmatprep.subr.mxu0 0.0
    %v1210 = vand.u32 %v75, 4294901760
    %v1211 = vsub.f32 %v75, %v1210
    %v1212 = vand.u32 %v1211, 4294901760
    %v1213 = vsub.f32 %v1211, %v1212
    %v1214 = vand.u32 %v1213, 4294901760
    %1215 = vmatpush1.msra.mxu0 %v1214
    %1216 = vmatprep.subr.mxu0 0.0
    %v1217 = vand.u32 %v74, 4294901760
    %v1218 = vsub.f32 %v74, %v1217
    %v1219 = vand.u32 %v1218, 4294901760
    %v1220 = vsub.f32 %v1218, %v1219
    %v1221 = vand.u32 %v1220, 4294901760
    %1222 = vmatpush1.msra.mxu0 %v1221
    %1223 = vmatprep.subr.mxu0 0.0
    %v1224 = vand.u32 %v73, 4294901760
    %v1225 = vsub.f32 %v73, %v1224
    %v1226 = vand.u32 %v1225, 4294901760
    %v1227 = vsub.f32 %v1225, %v1226
    %v1228 = vand.u32 %v1227, 4294901760
    %1229 = vmatpush1.msra.mxu0 %v1228
    %1230 = vmatprep.subr.mxu0 0.0
    %v1231 = vand.u32 %v72, 4294901760
    %v1232 = vsub.f32 %v72, %v1231
    %v1233 = vand.u32 %v1232, 4294901760
    %v1234 = vsub.f32 %v1232, %v1233
    %v1235 = vand.u32 %v1234, 4294901760
    %1236 = vmatpush1.msra.mxu0 %v1235
    %1237 = vmatprep.subr.mxu0 0.0
    %v1238 = vand.u32 %v71, 4294901760
    %v1239 = vsub.f32 %v71, %v1238
    %v1240 = vand.u32 %v1239, 4294901760
    %v1241 = vsub.f32 %v1239, %v1240
    %v1242 = vand.u32 %v1241, 4294901760
    %1243 = vmatpush1.msra.mxu0 %v1242
    %1244 = vmatprep.subr.mxu0 0.0
    %v1245 = vand.u32 %v70, 4294901760
    %v1246 = vsub.f32 %v70, %v1245
    %v1247 = vand.u32 %v1246, 4294901760
    %v1248 = vsub.f32 %v1246, %v1247
    %v1249 = vand.u32 %v1248, 4294901760
    %1250 = vmatpush1.msra.mxu0 %v1249
    %1251 = vmatprep.subr.mxu0 0.0
    %1252 = vmatpush2.msra.mxu0 0.0
    %1253 = vmatprep.subr.mxu0 0.0
    %1254 = vmatpush2.msra.mxu0 0.0
    %1255 = vmatprep.subr.mxu0 0.0
    %1256 = vmatpush2.msra.mxu0 0.0
    %1257 = vmatprep.subr.mxu0 0.0
    %1258 = vmatpush2.msra.mxu0 0.0
    %1259 = vmatprep.subr.mxu0 0.0
    %1260 = vmatpush2.msra.mxu0 0.0
    %1261 = vmatprep.subr.mxu0 0.0
    %1262 = vmatpush2.msra.mxu0 0.0
    %1263 = vmatprep.subr.mxu0 0.0
    %1264 = vmatpush2.msra.mxu0 0.0
    %1265 = vmatprep.subr.mxu0 0.0
    %1266 = vmatpush2.msra.mxu0 0.0
    %1267 = vmatprep.subr.mxu0 0.0
    %1268 = vmatpush2.msra.mxu0 0.0
    %1269 = vmatprep.subr.mxu0 0.0
    %1270 = vmatpush2.msra.mxu0 0.0
    %1271 = vmatprep.subr.mxu0 0.0
    %1272 = vmatpush2.msra.mxu0 0.0
    %1273 = vmatprep.subr.mxu0 0.0
    %1274 = vmatpush2.msra.mxu0 0.0
    %1275 = vmatprep.subr.mxu0 0.0
    %1276 = vmatpush2.msra.mxu0 0.0
    %1277 = vmatprep.subr.mxu0 0.0
    %1278 = vmatpush2.msra.mxu0 0.0
    %1279 = vmatprep.subr.mxu0 0.0
    %1280 = vmatpush2.msra.mxu0 0.0
    %1281 = vmatprep.subr.mxu0 0.0
    %1282 = vmatpush2.msra.mxu0 0.0
    %1283 = vmatprep.mubr.f32.mxu0 0.0
    %v1284 = vand.u32 %v86, 4294901760
    %1285 = vmatmul.mubr.f32.gmra.mxu0 %v1284
    %v1286 = vpop.f32.mrf.mxu0
    %v1287 = vadd.f32 %v1086, %v1286
    %v1288 = vpop.f32.mrf.mxu0
    %1289 = vmatprep.mubr.f32.mxu0 0.0
    %v1290 = vand.u32 %v87, 4294901760
    %1291 = vmatmul.mubr.f32.gmra.mxu0 %v1290
    %v1292 = vpop.f32.mrf.mxu0
    %v1293 = vadd.f32 %v1096, %v1292
    %v1294 = vpop.f32.mrf.mxu0
    %1295 = vmatprep.mubr.f32.mxu0 0.0
    %v1296 = vand.u32 %v88, 4294901760
    %1297 = vmatmul.mubr.f32.gmra.mxu0 %v1296
    %v1298 = vpop.f32.mrf.mxu0
    %v1299 = vadd.f32 %v1106, %v1298
    %v1300 = vpop.f32.mrf.mxu0
    %1301 = vmatprep.mubr.f32.mxu0 0.0
    %v1302 = vand.u32 %v89, 4294901760
    %1303 = vmatmul.mubr.f32.gmra.mxu0 %v1302
    %v1304 = vpop.f32.mrf.mxu0
    %v1305 = vadd.f32 %v1116, %v1304
    %v1306 = vpop.f32.mrf.mxu0
    %1307 = vmatprep.mubr.f32.mxu0 0.0
    %v1308 = vand.u32 %v90, 4294901760
    %1309 = vmatmul.mubr.f32.gmra.mxu0 %v1308
    %v1310 = vpop.f32.mrf.mxu0
    %v1311 = vadd.f32 %v1126, %v1310
    %v1312 = vpop.f32.mrf.mxu0
    %1313 = vmatprep.mubr.f32.mxu0 0.0
    %v1314 = vand.u32 %v91, 4294901760
    %1315 = vmatmul.mubr.f32.gmra.mxu0 %v1314
    %v1316 = vpop.f32.mrf.mxu0
    %v1317 = vadd.f32 %v1136, %v1316
    %v1318 = vpop.f32.mrf.mxu0
    %1319 = vdwg.mxu0
    %1320 = vmatprep.subr.mxu0 0.0
    %v1321 = vand.u32 %v85, 4294901760
    %v1322 = vsub.f32 %v85, %v1321
    %1323 = vmatpush1.msra.mxu0 %v1322
    %1324 = vmatprep.subr.mxu0 0.0
    %v1325 = vand.u32 %v84, 4294901760
    %v1326 = vsub.f32 %v84, %v1325
    %1327 = vmatpush1.msra.mxu0 %v1326
    %1328 = vmatprep.subr.mxu0 0.0
    %v1329 = vand.u32 %v83, 4294901760
    %v1330 = vsub.f32 %v83, %v1329
    %1331 = vmatpush1.msra.mxu0 %v1330
    %1332 = vmatprep.subr.mxu0 0.0
    %v1333 = vand.u32 %v82, 4294901760
    %v1334 = vsub.f32 %v82, %v1333
    %1335 = vmatpush1.msra.mxu0 %v1334
    %1336 = vmatprep.subr.mxu0 0.0
    %v1337 = vand.u32 %v81, 4294901760
    %v1338 = vsub.f32 %v81, %v1337
    %1339 = vmatpush1.msra.mxu0 %v1338
    %1340 = vmatprep.subr.mxu0 0.0
    %v1341 = vand.u32 %v80, 4294901760
    %v1342 = vsub.f32 %v80, %v1341
    %1343 = vmatpush1.msra.mxu0 %v1342
    %1344 = vmatprep.subr.mxu0 0.0
    %v1345 = vand.u32 %v79, 4294901760
    %v1346 = vsub.f32 %v79, %v1345
    %1347 = vmatpush1.msra.mxu0 %v1346
    %1348 = vmatprep.subr.mxu0 0.0
    %v1349 = vand.u32 %v78, 4294901760
    %v1350 = vsub.f32 %v78, %v1349
    %1351 = vmatpush1.msra.mxu0 %v1350
    %1352 = vmatprep.subr.mxu0 0.0
    %v1353 = vand.u32 %v77, 4294901760
    %v1354 = vsub.f32 %v77, %v1353
    %1355 = vmatpush1.msra.mxu0 %v1354
    %1356 = vmatprep.subr.mxu0 0.0
    %v1357 = vand.u32 %v76, 4294901760
    %v1358 = vsub.f32 %v76, %v1357
    %1359 = vmatpush1.msra.mxu0 %v1358
    %1360 = vmatprep.subr.mxu0 0.0
    %v1361 = vand.u32 %v75, 4294901760
    %v1362 = vsub.f32 %v75, %v1361
    %1363 = vmatpush1.msra.mxu0 %v1362
    %1364 = vmatprep.subr.mxu0 0.0
    %v1365 = vand.u32 %v74, 4294901760
    %v1366 = vsub.f32 %v74, %v1365
    %1367 = vmatpush1.msra.mxu0 %v1366
    %1368 = vmatprep.subr.mxu0 0.0
    %v1369 = vand.u32 %v73, 4294901760
    %v1370 = vsub.f32 %v73, %v1369
    %1371 = vmatpush1.msra.mxu0 %v1370
    %1372 = vmatprep.subr.mxu0 0.0
    %v1373 = vand.u32 %v72, 4294901760
    %v1374 = vsub.f32 %v72, %v1373
    %1375 = vmatpush1.msra.mxu0 %v1374
    %1376 = vmatprep.subr.mxu0 0.0
    %v1377 = vand.u32 %v71, 4294901760
    %v1378 = vsub.f32 %v71, %v1377
    %1379 = vmatpush1.msra.mxu0 %v1378
    %1380 = vmatprep.subr.mxu0 0.0
    %v1381 = vand.u32 %v70, 4294901760
    %v1382 = vsub.f32 %v70, %v1381
    %1383 = vmatpush1.msra.mxu0 %v1382
    %1384 = vmatprep.subr.mxu0 0.0
    %1385 = vmatpush2.msra.mxu0 0.0
    %1386 = vmatprep.subr.mxu0 0.0
    %1387 = vmatpush2.msra.mxu0 0.0
    %1388 = vmatprep.subr.mxu0 0.0
    %1389 = vmatpush2.msra.mxu0 0.0
    %1390 = vmatprep.subr.mxu0 0.0
    %1391 = vmatpush2.msra.mxu0 0.0
    %1392 = vmatprep.subr.mxu0 0.0
    %1393 = vmatpush2.msra.mxu0 0.0
    %1394 = vmatprep.subr.mxu0 0.0
    %1395 = vmatpush2.msra.mxu0 0.0
    %1396 = vmatprep.subr.mxu0 0.0
    %1397 = vmatpush2.msra.mxu0 0.0
    %1398 = vmatprep.subr.mxu0 0.0
    %1399 = vmatpush2.msra.mxu0 0.0
    %1400 = vmatprep.subr.mxu0 0.0
    %1401 = vmatpush2.msra.mxu0 0.0
    %1402 = vmatprep.subr.mxu0 0.0
    %1403 = vmatpush2.msra.mxu0 0.0
    %1404 = vmatprep.subr.mxu0 0.0
    %1405 = vmatpush2.msra.mxu0 0.0
    %1406 = vmatprep.subr.mxu0 0.0
    %1407 = vmatpush2.msra.mxu0 0.0
    %1408 = vmatprep.subr.mxu0 0.0
    %1409 = vmatpush2.msra.mxu0 0.0
    %1410 = vmatprep.subr.mxu0 0.0
    %1411 = vmatpush2.msra.mxu0 0.0
    %1412 = vmatprep.subr.mxu0 0.0
    %1413 = vmatpush2.msra.mxu0 0.0
    %1414 = vmatprep.subr.mxu0 0.0
    %1415 = vmatpush2.msra.mxu0 0.0
    %1416 = vmatprep.mubr.f32.mxu0 0.0
    %v1417 = vand.u32 %v86, 4294901760
    %v1418 = vsub.f32 %v86, %v1417
    %1419 = vmatmul.mubr.f32.gmra.mxu0 %v1418
    %v1420 = vpop.f32.mrf.mxu0
    %v1421 = vadd.f32 %v1287, %v1420
    %v1422 = vpop.f32.mrf.mxu0
    %1423 = vmatprep.mubr.f32.mxu0 0.0
    %v1424 = vand.u32 %v87, 4294901760
    %v1425 = vsub.f32 %v87, %v1424
    %1426 = vmatmul.mubr.f32.gmra.mxu0 %v1425
    %v1427 = vpop.f32.mrf.mxu0
    %v1428 = vadd.f32 %v1293, %v1427
    %v1429 = vpop.f32.mrf.mxu0
    %1430 = vmatprep.mubr.f32.mxu0 0.0
    %v1431 = vand.u32 %v88, 4294901760
    %v1432 = vsub.f32 %v88, %v1431
    %1433 = vmatmul.mubr.f32.gmra.mxu0 %v1432
    %v1434 = vpop.f32.mrf.mxu0
    %v1435 = vadd.f32 %v1299, %v1434
    %v1436 = vpop.f32.mrf.mxu0
    %1437 = vmatprep.mubr.f32.mxu0 0.0
    %v1438 = vand.u32 %v89, 4294901760
    %v1439 = vsub.f32 %v89, %v1438
    %1440 = vmatmul.mubr.f32.gmra.mxu0 %v1439
    %v1441 = vpop.f32.mrf.mxu0
    %v1442 = vadd.f32 %v1305, %v1441
    %v1443 = vpop.f32.mrf.mxu0
    %1444 = vmatprep.mubr.f32.mxu0 0.0
    %v1445 = vand.u32 %v90, 4294901760
    %v1446 = vsub.f32 %v90, %v1445
    %1447 = vmatmul.mubr.f32.gmra.mxu0 %v1446
    %v1448 = vpop.f32.mrf.mxu0
    %v1449 = vadd.f32 %v1311, %v1448
    %v1450 = vpop.f32.mrf.mxu0
    %1451 = vmatprep.mubr.f32.mxu0 0.0
    %v1452 = vand.u32 %v91, 4294901760
    %v1453 = vsub.f32 %v91, %v1452
    %1454 = vmatmul.mubr.f32.gmra.mxu0 %v1453
    %v1455 = vpop.f32.mrf.mxu0
    %v1456 = vadd.f32 %v1317, %v1455
    %v1457 = vpop.f32.mrf.mxu0
    %1458 = vdwg.mxu0
    %1459 = vmatprep.subr.mxu0 0.0
    %v1460 = vand.u32 %v85, 4294901760
    %1461 = vmatpush1.msra.mxu0 %v1460
    %1462 = vmatprep.subr.mxu0 0.0
    %v1463 = vand.u32 %v84, 4294901760
    %1464 = vmatpush1.msra.mxu0 %v1463
    %1465 = vmatprep.subr.mxu0 0.0
    %v1466 = vand.u32 %v83, 4294901760
    %1467 = vmatpush1.msra.mxu0 %v1466
    %1468 = vmatprep.subr.mxu0 0.0
    %v1469 = vand.u32 %v82, 4294901760
    %1470 = vmatpush1.msra.mxu0 %v1469
    %1471 = vmatprep.subr.mxu0 0.0
    %v1472 = vand.u32 %v81, 4294901760
    %1473 = vmatpush1.msra.mxu0 %v1472
    %1474 = vmatprep.subr.mxu0 0.0
    %v1475 = vand.u32 %v80, 4294901760
    %1476 = vmatpush1.msra.mxu0 %v1475
    %1477 = vmatprep.subr.mxu0 0.0
    %v1478 = vand.u32 %v79, 4294901760
    %1479 = vmatpush1.msra.mxu0 %v1478
    %1480 = vmatprep.subr.mxu0 0.0
    %v1481 = vand.u32 %v78, 4294901760
    %1482 = vmatpush1.msra.mxu0 %v1481
    %1483 = vmatprep.subr.mxu0 0.0
    %v1484 = vand.u32 %v77, 4294901760
    %1485 = vmatpush1.msra.mxu0 %v1484
    %1486 = vmatprep.subr.mxu0 0.0
    %v1487 = vand.u32 %v76, 4294901760
    %1488 = vmatpush1.msra.mxu0 %v1487
    %1489 = vmatprep.subr.mxu0 0.0
    %v1490 = vand.u32 %v75, 4294901760
    %1491 = vmatpush1.msra.mxu0 %v1490
    %1492 = vmatprep.subr.mxu0 0.0
    %v1493 = vand.u32 %v74, 4294901760
    %1494 = vmatpush1.msra.mxu0 %v1493
    %1495 = vmatprep.subr.mxu0 0.0
    %v1496 = vand.u32 %v73, 4294901760
    %1497 = vmatpush1.msra.mxu0 %v1496
    %1498 = vmatprep.subr.mxu0 0.0
    %v1499 = vand.u32 %v72, 4294901760
    %1500 = vmatpush1.msra.mxu0 %v1499
    %1501 = vmatprep.subr.mxu0 0.0
    %v1502 = vand.u32 %v71, 4294901760
    %1503 = vmatpush1.msra.mxu0 %v1502
    %1504 = vmatprep.subr.mxu0 0.0
    %v1505 = vand.u32 %v70, 4294901760
    %1506 = vmatpush1.msra.mxu0 %v1505
    %1507 = vmatprep.subr.mxu0 0.0
    %1508 = vmatpush2.msra.mxu0 0.0
    %1509 = vmatprep.subr.mxu0 0.0
    %1510 = vmatpush2.msra.mxu0 0.0
    %1511 = vmatprep.subr.mxu0 0.0
    %1512 = vmatpush2.msra.mxu0 0.0
    %1513 = vmatprep.subr.mxu0 0.0
    %1514 = vmatpush2.msra.mxu0 0.0
    %1515 = vmatprep.subr.mxu0 0.0
    %1516 = vmatpush2.msra.mxu0 0.0
    %1517 = vmatprep.subr.mxu0 0.0
    %1518 = vmatpush2.msra.mxu0 0.0
    %1519 = vmatprep.subr.mxu0 0.0
    %1520 = vmatpush2.msra.mxu0 0.0
    %1521 = vmatprep.subr.mxu0 0.0
    %1522 = vmatpush2.msra.mxu0 0.0
    %1523 = vmatprep.subr.mxu0 0.0
    %1524 = vmatpush2.msra.mxu0 0.0
    %1525 = vmatprep.subr.mxu0 0.0
    %1526 = vmatpush2.msra.mxu0 0.0
    %1527 = vmatprep.subr.mxu0 0.0
    %1528 = vmatpush2.msra.mxu0 0.0
    %1529 = vmatprep.subr.mxu0 0.0
    %1530 = vmatpush2.msra.mxu0 0.0
    %1531 = vmatprep.subr.mxu0 0.0
    %1532 = vmatpush2.msra.mxu0 0.0
    %1533 = vmatprep.subr.mxu0 0.0
    %1534 = vmatpush2.msra.mxu0 0.0
    %1535 = vmatprep.subr.mxu0 0.0
    %1536 = vmatpush2.msra.mxu0 0.0
    %1537 = vmatprep.subr.mxu0 0.0
    %1538 = vmatpush2.msra.mxu0 0.0
    %1539 = vmatprep.mubr.f32.mxu0 0.0
    %v1540 = vand.u32 %v86, 4294901760
    %v1541 = vsub.f32 %v86, %v1540
    %v1542 = vand.u32 %v1541, 4294901760
    %1543 = vmatmul.mubr.f32.gmra.mxu0 %v1542
    %v1544 = vpop.f32.mrf.mxu0
    %v1545 = vadd.f32 %v1421, %v1544
    %v1546 = vpop.f32.mrf.mxu0
    %1547 = vmatprep.mubr.f32.mxu0 0.0
    %v1548 = vand.u32 %v87, 4294901760
    %v1549 = vsub.f32 %v87, %v1548
    %v1550 = vand.u32 %v1549, 4294901760
    %1551 = vmatmul.mubr.f32.gmra.mxu0 %v1550
    %v1552 = vpop.f32.mrf.mxu0
    %v1553 = vadd.f32 %v1428, %v1552
    %v1554 = vpop.f32.mrf.mxu0
    %1555 = vmatprep.mubr.f32.mxu0 0.0
    %v1556 = vand.u32 %v88, 4294901760
    %v1557 = vsub.f32 %v88, %v1556
    %v1558 = vand.u32 %v1557, 4294901760
    %1559 = vmatmul.mubr.f32.gmra.mxu0 %v1558
    %v1560 = vpop.f32.mrf.mxu0
    %v1561 = vadd.f32 %v1435, %v1560
    %v1562 = vpop.f32.mrf.mxu0
    %1563 = vmatprep.mubr.f32.mxu0 0.0
    %v1564 = vand.u32 %v89, 4294901760
    %v1565 = vsub.f32 %v89, %v1564
    %v1566 = vand.u32 %v1565, 4294901760
    %1567 = vmatmul.mubr.f32.gmra.mxu0 %v1566
    %v1568 = vpop.f32.mrf.mxu0
    %v1569 = vadd.f32 %v1442, %v1568
    %v1570 = vpop.f32.mrf.mxu0
    %1571 = vmatprep.mubr.f32.mxu0 0.0
    %v1572 = vand.u32 %v90, 4294901760
    %v1573 = vsub.f32 %v90, %v1572
    %v1574 = vand.u32 %v1573, 4294901760
    %1575 = vmatmul.mubr.f32.gmra.mxu0 %v1574
    %v1576 = vpop.f32.mrf.mxu0
    %v1577 = vadd.f32 %v1449, %v1576
    %v1578 = vpop.f32.mrf.mxu0
    %1579 = vmatprep.mubr.f32.mxu0 0.0
    %v1580 = vand.u32 %v91, 4294901760
    %v1581 = vsub.f32 %v91, %v1580
    %v1582 = vand.u32 %v1581, 4294901760
    %1583 = vmatmul.mubr.f32.gmra.mxu0 %v1582
    %v1584 = vpop.f32.mrf.mxu0
    %v1585 = vadd.f32 %v1456, %v1584
    %v1586 = vpop.f32.mrf.mxu0
    %1587 = vdwg.mxu0
    %1588 = vmatprep.subr.mxu0 0.0
    %v1589 = vand.u32 %v85, 4294901760
    %v1590 = vsub.f32 %v85, %v1589
    %v1591 = vand.u32 %v1590, 4294901760
    %1592 = vmatpush1.msra.mxu0 %v1591
    %1593 = vmatprep.subr.mxu0 0.0
    %v1594 = vand.u32 %v84, 4294901760
    %v1595 = vsub.f32 %v84, %v1594
    %v1596 = vand.u32 %v1595, 4294901760
    %1597 = vmatpush1.msra.mxu0 %v1596
    %1598 = vmatprep.subr.mxu0 0.0
    %v1599 = vand.u32 %v83, 4294901760
    %v1600 = vsub.f32 %v83, %v1599
    %v1601 = vand.u32 %v1600, 4294901760
    %1602 = vmatpush1.msra.mxu0 %v1601
    %1603 = vmatprep.subr.mxu0 0.0
    %v1604 = vand.u32 %v82, 4294901760
    %v1605 = vsub.f32 %v82, %v1604
    %v1606 = vand.u32 %v1605, 4294901760
    %1607 = vmatpush1.msra.mxu0 %v1606
    %1608 = vmatprep.subr.mxu0 0.0
    %v1609 = vand.u32 %v81, 4294901760
    %v1610 = vsub.f32 %v81, %v1609
    %v1611 = vand.u32 %v1610, 4294901760
    %1612 = vmatpush1.msra.mxu0 %v1611
    %1613 = vmatprep.subr.mxu0 0.0
    %v1614 = vand.u32 %v80, 4294901760
    %v1615 = vsub.f32 %v80, %v1614
    %v1616 = vand.u32 %v1615, 4294901760
    %1617 = vmatpush1.msra.mxu0 %v1616
    %1618 = vmatprep.subr.mxu0 0.0
    %v1619 = vand.u32 %v79, 4294901760
    %v1620 = vsub.f32 %v79, %v1619
    %v1621 = vand.u32 %v1620, 4294901760
    %1622 = vmatpush1.msra.mxu0 %v1621
    %1623 = vmatprep.subr.mxu0 0.0
    %v1624 = vand.u32 %v78, 4294901760
    %v1625 = vsub.f32 %v78, %v1624
    %v1626 = vand.u32 %v1625, 4294901760
    %1627 = vmatpush1.msra.mxu0 %v1626
    %1628 = vmatprep.subr.mxu0 0.0
    %v1629 = vand.u32 %v77, 4294901760
    %v1630 = vsub.f32 %v77, %v1629
    %v1631 = vand.u32 %v1630, 4294901760
    %1632 = vmatpush1.msra.mxu0 %v1631
    %1633 = vmatprep.subr.mxu0 0.0
    %v1634 = vand.u32 %v76, 4294901760
    %v1635 = vsub.f32 %v76, %v1634
    %v1636 = vand.u32 %v1635, 4294901760
    %1637 = vmatpush1.msra.mxu0 %v1636
    %1638 = vmatprep.subr.mxu0 0.0
    %v1639 = vand.u32 %v75, 4294901760
    %v1640 = vsub.f32 %v75, %v1639
    %v1641 = vand.u32 %v1640, 4294901760
    %1642 = vmatpush1.msra.mxu0 %v1641
    %1643 = vmatprep.subr.mxu0 0.0
    %v1644 = vand.u32 %v74, 4294901760
    %v1645 = vsub.f32 %v74, %v1644
    %v1646 = vand.u32 %v1645, 4294901760
    %1647 = vmatpush1.msra.mxu0 %v1646
    %1648 = vmatprep.subr.mxu0 0.0
    %v1649 = vand.u32 %v73, 4294901760
    %v1650 = vsub.f32 %v73, %v1649
    %v1651 = vand.u32 %v1650, 4294901760
    %1652 = vmatpush1.msra.mxu0 %v1651
    %1653 = vmatprep.subr.mxu0 0.0
    %v1654 = vand.u32 %v72, 4294901760
    %v1655 = vsub.f32 %v72, %v1654
    %v1656 = vand.u32 %v1655, 4294901760
    %1657 = vmatpush1.msra.mxu0 %v1656
    %1658 = vmatprep.subr.mxu0 0.0
    %v1659 = vand.u32 %v71, 4294901760
    %v1660 = vsub.f32 %v71, %v1659
    %v1661 = vand.u32 %v1660, 4294901760
    %1662 = vmatpush1.msra.mxu0 %v1661
    %1663 = vmatprep.subr.mxu0 0.0
    %v1664 = vand.u32 %v70, 4294901760
    %v1665 = vsub.f32 %v70, %v1664
    %v1666 = vand.u32 %v1665, 4294901760
    %1667 = vmatpush1.msra.mxu0 %v1666
    %1668 = vmatprep.subr.mxu0 0.0
    %1669 = vmatpush2.msra.mxu0 0.0
    %1670 = vmatprep.subr.mxu0 0.0
    %1671 = vmatpush2.msra.mxu0 0.0
    %1672 = vmatprep.subr.mxu0 0.0
    %1673 = vmatpush2.msra.mxu0 0.0
    %1674 = vmatprep.subr.mxu0 0.0
    %1675 = vmatpush2.msra.mxu0 0.0
    %1676 = vmatprep.subr.mxu0 0.0
    %1677 = vmatpush2.msra.mxu0 0.0
    %1678 = vmatprep.subr.mxu0 0.0
    %1679 = vmatpush2.msra.mxu0 0.0
    %1680 = vmatprep.subr.mxu0 0.0
    %1681 = vmatpush2.msra.mxu0 0.0
    %1682 = vmatprep.subr.mxu0 0.0
    %1683 = vmatpush2.msra.mxu0 0.0
    %1684 = vmatprep.subr.mxu0 0.0
    %1685 = vmatpush2.msra.mxu0 0.0
    %1686 = vmatprep.subr.mxu0 0.0
    %1687 = vmatpush2.msra.mxu0 0.0
    %1688 = vmatprep.subr.mxu0 0.0
    %1689 = vmatpush2.msra.mxu0 0.0
    %1690 = vmatprep.subr.mxu0 0.0
    %1691 = vmatpush2.msra.mxu0 0.0
    %1692 = vmatprep.subr.mxu0 0.0
    %1693 = vmatpush2.msra.mxu0 0.0
    %1694 = vmatprep.subr.mxu0 0.0
    %1695 = vmatpush2.msra.mxu0 0.0
    %1696 = vmatprep.subr.mxu0 0.0
    %1697 = vmatpush2.msra.mxu0 0.0
    %1698 = vmatprep.subr.mxu0 0.0
    %1699 = vmatpush2.msra.mxu0 0.0
    %1700 = vmatprep.mubr.f32.mxu0 0.0
    %v1701 = vand.u32 %v86, 4294901760
    %1702 = vmatmul.mubr.f32.gmra.mxu0 %v1701
    %v1703 = vpop.f32.mrf.mxu0
    %v1704 = vadd.f32 %v1545, %v1703
    %v1705 = vpop.f32.mrf.mxu0
    %1706 = vmatprep.mubr.f32.mxu0 0.0
    %v1707 = vand.u32 %v87, 4294901760
    %1708 = vmatmul.mubr.f32.gmra.mxu0 %v1707
    %v1709 = vpop.f32.mrf.mxu0
    %v1710 = vadd.f32 %v1553, %v1709
    %v1711 = vpop.f32.mrf.mxu0
    %1712 = vmatprep.mubr.f32.mxu0 0.0
    %v1713 = vand.u32 %v88, 4294901760
    %1714 = vmatmul.mubr.f32.gmra.mxu0 %v1713
    %v1715 = vpop.f32.mrf.mxu0
    %v1716 = vadd.f32 %v1561, %v1715
    %v1717 = vpop.f32.mrf.mxu0
    %1718 = vmatprep.mubr.f32.mxu0 0.0
    %v1719 = vand.u32 %v89, 4294901760
    %1720 = vmatmul.mubr.f32.gmra.mxu0 %v1719
    %v1721 = vpop.f32.mrf.mxu0
    %v1722 = vadd.f32 %v1569, %v1721
    %v1723 = vpop.f32.mrf.mxu0
    %1724 = vmatprep.mubr.f32.mxu0 0.0
    %v1725 = vand.u32 %v90, 4294901760
    %1726 = vmatmul.mubr.f32.gmra.mxu0 %v1725
    %v1727 = vpop.f32.mrf.mxu0
    %v1728 = vadd.f32 %v1577, %v1727
    %v1729 = vpop.f32.mrf.mxu0
    %1730 = vmatprep.mubr.f32.mxu0 0.0
    %v1731 = vand.u32 %v91, 4294901760
    %1732 = vmatmul.mubr.f32.gmra.mxu0 %v1731
    %v1733 = vpop.f32.mrf.mxu0
    %v1734 = vadd.f32 %v1585, %v1733
    %v1735 = vpop.f32.mrf.mxu0
    %1736 = vdwg.mxu0
    %1737 = vmatprep.subr.mxu0 0.0
    %v1738 = vand.u32 %v85, 4294901760
    %1739 = vmatpush1.msra.mxu0 %v1738
    %1740 = vmatprep.subr.mxu0 0.0
    %v1741 = vand.u32 %v84, 4294901760
    %1742 = vmatpush1.msra.mxu0 %v1741
    %1743 = vmatprep.subr.mxu0 0.0
    %v1744 = vand.u32 %v83, 4294901760
    %1745 = vmatpush1.msra.mxu0 %v1744
    %1746 = vmatprep.subr.mxu0 0.0
    %v1747 = vand.u32 %v82, 4294901760
    %1748 = vmatpush1.msra.mxu0 %v1747
    %1749 = vmatprep.subr.mxu0 0.0
    %v1750 = vand.u32 %v81, 4294901760
    %1751 = vmatpush1.msra.mxu0 %v1750
    %1752 = vmatprep.subr.mxu0 0.0
    %v1753 = vand.u32 %v80, 4294901760
    %1754 = vmatpush1.msra.mxu0 %v1753
    %1755 = vmatprep.subr.mxu0 0.0
    %v1756 = vand.u32 %v79, 4294901760
    %1757 = vmatpush1.msra.mxu0 %v1756
    %1758 = vmatprep.subr.mxu0 0.0
    %v1759 = vand.u32 %v78, 4294901760
    %1760 = vmatpush1.msra.mxu0 %v1759
    %1761 = vmatprep.subr.mxu0 0.0
    %v1762 = vand.u32 %v77, 4294901760
    %1763 = vmatpush1.msra.mxu0 %v1762
    %1764 = vmatprep.subr.mxu0 0.0
    %v1765 = vand.u32 %v76, 4294901760
    %1766 = vmatpush1.msra.mxu0 %v1765
    %1767 = vmatprep.subr.mxu0 0.0
    %v1768 = vand.u32 %v75, 4294901760
    %1769 = vmatpush1.msra.mxu0 %v1768
    %1770 = vmatprep.subr.mxu0 0.0
    %v1771 = vand.u32 %v74, 4294901760
    %1772 = vmatpush1.msra.mxu0 %v1771
    %1773 = vmatprep.subr.mxu0 0.0
    %v1774 = vand.u32 %v73, 4294901760
    %1775 = vmatpush1.msra.mxu0 %v1774
    %1776 = vmatprep.subr.mxu0 0.0
    %v1777 = vand.u32 %v72, 4294901760
    %1778 = vmatpush1.msra.mxu0 %v1777
    %1779 = vmatprep.subr.mxu0 0.0
    %v1780 = vand.u32 %v71, 4294901760
    %1781 = vmatpush1.msra.mxu0 %v1780
    %1782 = vmatprep.subr.mxu0 0.0
    %v1783 = vand.u32 %v70, 4294901760
    %1784 = vmatpush1.msra.mxu0 %v1783
    %1785 = vmatprep.subr.mxu0 0.0
    %1786 = vmatpush2.msra.mxu0 0.0
    %1787 = vmatprep.subr.mxu0 0.0
    %1788 = vmatpush2.msra.mxu0 0.0
    %1789 = vmatprep.subr.mxu0 0.0
    %1790 = vmatpush2.msra.mxu0 0.0
    %1791 = vmatprep.subr.mxu0 0.0
    %1792 = vmatpush2.msra.mxu0 0.0
    %1793 = vmatprep.subr.mxu0 0.0
    %1794 = vmatpush2.msra.mxu0 0.0
    %1795 = vmatprep.subr.mxu0 0.0
    %1796 = vmatpush2.msra.mxu0 0.0
    %1797 = vmatprep.subr.mxu0 0.0
    %1798 = vmatpush2.msra.mxu0 0.0
    %1799 = vmatprep.subr.mxu0 0.0
    %1800 = vmatpush2.msra.mxu0 0.0
    %1801 = vmatprep.subr.mxu0 0.0
    %1802 = vmatpush2.msra.mxu0 0.0
    %1803 = vmatprep.subr.mxu0 0.0
    %1804 = vmatpush2.msra.mxu0 0.0
    %1805 = vmatprep.subr.mxu0 0.0
    %1806 = vmatpush2.msra.mxu0 0.0
    %1807 = vmatprep.subr.mxu0 0.0
    %1808 = vmatpush2.msra.mxu0 0.0
    %1809 = vmatprep.subr.mxu0 0.0
    %1810 = vmatpush2.msra.mxu0 0.0
    %1811 = vmatprep.subr.mxu0 0.0
    %1812 = vmatpush2.msra.mxu0 0.0
    %1813 = vmatprep.subr.mxu0 0.0
    %1814 = vmatpush2.msra.mxu0 0.0
    %1815 = vmatprep.subr.mxu0 0.0
    %1816 = vmatpush2.msra.mxu0 0.0
    %1817 = vmatprep.mubr.f32.mxu0 0.0
    %v1818 = vand.u32 %v86, 4294901760
    %1819 = vmatmul.mubr.f32.gmra.mxu0 %v1818
    %v1820 = vpop.f32.mrf.mxu0
    %v1821 = vadd.f32 %v1704, %v1820
    %v1822 = vpop.f32.mrf.mxu0
    %1823 = vmatprep.mubr.f32.mxu0 0.0
    %v1824 = vand.u32 %v87, 4294901760
    %1825 = vmatmul.mubr.f32.gmra.mxu0 %v1824
    %v1826 = vpop.f32.mrf.mxu0
    %v1827 = vadd.f32 %v1710, %v1826
    %v1828 = vpop.f32.mrf.mxu0
    %1829 = vmatprep.mubr.f32.mxu0 0.0
    %v1830 = vand.u32 %v88, 4294901760
    %1831 = vmatmul.mubr.f32.gmra.mxu0 %v1830
    %v1832 = vpop.f32.mrf.mxu0
    %v1833 = vadd.f32 %v1716, %v1832
    %v1834 = vpop.f32.mrf.mxu0
    %1835 = vmatprep.mubr.f32.mxu0 0.0
    %v1836 = vand.u32 %v89, 4294901760
    %1837 = vmatmul.mubr.f32.gmra.mxu0 %v1836
    %v1838 = vpop.f32.mrf.mxu0
    %v1839 = vadd.f32 %v1722, %v1838
    %v1840 = vpop.f32.mrf.mxu0
    %1841 = vmatprep.mubr.f32.mxu0 0.0
    %v1842 = vand.u32 %v90, 4294901760
    %1843 = vmatmul.mubr.f32.gmra.mxu0 %v1842
    %v1844 = vpop.f32.mrf.mxu0
    %v1845 = vadd.f32 %v1728, %v1844
    %v1846 = vpop.f32.mrf.mxu0
    %1847 = vmatprep.mubr.f32.mxu0 0.0
    %v1848 = vand.u32 %v91, 4294901760
    %1849 = vmatmul.mubr.f32.gmra.mxu0 %v1848
    %v1850 = vpop.f32.mrf.mxu0
    %v1851 = vadd.f32 %v1734, %v1850
    %v1852 = vpop.f32.mrf.mxu0
    %1853 = vdwg.mxu0
    %1854 = vmatprep.subr.mxu0 0.0
    %v1855 = vand.u32 %v109, 4294901760
    %1856 = vmatpush1.msra.mxu0 %v1855
    %1857 = vmatprep.subr.mxu0 0.0
    %v1858 = vand.u32 %v108, 4294901760
    %1859 = vmatpush1.msra.mxu0 %v1858
    %1860 = vmatprep.subr.mxu0 0.0
    %v1861 = vand.u32 %v107, 4294901760
    %1862 = vmatpush1.msra.mxu0 %v1861
    %1863 = vmatprep.subr.mxu0 0.0
    %v1864 = vand.u32 %v106, 4294901760
    %1865 = vmatpush1.msra.mxu0 %v1864
    %1866 = vmatprep.subr.mxu0 0.0
    %v1867 = vand.u32 %v105, 4294901760
    %1868 = vmatpush1.msra.mxu0 %v1867
    %1869 = vmatprep.subr.mxu0 0.0
    %v1870 = vand.u32 %v104, 4294901760
    %1871 = vmatpush1.msra.mxu0 %v1870
    %1872 = vmatprep.subr.mxu0 0.0
    %v1873 = vand.u32 %v103, 4294901760
    %1874 = vmatpush1.msra.mxu0 %v1873
    %1875 = vmatprep.subr.mxu0 0.0
    %v1876 = vand.u32 %v102, 4294901760
    %1877 = vmatpush1.msra.mxu0 %v1876
    %1878 = vmatprep.subr.mxu0 0.0
    %v1879 = vand.u32 %v101, 4294901760
    %1880 = vmatpush1.msra.mxu0 %v1879
    %1881 = vmatprep.subr.mxu0 0.0
    %v1882 = vand.u32 %v100, 4294901760
    %1883 = vmatpush1.msra.mxu0 %v1882
    %1884 = vmatprep.subr.mxu0 0.0
    %v1885 = vand.u32 %v99, 4294901760
    %1886 = vmatpush1.msra.mxu0 %v1885
    %1887 = vmatprep.subr.mxu0 0.0
    %v1888 = vand.u32 %v98, 4294901760
    %1889 = vmatpush1.msra.mxu0 %v1888
    %1890 = vmatprep.subr.mxu0 0.0
    %v1891 = vand.u32 %v97, 4294901760
    %1892 = vmatpush1.msra.mxu0 %v1891
    %1893 = vmatprep.subr.mxu0 0.0
    %v1894 = vand.u32 %v96, 4294901760
    %1895 = vmatpush1.msra.mxu0 %v1894
    %1896 = vmatprep.subr.mxu0 0.0
    %v1897 = vand.u32 %v95, 4294901760
    %1898 = vmatpush1.msra.mxu0 %v1897
    %1899 = vmatprep.subr.mxu0 0.0
    %v1900 = vand.u32 %v94, 4294901760
    %1901 = vmatpush1.msra.mxu0 %v1900
    %1902 = vmatprep.subr.mxu0 0.0
    %1903 = vmatpush2.msra.mxu0 0.0
    %1904 = vmatprep.subr.mxu0 0.0
    %1905 = vmatpush2.msra.mxu0 0.0
    %1906 = vmatprep.subr.mxu0 0.0
    %1907 = vmatpush2.msra.mxu0 0.0
    %1908 = vmatprep.subr.mxu0 0.0
    %1909 = vmatpush2.msra.mxu0 0.0
    %1910 = vmatprep.subr.mxu0 0.0
    %1911 = vmatpush2.msra.mxu0 0.0
    %1912 = vmatprep.subr.mxu0 0.0
    %1913 = vmatpush2.msra.mxu0 0.0
    %1914 = vmatprep.subr.mxu0 0.0
    %1915 = vmatpush2.msra.mxu0 0.0
    %1916 = vmatprep.subr.mxu0 0.0
    %1917 = vmatpush2.msra.mxu0 0.0
    %1918 = vmatprep.subr.mxu0 0.0
    %1919 = vmatpush2.msra.mxu0 0.0
    %1920 = vmatprep.subr.mxu0 0.0
    %1921 = vmatpush2.msra.mxu0 0.0
    %1922 = vmatprep.subr.mxu0 0.0
    %1923 = vmatpush2.msra.mxu0 0.0
    %1924 = vmatprep.subr.mxu0 0.0
    %1925 = vmatpush2.msra.mxu0 0.0
    %1926 = vmatprep.subr.mxu0 0.0
    %1927 = vmatpush2.msra.mxu0 0.0
    %1928 = vmatprep.subr.mxu0 0.0
    %1929 = vmatpush2.msra.mxu0 0.0
    %1930 = vmatprep.subr.mxu0 0.0
    %1931 = vmatpush2.msra.mxu0 0.0
    %1932 = vmatprep.subr.mxu0 0.0
    %1933 = vmatpush2.msra.mxu0 0.0
    %1934 = vmatprep.mubr.f32.mxu0 0.0
    %v1935 = vand.u32 %v86, 4294901760
    %v1936 = vsub.f32 %v86, %v1935
    %v1937 = vand.u32 %v1936, 4294901760
    %v1938 = vsub.f32 %v1936, %v1937
    %v1939 = vand.u32 %v1938, 4294901760
    %1940 = vmatmul.mubr.f32.gmra.mxu0 %v1939
    %v1941 = vpop.f32.mrf.mxu0
    %v1942 = vadd.f32 0.0, %v1941
    %v1943 = vpop.f32.mrf.mxu0
    %1944 = vmatprep.mubr.f32.mxu0 0.0
    %v1945 = vand.u32 %v87, 4294901760
    %v1946 = vsub.f32 %v87, %v1945
    %v1947 = vand.u32 %v1946, 4294901760
    %v1948 = vsub.f32 %v1946, %v1947
    %v1949 = vand.u32 %v1948, 4294901760
    %1950 = vmatmul.mubr.f32.gmra.mxu0 %v1949
    %v1951 = vpop.f32.mrf.mxu0
    %v1952 = vadd.f32 0.0, %v1951
    %v1953 = vpop.f32.mrf.mxu0
    %1954 = vmatprep.mubr.f32.mxu0 0.0
    %v1955 = vand.u32 %v88, 4294901760
    %v1956 = vsub.f32 %v88, %v1955
    %v1957 = vand.u32 %v1956, 4294901760
    %v1958 = vsub.f32 %v1956, %v1957
    %v1959 = vand.u32 %v1958, 4294901760
    %1960 = vmatmul.mubr.f32.gmra.mxu0 %v1959
    %v1961 = vpop.f32.mrf.mxu0
    %v1962 = vadd.f32 0.0, %v1961
    %v1963 = vpop.f32.mrf.mxu0
    %1964 = vmatprep.mubr.f32.mxu0 0.0
    %v1965 = vand.u32 %v89, 4294901760
    %v1966 = vsub.f32 %v89, %v1965
    %v1967 = vand.u32 %v1966, 4294901760
    %v1968 = vsub.f32 %v1966, %v1967
    %v1969 = vand.u32 %v1968, 4294901760
    %1970 = vmatmul.mubr.f32.gmra.mxu0 %v1969
    %v1971 = vpop.f32.mrf.mxu0
    %v1972 = vadd.f32 0.0, %v1971
    %v1973 = vpop.f32.mrf.mxu0
    %1974 = vmatprep.mubr.f32.mxu0 0.0
    %v1975 = vand.u32 %v90, 4294901760
    %v1976 = vsub.f32 %v90, %v1975
    %v1977 = vand.u32 %v1976, 4294901760
    %v1978 = vsub.f32 %v1976, %v1977
    %v1979 = vand.u32 %v1978, 4294901760
    %1980 = vmatmul.mubr.f32.gmra.mxu0 %v1979
    %v1981 = vpop.f32.mrf.mxu0
    %v1982 = vadd.f32 0.0, %v1981
    %v1983 = vpop.f32.mrf.mxu0
    %1984 = vmatprep.mubr.f32.mxu0 0.0
    %v1985 = vand.u32 %v91, 4294901760
    %v1986 = vsub.f32 %v91, %v1985
    %v1987 = vand.u32 %v1986, 4294901760
    %v1988 = vsub.f32 %v1986, %v1987
    %v1989 = vand.u32 %v1988, 4294901760
    %1990 = vmatmul.mubr.f32.gmra.mxu0 %v1989
    %v1991 = vpop.f32.mrf.mxu0
    %v1992 = vadd.f32 0.0, %v1991
    %v1993 = vpop.f32.mrf.mxu0
    %1994 = vdwg.mxu0
    %1995 = vmatprep.subr.mxu0 0.0
    %v1996 = vand.u32 %v109, 4294901760
    %v1997 = vsub.f32 %v109, %v1996
    %v1998 = vand.u32 %v1997, 4294901760
    %v1999 = vsub.f32 %v1997, %v1998
    %v2000 = vand.u32 %v1999, 4294901760
    %2001 = vmatpush1.msra.mxu0 %v2000
    %2002 = vmatprep.subr.mxu0 0.0
    %v2003 = vand.u32 %v108, 4294901760
    %v2004 = vsub.f32 %v108, %v2003
    %v2005 = vand.u32 %v2004, 4294901760
    %v2006 = vsub.f32 %v2004, %v2005
    %v2007 = vand.u32 %v2006, 4294901760
    %2008 = vmatpush1.msra.mxu0 %v2007
    %2009 = vmatprep.subr.mxu0 0.0
    %v2010 = vand.u32 %v107, 4294901760
    %v2011 = vsub.f32 %v107, %v2010
    %v2012 = vand.u32 %v2011, 4294901760
    %v2013 = vsub.f32 %v2011, %v2012
    %v2014 = vand.u32 %v2013, 4294901760
    %2015 = vmatpush1.msra.mxu0 %v2014
    %2016 = vmatprep.subr.mxu0 0.0
    %v2017 = vand.u32 %v106, 4294901760
    %v2018 = vsub.f32 %v106, %v2017
    %v2019 = vand.u32 %v2018, 4294901760
    %v2020 = vsub.f32 %v2018, %v2019
    %v2021 = vand.u32 %v2020, 4294901760
    %2022 = vmatpush1.msra.mxu0 %v2021
    %2023 = vmatprep.subr.mxu0 0.0
    %v2024 = vand.u32 %v105, 4294901760
    %v2025 = vsub.f32 %v105, %v2024
    %v2026 = vand.u32 %v2025, 4294901760
    %v2027 = vsub.f32 %v2025, %v2026
    %v2028 = vand.u32 %v2027, 4294901760
    %2029 = vmatpush1.msra.mxu0 %v2028
    %2030 = vmatprep.subr.mxu0 0.0
    %v2031 = vand.u32 %v104, 4294901760
    %v2032 = vsub.f32 %v104, %v2031
    %v2033 = vand.u32 %v2032, 4294901760
    %v2034 = vsub.f32 %v2032, %v2033
    %v2035 = vand.u32 %v2034, 4294901760
    %2036 = vmatpush1.msra.mxu0 %v2035
    %2037 = vmatprep.subr.mxu0 0.0
    %v2038 = vand.u32 %v103, 4294901760
    %v2039 = vsub.f32 %v103, %v2038
    %v2040 = vand.u32 %v2039, 4294901760
    %v2041 = vsub.f32 %v2039, %v2040
    %v2042 = vand.u32 %v2041, 4294901760
    %2043 = vmatpush1.msra.mxu0 %v2042
    %2044 = vmatprep.subr.mxu0 0.0
    %v2045 = vand.u32 %v102, 4294901760
    %v2046 = vsub.f32 %v102, %v2045
    %v2047 = vand.u32 %v2046, 4294901760
    %v2048 = vsub.f32 %v2046, %v2047
    %v2049 = vand.u32 %v2048, 4294901760
    %2050 = vmatpush1.msra.mxu0 %v2049
    %2051 = vmatprep.subr.mxu0 0.0
    %v2052 = vand.u32 %v101, 4294901760
    %v2053 = vsub.f32 %v101, %v2052
    %v2054 = vand.u32 %v2053, 4294901760
    %v2055 = vsub.f32 %v2053, %v2054
    %v2056 = vand.u32 %v2055, 4294901760
    %2057 = vmatpush1.msra.mxu0 %v2056
    %2058 = vmatprep.subr.mxu0 0.0
    %v2059 = vand.u32 %v100, 4294901760
    %v2060 = vsub.f32 %v100, %v2059
    %v2061 = vand.u32 %v2060, 4294901760
    %v2062 = vsub.f32 %v2060, %v2061
    %v2063 = vand.u32 %v2062, 4294901760
    %2064 = vmatpush1.msra.mxu0 %v2063
    %2065 = vmatprep.subr.mxu0 0.0
    %v2066 = vand.u32 %v99, 4294901760
    %v2067 = vsub.f32 %v99, %v2066
    %v2068 = vand.u32 %v2067, 4294901760
    %v2069 = vsub.f32 %v2067, %v2068
    %v2070 = vand.u32 %v2069, 4294901760
    %2071 = vmatpush1.msra.mxu0 %v2070
    %2072 = vmatprep.subr.mxu0 0.0
    %v2073 = vand.u32 %v98, 4294901760
    %v2074 = vsub.f32 %v98, %v2073
    %v2075 = vand.u32 %v2074, 4294901760
    %v2076 = vsub.f32 %v2074, %v2075
    %v2077 = vand.u32 %v2076, 4294901760
    %2078 = vmatpush1.msra.mxu0 %v2077
    %2079 = vmatprep.subr.mxu0 0.0
    %v2080 = vand.u32 %v97, 4294901760
    %v2081 = vsub.f32 %v97, %v2080
    %v2082 = vand.u32 %v2081, 4294901760
    %v2083 = vsub.f32 %v2081, %v2082
    %v2084 = vand.u32 %v2083, 4294901760
    %2085 = vmatpush1.msra.mxu0 %v2084
    %2086 = vmatprep.subr.mxu0 0.0
    %v2087 = vand.u32 %v96, 4294901760
    %v2088 = vsub.f32 %v96, %v2087
    %v2089 = vand.u32 %v2088, 4294901760
    %v2090 = vsub.f32 %v2088, %v2089
    %v2091 = vand.u32 %v2090, 4294901760
    %2092 = vmatpush1.msra.mxu0 %v2091
    %2093 = vmatprep.subr.mxu0 0.0
    %v2094 = vand.u32 %v95, 4294901760
    %v2095 = vsub.f32 %v95, %v2094
    %v2096 = vand.u32 %v2095, 4294901760
    %v2097 = vsub.f32 %v2095, %v2096
    %v2098 = vand.u32 %v2097, 4294901760
    %2099 = vmatpush1.msra.mxu0 %v2098
    %2100 = vmatprep.subr.mxu0 0.0
    %v2101 = vand.u32 %v94, 4294901760
    %v2102 = vsub.f32 %v94, %v2101
    %v2103 = vand.u32 %v2102, 4294901760
    %v2104 = vsub.f32 %v2102, %v2103
    %v2105 = vand.u32 %v2104, 4294901760
    %2106 = vmatpush1.msra.mxu0 %v2105
    %2107 = vmatprep.subr.mxu0 0.0
    %2108 = vmatpush2.msra.mxu0 0.0
    %2109 = vmatprep.subr.mxu0 0.0
    %2110 = vmatpush2.msra.mxu0 0.0
    %2111 = vmatprep.subr.mxu0 0.0
    %2112 = vmatpush2.msra.mxu0 0.0
    %2113 = vmatprep.subr.mxu0 0.0
    %2114 = vmatpush2.msra.mxu0 0.0
    %2115 = vmatprep.subr.mxu0 0.0
    %2116 = vmatpush2.msra.mxu0 0.0
    %2117 = vmatprep.subr.mxu0 0.0
    %2118 = vmatpush2.msra.mxu0 0.0
    %2119 = vmatprep.subr.mxu0 0.0
    %2120 = vmatpush2.msra.mxu0 0.0
    %2121 = vmatprep.subr.mxu0 0.0
    %2122 = vmatpush2.msra.mxu0 0.0
    %2123 = vmatprep.subr.mxu0 0.0
    %2124 = vmatpush2.msra.mxu0 0.0
    %2125 = vmatprep.subr.mxu0 0.0
    %2126 = vmatpush2.msra.mxu0 0.0
    %2127 = vmatprep.subr.mxu0 0.0
    %2128 = vmatpush2.msra.mxu0 0.0
    %2129 = vmatprep.subr.mxu0 0.0
    %2130 = vmatpush2.msra.mxu0 0.0
    %2131 = vmatprep.subr.mxu0 0.0
    %2132 = vmatpush2.msra.mxu0 0.0
    %2133 = vmatprep.subr.mxu0 0.0
    %2134 = vmatpush2.msra.mxu0 0.0
    %2135 = vmatprep.subr.mxu0 0.0
    %2136 = vmatpush2.msra.mxu0 0.0
    %2137 = vmatprep.subr.mxu0 0.0
    %2138 = vmatpush2.msra.mxu0 0.0
    %2139 = vmatprep.mubr.f32.mxu0 0.0
    %v2140 = vand.u32 %v86, 4294901760
    %2141 = vmatmul.mubr.f32.gmra.mxu0 %v2140
    %v2142 = vpop.f32.mrf.mxu0
    %v2143 = vadd.f32 %v1942, %v2142
    %v2144 = vpop.f32.mrf.mxu0
    %2145 = vmatprep.mubr.f32.mxu0 0.0
    %v2146 = vand.u32 %v87, 4294901760
    %2147 = vmatmul.mubr.f32.gmra.mxu0 %v2146
    %v2148 = vpop.f32.mrf.mxu0
    %v2149 = vadd.f32 %v1952, %v2148
    %v2150 = vpop.f32.mrf.mxu0
    %2151 = vmatprep.mubr.f32.mxu0 0.0
    %v2152 = vand.u32 %v88, 4294901760
    %2153 = vmatmul.mubr.f32.gmra.mxu0 %v2152
    %v2154 = vpop.f32.mrf.mxu0
    %v2155 = vadd.f32 %v1962, %v2154
    %v2156 = vpop.f32.mrf.mxu0
    %2157 = vmatprep.mubr.f32.mxu0 0.0
    %v2158 = vand.u32 %v89, 4294901760
    %2159 = vmatmul.mubr.f32.gmra.mxu0 %v2158
    %v2160 = vpop.f32.mrf.mxu0
    %v2161 = vadd.f32 %v1972, %v2160
    %v2162 = vpop.f32.mrf.mxu0
    %2163 = vmatprep.mubr.f32.mxu0 0.0
    %v2164 = vand.u32 %v90, 4294901760
    %2165 = vmatmul.mubr.f32.gmra.mxu0 %v2164
    %v2166 = vpop.f32.mrf.mxu0
    %v2167 = vadd.f32 %v1982, %v2166
    %v2168 = vpop.f32.mrf.mxu0
    %2169 = vmatprep.mubr.f32.mxu0 0.0
    %v2170 = vand.u32 %v91, 4294901760
    %2171 = vmatmul.mubr.f32.gmra.mxu0 %v2170
    %v2172 = vpop.f32.mrf.mxu0
    %v2173 = vadd.f32 %v1992, %v2172
    %v2174 = vpop.f32.mrf.mxu0
    %2175 = vdwg.mxu0
    %2176 = vmatprep.subr.mxu0 0.0
    %v2177 = vand.u32 %v109, 4294901760
    %v2178 = vsub.f32 %v109, %v2177
    %2179 = vmatpush1.msra.mxu0 %v2178
    %2180 = vmatprep.subr.mxu0 0.0
    %v2181 = vand.u32 %v108, 4294901760
    %v2182 = vsub.f32 %v108, %v2181
    %2183 = vmatpush1.msra.mxu0 %v2182
    %2184 = vmatprep.subr.mxu0 0.0
    %v2185 = vand.u32 %v107, 4294901760
    %v2186 = vsub.f32 %v107, %v2185
    %2187 = vmatpush1.msra.mxu0 %v2186
    %2188 = vmatprep.subr.mxu0 0.0
    %v2189 = vand.u32 %v106, 4294901760
    %v2190 = vsub.f32 %v106, %v2189
    %2191 = vmatpush1.msra.mxu0 %v2190
    %2192 = vmatprep.subr.mxu0 0.0
    %v2193 = vand.u32 %v105, 4294901760
    %v2194 = vsub.f32 %v105, %v2193
    %2195 = vmatpush1.msra.mxu0 %v2194
    %2196 = vmatprep.subr.mxu0 0.0
    %v2197 = vand.u32 %v104, 4294901760
    %v2198 = vsub.f32 %v104, %v2197
    %2199 = vmatpush1.msra.mxu0 %v2198
    %2200 = vmatprep.subr.mxu0 0.0
    %v2201 = vand.u32 %v103, 4294901760
    %v2202 = vsub.f32 %v103, %v2201
    %2203 = vmatpush1.msra.mxu0 %v2202
    %2204 = vmatprep.subr.mxu0 0.0
    %v2205 = vand.u32 %v102, 4294901760
    %v2206 = vsub.f32 %v102, %v2205
    %2207 = vmatpush1.msra.mxu0 %v2206
    %2208 = vmatprep.subr.mxu0 0.0
    %v2209 = vand.u32 %v101, 4294901760
    %v2210 = vsub.f32 %v101, %v2209
    %2211 = vmatpush1.msra.mxu0 %v2210
    %2212 = vmatprep.subr.mxu0 0.0
    %v2213 = vand.u32 %v100, 4294901760
    %v2214 = vsub.f32 %v100, %v2213
    %2215 = vmatpush1.msra.mxu0 %v2214
    %2216 = vmatprep.subr.mxu0 0.0
    %v2217 = vand.u32 %v99, 4294901760
    %v2218 = vsub.f32 %v99, %v2217
    %2219 = vmatpush1.msra.mxu0 %v2218
    %2220 = vmatprep.subr.mxu0 0.0
    %v2221 = vand.u32 %v98, 4294901760
    %v2222 = vsub.f32 %v98, %v2221
    %2223 = vmatpush1.msra.mxu0 %v2222
    %2224 = vmatprep.subr.mxu0 0.0
    %v2225 = vand.u32 %v97, 4294901760
    %v2226 = vsub.f32 %v97, %v2225
    %2227 = vmatpush1.msra.mxu0 %v2226
    %2228 = vmatprep.subr.mxu0 0.0
    %v2229 = vand.u32 %v96, 4294901760
    %v2230 = vsub.f32 %v96, %v2229
    %2231 = vmatpush1.msra.mxu0 %v2230
    %2232 = vmatprep.subr.mxu0 0.0
    %v2233 = vand.u32 %v95, 4294901760
    %v2234 = vsub.f32 %v95, %v2233
    %2235 = vmatpush1.msra.mxu0 %v2234
    %2236 = vmatprep.subr.mxu0 0.0
    %v2237 = vand.u32 %v94, 4294901760
    %v2238 = vsub.f32 %v94, %v2237
    %2239 = vmatpush1.msra.mxu0 %v2238
    %2240 = vmatprep.subr.mxu0 0.0
    %2241 = vmatpush2.msra.mxu0 0.0
    %2242 = vmatprep.subr.mxu0 0.0
    %2243 = vmatpush2.msra.mxu0 0.0
    %2244 = vmatprep.subr.mxu0 0.0
    %2245 = vmatpush2.msra.mxu0 0.0
    %2246 = vmatprep.subr.mxu0 0.0
    %2247 = vmatpush2.msra.mxu0 0.0
    %2248 = vmatprep.subr.mxu0 0.0
    %2249 = vmatpush2.msra.mxu0 0.0
    %2250 = vmatprep.subr.mxu0 0.0
    %2251 = vmatpush2.msra.mxu0 0.0
    %2252 = vmatprep.subr.mxu0 0.0
    %2253 = vmatpush2.msra.mxu0 0.0
    %2254 = vmatprep.subr.mxu0 0.0
    %2255 = vmatpush2.msra.mxu0 0.0
    %2256 = vmatprep.subr.mxu0 0.0
    %2257 = vmatpush2.msra.mxu0 0.0
    %2258 = vmatprep.subr.mxu0 0.0
    %2259 = vmatpush2.msra.mxu0 0.0
    %2260 = vmatprep.subr.mxu0 0.0
    %2261 = vmatpush2.msra.mxu0 0.0
    %2262 = vmatprep.subr.mxu0 0.0
    %2263 = vmatpush2.msra.mxu0 0.0
    %2264 = vmatprep.subr.mxu0 0.0
    %2265 = vmatpush2.msra.mxu0 0.0
    %2266 = vmatprep.subr.mxu0 0.0
    %2267 = vmatpush2.msra.mxu0 0.0
    %2268 = vmatprep.subr.mxu0 0.0
    %2269 = vmatpush2.msra.mxu0 0.0
    %2270 = vmatprep.subr.mxu0 0.0
    %2271 = vmatpush2.msra.mxu0 0.0
    %2272 = vmatprep.mubr.f32.mxu0 0.0
    %v2273 = vand.u32 %v86, 4294901760
    %v2274 = vsub.f32 %v86, %v2273
    %2275 = vmatmul.mubr.f32.gmra.mxu0 %v2274
    %v2276 = vpop.f32.mrf.mxu0
    %v2277 = vadd.f32 %v2143, %v2276
    %v2278 = vpop.f32.mrf.mxu0
    %2279 = vmatprep.mubr.f32.mxu0 0.0
    %v2280 = vand.u32 %v87, 4294901760
    %v2281 = vsub.f32 %v87, %v2280
    %2282 = vmatmul.mubr.f32.gmra.mxu0 %v2281
    %v2283 = vpop.f32.mrf.mxu0
    %v2284 = vadd.f32 %v2149, %v2283
    %v2285 = vpop.f32.mrf.mxu0
    %2286 = vmatprep.mubr.f32.mxu0 0.0
    %v2287 = vand.u32 %v88, 4294901760
    %v2288 = vsub.f32 %v88, %v2287
    %2289 = vmatmul.mubr.f32.gmra.mxu0 %v2288
    %v2290 = vpop.f32.mrf.mxu0
    %v2291 = vadd.f32 %v2155, %v2290
    %v2292 = vpop.f32.mrf.mxu0
    %2293 = vmatprep.mubr.f32.mxu0 0.0
    %v2294 = vand.u32 %v89, 4294901760
    %v2295 = vsub.f32 %v89, %v2294
    %2296 = vmatmul.mubr.f32.gmra.mxu0 %v2295
    %v2297 = vpop.f32.mrf.mxu0
    %v2298 = vadd.f32 %v2161, %v2297
    %v2299 = vpop.f32.mrf.mxu0
    %2300 = vmatprep.mubr.f32.mxu0 0.0
    %v2301 = vand.u32 %v90, 4294901760
    %v2302 = vsub.f32 %v90, %v2301
    %2303 = vmatmul.mubr.f32.gmra.mxu0 %v2302
    %v2304 = vpop.f32.mrf.mxu0
    %v2305 = vadd.f32 %v2167, %v2304
    %v2306 = vpop.f32.mrf.mxu0
    %2307 = vmatprep.mubr.f32.mxu0 0.0
    %v2308 = vand.u32 %v91, 4294901760
    %v2309 = vsub.f32 %v91, %v2308
    %2310 = vmatmul.mubr.f32.gmra.mxu0 %v2309
    %v2311 = vpop.f32.mrf.mxu0
    %v2312 = vadd.f32 %v2173, %v2311
    %v2313 = vpop.f32.mrf.mxu0
    %2314 = vdwg.mxu0
    %2315 = vmatprep.subr.mxu0 0.0
    %v2316 = vand.u32 %v109, 4294901760
    %2317 = vmatpush1.msra.mxu0 %v2316
    %2318 = vmatprep.subr.mxu0 0.0
    %v2319 = vand.u32 %v108, 4294901760
    %2320 = vmatpush1.msra.mxu0 %v2319
    %2321 = vmatprep.subr.mxu0 0.0
    %v2322 = vand.u32 %v107, 4294901760
    %2323 = vmatpush1.msra.mxu0 %v2322
    %2324 = vmatprep.subr.mxu0 0.0
    %v2325 = vand.u32 %v106, 4294901760
    %2326 = vmatpush1.msra.mxu0 %v2325
    %2327 = vmatprep.subr.mxu0 0.0
    %v2328 = vand.u32 %v105, 4294901760
    %2329 = vmatpush1.msra.mxu0 %v2328
    %2330 = vmatprep.subr.mxu0 0.0
    %v2331 = vand.u32 %v104, 4294901760
    %2332 = vmatpush1.msra.mxu0 %v2331
    %2333 = vmatprep.subr.mxu0 0.0
    %v2334 = vand.u32 %v103, 4294901760
    %2335 = vmatpush1.msra.mxu0 %v2334
    %2336 = vmatprep.subr.mxu0 0.0
    %v2337 = vand.u32 %v102, 4294901760
    %2338 = vmatpush1.msra.mxu0 %v2337
    %2339 = vmatprep.subr.mxu0 0.0
    %v2340 = vand.u32 %v101, 4294901760
    %2341 = vmatpush1.msra.mxu0 %v2340
    %2342 = vmatprep.subr.mxu0 0.0
    %v2343 = vand.u32 %v100, 4294901760
    %2344 = vmatpush1.msra.mxu0 %v2343
    %2345 = vmatprep.subr.mxu0 0.0
    %v2346 = vand.u32 %v99, 4294901760
    %2347 = vmatpush1.msra.mxu0 %v2346
    %2348 = vmatprep.subr.mxu0 0.0
    %v2349 = vand.u32 %v98, 4294901760
    %2350 = vmatpush1.msra.mxu0 %v2349
    %2351 = vmatprep.subr.mxu0 0.0
    %v2352 = vand.u32 %v97, 4294901760
    %2353 = vmatpush1.msra.mxu0 %v2352
    %2354 = vmatprep.subr.mxu0 0.0
    %v2355 = vand.u32 %v96, 4294901760
    %2356 = vmatpush1.msra.mxu0 %v2355
    %2357 = vmatprep.subr.mxu0 0.0
    %v2358 = vand.u32 %v95, 4294901760
    %2359 = vmatpush1.msra.mxu0 %v2358
    %2360 = vmatprep.subr.mxu0 0.0
    %v2361 = vand.u32 %v94, 4294901760
    %2362 = vmatpush1.msra.mxu0 %v2361
    %2363 = vmatprep.subr.mxu0 0.0
    %2364 = vmatpush2.msra.mxu0 0.0
    %2365 = vmatprep.subr.mxu0 0.0
    %2366 = vmatpush2.msra.mxu0 0.0
    %2367 = vmatprep.subr.mxu0 0.0
    %2368 = vmatpush2.msra.mxu0 0.0
    %2369 = vmatprep.subr.mxu0 0.0
    %2370 = vmatpush2.msra.mxu0 0.0
    %2371 = vmatprep.subr.mxu0 0.0
    %2372 = vmatpush2.msra.mxu0 0.0
    %2373 = vmatprep.subr.mxu0 0.0
    %2374 = vmatpush2.msra.mxu0 0.0
    %2375 = vmatprep.subr.mxu0 0.0
    %2376 = vmatpush2.msra.mxu0 0.0
    %2377 = vmatprep.subr.mxu0 0.0
    %2378 = vmatpush2.msra.mxu0 0.0
    %2379 = vmatprep.subr.mxu0 0.0
    %2380 = vmatpush2.msra.mxu0 0.0
    %2381 = vmatprep.subr.mxu0 0.0
    %2382 = vmatpush2.msra.mxu0 0.0
    %2383 = vmatprep.subr.mxu0 0.0
    %2384 = vmatpush2.msra.mxu0 0.0
    %2385 = vmatprep.subr.mxu0 0.0
    %2386 = vmatpush2.msra.mxu0 0.0
    %2387 = vmatprep.subr.mxu0 0.0
    %2388 = vmatpush2.msra.mxu0 0.0
    %2389 = vmatprep.subr.mxu0 0.0
    %2390 = vmatpush2.msra.mxu0 0.0
    %2391 = vmatprep.subr.mxu0 0.0
    %2392 = vmatpush2.msra.mxu0 0.0
    %2393 = vmatprep.subr.mxu0 0.0
    %2394 = vmatpush2.msra.mxu0 0.0
    %2395 = vmatprep.mubr.f32.mxu0 0.0
    %v2396 = vand.u32 %v86, 4294901760
    %v2397 = vsub.f32 %v86, %v2396
    %v2398 = vand.u32 %v2397, 4294901760
    %2399 = vmatmul.mubr.f32.gmra.mxu0 %v2398
    %v2400 = vpop.f32.mrf.mxu0
    %v2401 = vadd.f32 %v2277, %v2400
    %v2402 = vpop.f32.mrf.mxu0
    %2403 = vmatprep.mubr.f32.mxu0 0.0
    %v2404 = vand.u32 %v87, 4294901760
    %v2405 = vsub.f32 %v87, %v2404
    %v2406 = vand.u32 %v2405, 4294901760
    %2407 = vmatmul.mubr.f32.gmra.mxu0 %v2406
    %v2408 = vpop.f32.mrf.mxu0
    %v2409 = vadd.f32 %v2284, %v2408
    %v2410 = vpop.f32.mrf.mxu0
    %2411 = vmatprep.mubr.f32.mxu0 0.0
    %v2412 = vand.u32 %v88, 4294901760
    %v2413 = vsub.f32 %v88, %v2412
    %v2414 = vand.u32 %v2413, 4294901760
    %2415 = vmatmul.mubr.f32.gmra.mxu0 %v2414
    %v2416 = vpop.f32.mrf.mxu0
    %v2417 = vadd.f32 %v2291, %v2416
    %v2418 = vpop.f32.mrf.mxu0
    %2419 = vmatprep.mubr.f32.mxu0 0.0
    %v2420 = vand.u32 %v89, 4294901760
    %v2421 = vsub.f32 %v89, %v2420
    %v2422 = vand.u32 %v2421, 4294901760
    %2423 = vmatmul.mubr.f32.gmra.mxu0 %v2422
    %v2424 = vpop.f32.mrf.mxu0
    %v2425 = vadd.f32 %v2298, %v2424
    %v2426 = vpop.f32.mrf.mxu0
    %2427 = vmatprep.mubr.f32.mxu0 0.0
    %v2428 = vand.u32 %v90, 4294901760
    %v2429 = vsub.f32 %v90, %v2428
    %v2430 = vand.u32 %v2429, 4294901760
    %2431 = vmatmul.mubr.f32.gmra.mxu0 %v2430
    %v2432 = vpop.f32.mrf.mxu0
    %v2433 = vadd.f32 %v2305, %v2432
    %v2434 = vpop.f32.mrf.mxu0
    %2435 = vmatprep.mubr.f32.mxu0 0.0
    %v2436 = vand.u32 %v91, 4294901760
    %v2437 = vsub.f32 %v91, %v2436
    %v2438 = vand.u32 %v2437, 4294901760
    %2439 = vmatmul.mubr.f32.gmra.mxu0 %v2438
    %v2440 = vpop.f32.mrf.mxu0
    %v2441 = vadd.f32 %v2312, %v2440
    %v2442 = vpop.f32.mrf.mxu0
    %2443 = vdwg.mxu0
    %2444 = vmatprep.subr.mxu0 0.0
    %v2445 = vand.u32 %v109, 4294901760
    %v2446 = vsub.f32 %v109, %v2445
    %v2447 = vand.u32 %v2446, 4294901760
    %2448 = vmatpush1.msra.mxu0 %v2447
    %2449 = vmatprep.subr.mxu0 0.0
    %v2450 = vand.u32 %v108, 4294901760
    %v2451 = vsub.f32 %v108, %v2450
    %v2452 = vand.u32 %v2451, 4294901760
    %2453 = vmatpush1.msra.mxu0 %v2452
    %2454 = vmatprep.subr.mxu0 0.0
    %v2455 = vand.u32 %v107, 4294901760
    %v2456 = vsub.f32 %v107, %v2455
    %v2457 = vand.u32 %v2456, 4294901760
    %2458 = vmatpush1.msra.mxu0 %v2457
    %2459 = vmatprep.subr.mxu0 0.0
    %v2460 = vand.u32 %v106, 4294901760
    %v2461 = vsub.f32 %v106, %v2460
    %v2462 = vand.u32 %v2461, 4294901760
    %2463 = vmatpush1.msra.mxu0 %v2462
    %2464 = vmatprep.subr.mxu0 0.0
    %v2465 = vand.u32 %v105, 4294901760
    %v2466 = vsub.f32 %v105, %v2465
    %v2467 = vand.u32 %v2466, 4294901760
    %2468 = vmatpush1.msra.mxu0 %v2467
    %2469 = vmatprep.subr.mxu0 0.0
    %v2470 = vand.u32 %v104, 4294901760
    %v2471 = vsub.f32 %v104, %v2470
    %v2472 = vand.u32 %v2471, 4294901760
    %2473 = vmatpush1.msra.mxu0 %v2472
    %2474 = vmatprep.subr.mxu0 0.0
    %v2475 = vand.u32 %v103, 4294901760
    %v2476 = vsub.f32 %v103, %v2475
    %v2477 = vand.u32 %v2476, 4294901760
    %2478 = vmatpush1.msra.mxu0 %v2477
    %2479 = vmatprep.subr.mxu0 0.0
    %v2480 = vand.u32 %v102, 4294901760
    %v2481 = vsub.f32 %v102, %v2480
    %v2482 = vand.u32 %v2481, 4294901760
    %2483 = vmatpush1.msra.mxu0 %v2482
    %2484 = vmatprep.subr.mxu0 0.0
    %v2485 = vand.u32 %v101, 4294901760
    %v2486 = vsub.f32 %v101, %v2485
    %v2487 = vand.u32 %v2486, 4294901760
    %2488 = vmatpush1.msra.mxu0 %v2487
    %2489 = vmatprep.subr.mxu0 0.0
    %v2490 = vand.u32 %v100, 4294901760
    %v2491 = vsub.f32 %v100, %v2490
    %v2492 = vand.u32 %v2491, 4294901760
    %2493 = vmatpush1.msra.mxu0 %v2492
    %2494 = vmatprep.subr.mxu0 0.0
    %v2495 = vand.u32 %v99, 4294901760
    %v2496 = vsub.f32 %v99, %v2495
    %v2497 = vand.u32 %v2496, 4294901760
    %2498 = vmatpush1.msra.mxu0 %v2497
    %2499 = vmatprep.subr.mxu0 0.0
    %v2500 = vand.u32 %v98, 4294901760
    %v2501 = vsub.f32 %v98, %v2500
    %v2502 = vand.u32 %v2501, 4294901760
    %2503 = vmatpush1.msra.mxu0 %v2502
    %2504 = vmatprep.subr.mxu0 0.0
    %v2505 = vand.u32 %v97, 4294901760
    %v2506 = vsub.f32 %v97, %v2505
    %v2507 = vand.u32 %v2506, 4294901760
    %2508 = vmatpush1.msra.mxu0 %v2507
    %2509 = vmatprep.subr.mxu0 0.0
    %v2510 = vand.u32 %v96, 4294901760
    %v2511 = vsub.f32 %v96, %v2510
    %v2512 = vand.u32 %v2511, 4294901760
    %2513 = vmatpush1.msra.mxu0 %v2512
    %2514 = vmatprep.subr.mxu0 0.0
    %v2515 = vand.u32 %v95, 4294901760
    %v2516 = vsub.f32 %v95, %v2515
    %v2517 = vand.u32 %v2516, 4294901760
    %2518 = vmatpush1.msra.mxu0 %v2517
    %2519 = vmatprep.subr.mxu0 0.0
    %v2520 = vand.u32 %v94, 4294901760
    %v2521 = vsub.f32 %v94, %v2520
    %v2522 = vand.u32 %v2521, 4294901760
    %2523 = vmatpush1.msra.mxu0 %v2522
    %2524 = vmatprep.subr.mxu0 0.0
    %2525 = vmatpush2.msra.mxu0 0.0
    %2526 = vmatprep.subr.mxu0 0.0
    %2527 = vmatpush2.msra.mxu0 0.0
    %2528 = vmatprep.subr.mxu0 0.0
    %2529 = vmatpush2.msra.mxu0 0.0
    %2530 = vmatprep.subr.mxu0 0.0
    %2531 = vmatpush2.msra.mxu0 0.0
    %2532 = vmatprep.subr.mxu0 0.0
    %2533 = vmatpush2.msra.mxu0 0.0
    %2534 = vmatprep.subr.mxu0 0.0
    %2535 = vmatpush2.msra.mxu0 0.0
    %2536 = vmatprep.subr.mxu0 0.0
    %2537 = vmatpush2.msra.mxu0 0.0
    %2538 = vmatprep.subr.mxu0 0.0
    %2539 = vmatpush2.msra.mxu0 0.0
    %2540 = vmatprep.subr.mxu0 0.0
    %2541 = vmatpush2.msra.mxu0 0.0
    %2542 = vmatprep.subr.mxu0 0.0
    %2543 = vmatpush2.msra.mxu0 0.0
    %2544 = vmatprep.subr.mxu0 0.0
    %2545 = vmatpush2.msra.mxu0 0.0
    %2546 = vmatprep.subr.mxu0 0.0
    %2547 = vmatpush2.msra.mxu0 0.0
    %2548 = vmatprep.subr.mxu0 0.0
    %2549 = vmatpush2.msra.mxu0 0.0
    %2550 = vmatprep.subr.mxu0 0.0
    %2551 = vmatpush2.msra.mxu0 0.0
    %2552 = vmatprep.subr.mxu0 0.0
    %2553 = vmatpush2.msra.mxu0 0.0
    %2554 = vmatprep.subr.mxu0 0.0
    %2555 = vmatpush2.msra.mxu0 0.0
    %2556 = vmatprep.mubr.f32.mxu0 0.0
    %v2557 = vand.u32 %v86, 4294901760
    %2558 = vmatmul.mubr.f32.gmra.mxu0 %v2557
    %v2559 = vpop.f32.mrf.mxu0
    %v2560 = vadd.f32 %v2401, %v2559
    %v2561 = vpop.f32.mrf.mxu0
    %2562 = vmatprep.mubr.f32.mxu0 0.0
    %v2563 = vand.u32 %v87, 4294901760
    %2564 = vmatmul.mubr.f32.gmra.mxu0 %v2563
    %v2565 = vpop.f32.mrf.mxu0
    %v2566 = vadd.f32 %v2409, %v2565
    %v2567 = vpop.f32.mrf.mxu0
    %2568 = vmatprep.mubr.f32.mxu0 0.0
    %v2569 = vand.u32 %v88, 4294901760
    %2570 = vmatmul.mubr.f32.gmra.mxu0 %v2569
    %v2571 = vpop.f32.mrf.mxu0
    %v2572 = vadd.f32 %v2417, %v2571
    %v2573 = vpop.f32.mrf.mxu0
    %2574 = vmatprep.mubr.f32.mxu0 0.0
    %v2575 = vand.u32 %v89, 4294901760
    %2576 = vmatmul.mubr.f32.gmra.mxu0 %v2575
    %v2577 = vpop.f32.mrf.mxu0
    %v2578 = vadd.f32 %v2425, %v2577
    %v2579 = vpop.f32.mrf.mxu0
    %2580 = vmatprep.mubr.f32.mxu0 0.0
    %v2581 = vand.u32 %v90, 4294901760
    %2582 = vmatmul.mubr.f32.gmra.mxu0 %v2581
    %v2583 = vpop.f32.mrf.mxu0
    %v2584 = vadd.f32 %v2433, %v2583
    %v2585 = vpop.f32.mrf.mxu0
    %2586 = vmatprep.mubr.f32.mxu0 0.0
    %v2587 = vand.u32 %v91, 4294901760
    %2588 = vmatmul.mubr.f32.gmra.mxu0 %v2587
    %v2589 = vpop.f32.mrf.mxu0
    %v2590 = vadd.f32 %v2441, %v2589
    %v2591 = vpop.f32.mrf.mxu0
    %2592 = vdwg.mxu0
    %2593 = vmatprep.subr.mxu0 0.0
    %v2594 = vand.u32 %v109, 4294901760
    %2595 = vmatpush1.msra.mxu0 %v2594
    %2596 = vmatprep.subr.mxu0 0.0
    %v2597 = vand.u32 %v108, 4294901760
    %2598 = vmatpush1.msra.mxu0 %v2597
    %2599 = vmatprep.subr.mxu0 0.0
    %v2600 = vand.u32 %v107, 4294901760
    %2601 = vmatpush1.msra.mxu0 %v2600
    %2602 = vmatprep.subr.mxu0 0.0
    %v2603 = vand.u32 %v106, 4294901760
    %2604 = vmatpush1.msra.mxu0 %v2603
    %2605 = vmatprep.subr.mxu0 0.0
    %v2606 = vand.u32 %v105, 4294901760
    %2607 = vmatpush1.msra.mxu0 %v2606
    %2608 = vmatprep.subr.mxu0 0.0
    %v2609 = vand.u32 %v104, 4294901760
    %2610 = vmatpush1.msra.mxu0 %v2609
    %2611 = vmatprep.subr.mxu0 0.0
    %v2612 = vand.u32 %v103, 4294901760
    %2613 = vmatpush1.msra.mxu0 %v2612
    %2614 = vmatprep.subr.mxu0 0.0
    %v2615 = vand.u32 %v102, 4294901760
    %2616 = vmatpush1.msra.mxu0 %v2615
    %2617 = vmatprep.subr.mxu0 0.0
    %v2618 = vand.u32 %v101, 4294901760
    %2619 = vmatpush1.msra.mxu0 %v2618
    %2620 = vmatprep.subr.mxu0 0.0
    %v2621 = vand.u32 %v100, 4294901760
    %2622 = vmatpush1.msra.mxu0 %v2621
    %2623 = vmatprep.subr.mxu0 0.0
    %v2624 = vand.u32 %v99, 4294901760
    %2625 = vmatpush1.msra.mxu0 %v2624
    %2626 = vmatprep.subr.mxu0 0.0
    %v2627 = vand.u32 %v98, 4294901760
    %2628 = vmatpush1.msra.mxu0 %v2627
    %2629 = vmatprep.subr.mxu0 0.0
    %v2630 = vand.u32 %v97, 4294901760
    %2631 = vmatpush1.msra.mxu0 %v2630
    %2632 = vmatprep.subr.mxu0 0.0
    %v2633 = vand.u32 %v96, 4294901760
    %2634 = vmatpush1.msra.mxu0 %v2633
    %2635 = vmatprep.subr.mxu0 0.0
    %v2636 = vand.u32 %v95, 4294901760
    %2637 = vmatpush1.msra.mxu0 %v2636
    %2638 = vmatprep.subr.mxu0 0.0
    %v2639 = vand.u32 %v94, 4294901760
    %2640 = vmatpush1.msra.mxu0 %v2639
    %2641 = vmatprep.subr.mxu0 0.0
    %2642 = vmatpush2.msra.mxu0 0.0
    %2643 = vmatprep.subr.mxu0 0.0
    %2644 = vmatpush2.msra.mxu0 0.0
    %2645 = vmatprep.subr.mxu0 0.0
    %2646 = vmatpush2.msra.mxu0 0.0
    %2647 = vmatprep.subr.mxu0 0.0
    %2648 = vmatpush2.msra.mxu0 0.0
    %2649 = vmatprep.subr.mxu0 0.0
    %2650 = vmatpush2.msra.mxu0 0.0
    %2651 = vmatprep.subr.mxu0 0.0
    %2652 = vmatpush2.msra.mxu0 0.0
    %2653 = vmatprep.subr.mxu0 0.0
    %2654 = vmatpush2.msra.mxu0 0.0
    %2655 = vmatprep.subr.mxu0 0.0
    %2656 = vmatpush2.msra.mxu0 0.0
    %2657 = vmatprep.subr.mxu0 0.0
    %2658 = vmatpush2.msra.mxu0 0.0
    %2659 = vmatprep.subr.mxu0 0.0
    %2660 = vmatpush2.msra.mxu0 0.0
    %2661 = vmatprep.subr.mxu0 0.0
    %2662 = vmatpush2.msra.mxu0 0.0
    %2663 = vmatprep.subr.mxu0 0.0
    %2664 = vmatpush2.msra.mxu0 0.0
    %2665 = vmatprep.subr.mxu0 0.0
    %2666 = vmatpush2.msra.mxu0 0.0
    %2667 = vmatprep.subr.mxu0 0.0
    %2668 = vmatpush2.msra.mxu0 0.0
    %2669 = vmatprep.subr.mxu0 0.0
    %2670 = vmatpush2.msra.mxu0 0.0
    %2671 = vmatprep.subr.mxu0 0.0
    %2672 = vmatpush2.msra.mxu0 0.0
    %2673 = vmatprep.mubr.f32.mxu0 0.0
    %v2674 = vand.u32 %v86, 4294901760
    %2675 = vmatmul.mubr.f32.gmra.mxu0 %v2674
    %v2676 = vpop.f32.mrf.mxu0
    %v2677 = vadd.f32 %v2560, %v2676
    %v2678 = vpop.f32.mrf.mxu0
    %2679 = vmatprep.mubr.f32.mxu0 0.0
    %v2680 = vand.u32 %v87, 4294901760
    %2681 = vmatmul.mubr.f32.gmra.mxu0 %v2680
    %v2682 = vpop.f32.mrf.mxu0
    %v2683 = vadd.f32 %v2566, %v2682
    %v2684 = vpop.f32.mrf.mxu0
    %2685 = vmatprep.mubr.f32.mxu0 0.0
    %v2686 = vand.u32 %v88, 4294901760
    %2687 = vmatmul.mubr.f32.gmra.mxu0 %v2686
    %v2688 = vpop.f32.mrf.mxu0
    %v2689 = vadd.f32 %v2572, %v2688
    %v2690 = vpop.f32.mrf.mxu0
    %2691 = vmatprep.mubr.f32.mxu0 0.0
    %v2692 = vand.u32 %v89, 4294901760
    %2693 = vmatmul.mubr.f32.gmra.mxu0 %v2692
    %v2694 = vpop.f32.mrf.mxu0
    %v2695 = vadd.f32 %v2578, %v2694
    %v2696 = vpop.f32.mrf.mxu0
    %2697 = vmatprep.mubr.f32.mxu0 0.0
    %v2698 = vand.u32 %v90, 4294901760
    %2699 = vmatmul.mubr.f32.gmra.mxu0 %v2698
    %v2700 = vpop.f32.mrf.mxu0
    %v2701 = vadd.f32 %v2584, %v2700
    %v2702 = vpop.f32.mrf.mxu0
    %2703 = vmatprep.mubr.f32.mxu0 0.0
    %v2704 = vand.u32 %v91, 4294901760
    %2705 = vmatmul.mubr.f32.gmra.mxu0 %v2704
    %v2706 = vpop.f32.mrf.mxu0
    %v2707 = vadd.f32 %v2590, %v2706
    %v2708 = vpop.f32.mrf.mxu0
    %2709 = vdwg.mxu0
    %2710 = vmatprep.subr.mxu0 0.0
    %v2711 = vand.u32 %v125, 4294901760
    %2712 = vmatpush1.msra.mxu0 %v2711
    %2713 = vmatprep.subr.mxu0 0.0
    %v2714 = vand.u32 %v124, 4294901760
    %2715 = vmatpush1.msra.mxu0 %v2714
    %2716 = vmatprep.subr.mxu0 0.0
    %v2717 = vand.u32 %v123, 4294901760
    %2718 = vmatpush1.msra.mxu0 %v2717
    %2719 = vmatprep.subr.mxu0 0.0
    %v2720 = vand.u32 %v122, 4294901760
    %2721 = vmatpush1.msra.mxu0 %v2720
    %2722 = vmatprep.subr.mxu0 0.0
    %v2723 = vand.u32 %v121, 4294901760
    %2724 = vmatpush1.msra.mxu0 %v2723
    %2725 = vmatprep.subr.mxu0 0.0
    %v2726 = vand.u32 %v120, 4294901760
    %2727 = vmatpush1.msra.mxu0 %v2726
    %2728 = vmatprep.subr.mxu0 0.0
    %v2729 = vand.u32 %v119, 4294901760
    %2730 = vmatpush1.msra.mxu0 %v2729
    %2731 = vmatprep.subr.mxu0 0.0
    %v2732 = vand.u32 %v118, 4294901760
    %2733 = vmatpush1.msra.mxu0 %v2732
    %2734 = vmatprep.subr.mxu0 0.0
    %v2735 = vand.u32 %v117, 4294901760
    %2736 = vmatpush1.msra.mxu0 %v2735
    %2737 = vmatprep.subr.mxu0 0.0
    %v2738 = vand.u32 %v116, 4294901760
    %2739 = vmatpush1.msra.mxu0 %v2738
    %2740 = vmatprep.subr.mxu0 0.0
    %v2741 = vand.u32 %v115, 4294901760
    %2742 = vmatpush1.msra.mxu0 %v2741
    %2743 = vmatprep.subr.mxu0 0.0
    %v2744 = vand.u32 %v114, 4294901760
    %2745 = vmatpush1.msra.mxu0 %v2744
    %2746 = vmatprep.subr.mxu0 0.0
    %v2747 = vand.u32 %v113, 4294901760
    %2748 = vmatpush1.msra.mxu0 %v2747
    %2749 = vmatprep.subr.mxu0 0.0
    %v2750 = vand.u32 %v112, 4294901760
    %2751 = vmatpush1.msra.mxu0 %v2750
    %2752 = vmatprep.subr.mxu0 0.0
    %v2753 = vand.u32 %v111, 4294901760
    %2754 = vmatpush1.msra.mxu0 %v2753
    %2755 = vmatprep.subr.mxu0 0.0
    %v2756 = vand.u32 %v110, 4294901760
    %2757 = vmatpush1.msra.mxu0 %v2756
    %2758 = vmatprep.subr.mxu0 0.0
    %2759 = vmatpush2.msra.mxu0 0.0
    %2760 = vmatprep.subr.mxu0 0.0
    %2761 = vmatpush2.msra.mxu0 0.0
    %2762 = vmatprep.subr.mxu0 0.0
    %2763 = vmatpush2.msra.mxu0 0.0
    %2764 = vmatprep.subr.mxu0 0.0
    %2765 = vmatpush2.msra.mxu0 0.0
    %2766 = vmatprep.subr.mxu0 0.0
    %2767 = vmatpush2.msra.mxu0 0.0
    %2768 = vmatprep.subr.mxu0 0.0
    %2769 = vmatpush2.msra.mxu0 0.0
    %2770 = vmatprep.subr.mxu0 0.0
    %2771 = vmatpush2.msra.mxu0 0.0
    %2772 = vmatprep.subr.mxu0 0.0
    %2773 = vmatpush2.msra.mxu0 0.0
    %2774 = vmatprep.subr.mxu0 0.0
    %2775 = vmatpush2.msra.mxu0 0.0
    %2776 = vmatprep.subr.mxu0 0.0
    %2777 = vmatpush2.msra.mxu0 0.0
    %2778 = vmatprep.subr.mxu0 0.0
    %2779 = vmatpush2.msra.mxu0 0.0
    %2780 = vmatprep.subr.mxu0 0.0
    %2781 = vmatpush2.msra.mxu0 0.0
    %2782 = vmatprep.subr.mxu0 0.0
    %2783 = vmatpush2.msra.mxu0 0.0
    %2784 = vmatprep.subr.mxu0 0.0
    %2785 = vmatpush2.msra.mxu0 0.0
    %2786 = vmatprep.subr.mxu0 0.0
    %2787 = vmatpush2.msra.mxu0 0.0
    %2788 = vmatprep.subr.mxu0 0.0
    %2789 = vmatpush2.msra.mxu0 0.0
    %2790 = vmatprep.mubr.f32.mxu0 0.0
    %v2791 = vand.u32 %v86, 4294901760
    %v2792 = vsub.f32 %v86, %v2791
    %v2793 = vand.u32 %v2792, 4294901760
    %v2794 = vsub.f32 %v2792, %v2793
    %v2795 = vand.u32 %v2794, 4294901760
    %2796 = vmatmul.mubr.f32.gmra.mxu0 %v2795
    %v2797 = vpop.f32.mrf.mxu0
    %v2798 = vadd.f32 0.0, %v2797
    %v2799 = vpop.f32.mrf.mxu0
    %2800 = vmatprep.mubr.f32.mxu0 0.0
    %v2801 = vand.u32 %v87, 4294901760
    %v2802 = vsub.f32 %v87, %v2801
    %v2803 = vand.u32 %v2802, 4294901760
    %v2804 = vsub.f32 %v2802, %v2803
    %v2805 = vand.u32 %v2804, 4294901760
    %2806 = vmatmul.mubr.f32.gmra.mxu0 %v2805
    %v2807 = vpop.f32.mrf.mxu0
    %v2808 = vadd.f32 0.0, %v2807
    %v2809 = vpop.f32.mrf.mxu0
    %2810 = vmatprep.mubr.f32.mxu0 0.0
    %v2811 = vand.u32 %v88, 4294901760
    %v2812 = vsub.f32 %v88, %v2811
    %v2813 = vand.u32 %v2812, 4294901760
    %v2814 = vsub.f32 %v2812, %v2813
    %v2815 = vand.u32 %v2814, 4294901760
    %2816 = vmatmul.mubr.f32.gmra.mxu0 %v2815
    %v2817 = vpop.f32.mrf.mxu0
    %v2818 = vadd.f32 0.0, %v2817
    %v2819 = vpop.f32.mrf.mxu0
    %2820 = vmatprep.mubr.f32.mxu0 0.0
    %v2821 = vand.u32 %v89, 4294901760
    %v2822 = vsub.f32 %v89, %v2821
    %v2823 = vand.u32 %v2822, 4294901760
    %v2824 = vsub.f32 %v2822, %v2823
    %v2825 = vand.u32 %v2824, 4294901760
    %2826 = vmatmul.mubr.f32.gmra.mxu0 %v2825
    %v2827 = vpop.f32.mrf.mxu0
    %v2828 = vadd.f32 0.0, %v2827
    %v2829 = vpop.f32.mrf.mxu0
    %2830 = vmatprep.mubr.f32.mxu0 0.0
    %v2831 = vand.u32 %v90, 4294901760
    %v2832 = vsub.f32 %v90, %v2831
    %v2833 = vand.u32 %v2832, 4294901760
    %v2834 = vsub.f32 %v2832, %v2833
    %v2835 = vand.u32 %v2834, 4294901760
    %2836 = vmatmul.mubr.f32.gmra.mxu0 %v2835
    %v2837 = vpop.f32.mrf.mxu0
    %v2838 = vadd.f32 0.0, %v2837
    %v2839 = vpop.f32.mrf.mxu0
    %2840 = vmatprep.mubr.f32.mxu0 0.0
    %v2841 = vand.u32 %v91, 4294901760
    %v2842 = vsub.f32 %v91, %v2841
    %v2843 = vand.u32 %v2842, 4294901760
    %v2844 = vsub.f32 %v2842, %v2843
    %v2845 = vand.u32 %v2844, 4294901760
    %2846 = vmatmul.mubr.f32.gmra.mxu0 %v2845
    %v2847 = vpop.f32.mrf.mxu0
    %v2848 = vadd.f32 0.0, %v2847
    %v2849 = vpop.f32.mrf.mxu0
    %2850 = vdwg.mxu0
    %2851 = vmatprep.subr.mxu0 0.0
    %v2852 = vand.u32 %v125, 4294901760
    %v2853 = vsub.f32 %v125, %v2852
    %v2854 = vand.u32 %v2853, 4294901760
    %v2855 = vsub.f32 %v2853, %v2854
    %v2856 = vand.u32 %v2855, 4294901760
    %2857 = vmatpush1.msra.mxu0 %v2856
    %2858 = vmatprep.subr.mxu0 0.0
    %v2859 = vand.u32 %v124, 4294901760
    %v2860 = vsub.f32 %v124, %v2859
    %v2861 = vand.u32 %v2860, 4294901760
    %v2862 = vsub.f32 %v2860, %v2861
    %v2863 = vand.u32 %v2862, 4294901760
    %2864 = vmatpush1.msra.mxu0 %v2863
    %2865 = vmatprep.subr.mxu0 0.0
    %v2866 = vand.u32 %v123, 4294901760
    %v2867 = vsub.f32 %v123, %v2866
    %v2868 = vand.u32 %v2867, 4294901760
    %v2869 = vsub.f32 %v2867, %v2868
    %v2870 = vand.u32 %v2869, 4294901760
    %2871 = vmatpush1.msra.mxu0 %v2870
    %2872 = vmatprep.subr.mxu0 0.0
    %v2873 = vand.u32 %v122, 4294901760
    %v2874 = vsub.f32 %v122, %v2873
    %v2875 = vand.u32 %v2874, 4294901760
    %v2876 = vsub.f32 %v2874, %v2875
    %v2877 = vand.u32 %v2876, 4294901760
    %2878 = vmatpush1.msra.mxu0 %v2877
    %2879 = vmatprep.subr.mxu0 0.0
    %v2880 = vand.u32 %v121, 4294901760
    %v2881 = vsub.f32 %v121, %v2880
    %v2882 = vand.u32 %v2881, 4294901760
    %v2883 = vsub.f32 %v2881, %v2882
    %v2884 = vand.u32 %v2883, 4294901760
    %2885 = vmatpush1.msra.mxu0 %v2884
    %2886 = vmatprep.subr.mxu0 0.0
    %v2887 = vand.u32 %v120, 4294901760
    %v2888 = vsub.f32 %v120, %v2887
    %v2889 = vand.u32 %v2888, 4294901760
    %v2890 = vsub.f32 %v2888, %v2889
    %v2891 = vand.u32 %v2890, 4294901760
    %2892 = vmatpush1.msra.mxu0 %v2891
    %2893 = vmatprep.subr.mxu0 0.0
    %v2894 = vand.u32 %v119, 4294901760
    %v2895 = vsub.f32 %v119, %v2894
    %v2896 = vand.u32 %v2895, 4294901760
    %v2897 = vsub.f32 %v2895, %v2896
    %v2898 = vand.u32 %v2897, 4294901760
    %2899 = vmatpush1.msra.mxu0 %v2898
    %2900 = vmatprep.subr.mxu0 0.0
    %v2901 = vand.u32 %v118, 4294901760
    %v2902 = vsub.f32 %v118, %v2901
    %v2903 = vand.u32 %v2902, 4294901760
    %v2904 = vsub.f32 %v2902, %v2903
    %v2905 = vand.u32 %v2904, 4294901760
    %2906 = vmatpush1.msra.mxu0 %v2905
    %2907 = vmatprep.subr.mxu0 0.0
    %v2908 = vand.u32 %v117, 4294901760
    %v2909 = vsub.f32 %v117, %v2908
    %v2910 = vand.u32 %v2909, 4294901760
    %v2911 = vsub.f32 %v2909, %v2910
    %v2912 = vand.u32 %v2911, 4294901760
    %2913 = vmatpush1.msra.mxu0 %v2912
    %2914 = vmatprep.subr.mxu0 0.0
    %v2915 = vand.u32 %v116, 4294901760
    %v2916 = vsub.f32 %v116, %v2915
    %v2917 = vand.u32 %v2916, 4294901760
    %v2918 = vsub.f32 %v2916, %v2917
    %v2919 = vand.u32 %v2918, 4294901760
    %2920 = vmatpush1.msra.mxu0 %v2919
    %2921 = vmatprep.subr.mxu0 0.0
    %v2922 = vand.u32 %v115, 4294901760
    %v2923 = vsub.f32 %v115, %v2922
    %v2924 = vand.u32 %v2923, 4294901760
    %v2925 = vsub.f32 %v2923, %v2924
    %v2926 = vand.u32 %v2925, 4294901760
    %2927 = vmatpush1.msra.mxu0 %v2926
    %2928 = vmatprep.subr.mxu0 0.0
    %v2929 = vand.u32 %v114, 4294901760
    %v2930 = vsub.f32 %v114, %v2929
    %v2931 = vand.u32 %v2930, 4294901760
    %v2932 = vsub.f32 %v2930, %v2931
    %v2933 = vand.u32 %v2932, 4294901760
    %2934 = vmatpush1.msra.mxu0 %v2933
    %2935 = vmatprep.subr.mxu0 0.0
    %v2936 = vand.u32 %v113, 4294901760
    %v2937 = vsub.f32 %v113, %v2936
    %v2938 = vand.u32 %v2937, 4294901760
    %v2939 = vsub.f32 %v2937, %v2938
    %v2940 = vand.u32 %v2939, 4294901760
    %2941 = vmatpush1.msra.mxu0 %v2940
    %2942 = vmatprep.subr.mxu0 0.0
    %v2943 = vand.u32 %v112, 4294901760
    %v2944 = vsub.f32 %v112, %v2943
    %v2945 = vand.u32 %v2944, 4294901760
    %v2946 = vsub.f32 %v2944, %v2945
    %v2947 = vand.u32 %v2946, 4294901760
    %2948 = vmatpush1.msra.mxu0 %v2947
    %2949 = vmatprep.subr.mxu0 0.0
    %v2950 = vand.u32 %v111, 4294901760
    %v2951 = vsub.f32 %v111, %v2950
    %v2952 = vand.u32 %v2951, 4294901760
    %v2953 = vsub.f32 %v2951, %v2952
    %v2954 = vand.u32 %v2953, 4294901760
    %2955 = vmatpush1.msra.mxu0 %v2954
    %2956 = vmatprep.subr.mxu0 0.0
    %v2957 = vand.u32 %v110, 4294901760
    %v2958 = vsub.f32 %v110, %v2957
    %v2959 = vand.u32 %v2958, 4294901760
    %v2960 = vsub.f32 %v2958, %v2959
    %v2961 = vand.u32 %v2960, 4294901760
    %2962 = vmatpush1.msra.mxu0 %v2961
    %2963 = vmatprep.subr.mxu0 0.0
    %2964 = vmatpush2.msra.mxu0 0.0
    %2965 = vmatprep.subr.mxu0 0.0
    %2966 = vmatpush2.msra.mxu0 0.0
    %2967 = vmatprep.subr.mxu0 0.0
    %2968 = vmatpush2.msra.mxu0 0.0
    %2969 = vmatprep.subr.mxu0 0.0
    %2970 = vmatpush2.msra.mxu0 0.0
    %2971 = vmatprep.subr.mxu0 0.0
    %2972 = vmatpush2.msra.mxu0 0.0
    %2973 = vmatprep.subr.mxu0 0.0
    %2974 = vmatpush2.msra.mxu0 0.0
    %2975 = vmatprep.subr.mxu0 0.0
    %2976 = vmatpush2.msra.mxu0 0.0
    %2977 = vmatprep.subr.mxu0 0.0
    %2978 = vmatpush2.msra.mxu0 0.0
    %2979 = vmatprep.subr.mxu0 0.0
    %2980 = vmatpush2.msra.mxu0 0.0
    %2981 = vmatprep.subr.mxu0 0.0
    %2982 = vmatpush2.msra.mxu0 0.0
    %2983 = vmatprep.subr.mxu0 0.0
    %2984 = vmatpush2.msra.mxu0 0.0
    %2985 = vmatprep.subr.mxu0 0.0
    %2986 = vmatpush2.msra.mxu0 0.0
    %2987 = vmatprep.subr.mxu0 0.0
    %2988 = vmatpush2.msra.mxu0 0.0
    %2989 = vmatprep.subr.mxu0 0.0
    %2990 = vmatpush2.msra.mxu0 0.0
    %2991 = vmatprep.subr.mxu0 0.0
    %2992 = vmatpush2.msra.mxu0 0.0
    %2993 = vmatprep.subr.mxu0 0.0
    %2994 = vmatpush2.msra.mxu0 0.0
    %2995 = vmatprep.mubr.f32.mxu0 0.0
    %v2996 = vand.u32 %v86, 4294901760
    %2997 = vmatmul.mubr.f32.gmra.mxu0 %v2996
    %v2998 = vpop.f32.mrf.mxu0
    %v2999 = vadd.f32 %v2798, %v2998
    %v3000 = vpop.f32.mrf.mxu0
    %3001 = vmatprep.mubr.f32.mxu0 0.0
    %v3002 = vand.u32 %v87, 4294901760
    %3003 = vmatmul.mubr.f32.gmra.mxu0 %v3002
    %v3004 = vpop.f32.mrf.mxu0
    %v3005 = vadd.f32 %v2808, %v3004
    %v3006 = vpop.f32.mrf.mxu0
    %3007 = vmatprep.mubr.f32.mxu0 0.0
    %v3008 = vand.u32 %v88, 4294901760
    %3009 = vmatmul.mubr.f32.gmra.mxu0 %v3008
    %v3010 = vpop.f32.mrf.mxu0
    %v3011 = vadd.f32 %v2818, %v3010
    %v3012 = vpop.f32.mrf.mxu0
    %3013 = vmatprep.mubr.f32.mxu0 0.0
    %v3014 = vand.u32 %v89, 4294901760
    %3015 = vmatmul.mubr.f32.gmra.mxu0 %v3014
    %v3016 = vpop.f32.mrf.mxu0
    %v3017 = vadd.f32 %v2828, %v3016
    %v3018 = vpop.f32.mrf.mxu0
    %3019 = vmatprep.mubr.f32.mxu0 0.0
    %v3020 = vand.u32 %v90, 4294901760
    %3021 = vmatmul.mubr.f32.gmra.mxu0 %v3020
    %v3022 = vpop.f32.mrf.mxu0
    %v3023 = vadd.f32 %v2838, %v3022
    %v3024 = vpop.f32.mrf.mxu0
    %3025 = vmatprep.mubr.f32.mxu0 0.0
    %v3026 = vand.u32 %v91, 4294901760
    %3027 = vmatmul.mubr.f32.gmra.mxu0 %v3026
    %v3028 = vpop.f32.mrf.mxu0
    %v3029 = vadd.f32 %v2848, %v3028
    %v3030 = vpop.f32.mrf.mxu0
    %3031 = vdwg.mxu0
    %3032 = vmatprep.subr.mxu0 0.0
    %v3033 = vand.u32 %v125, 4294901760
    %v3034 = vsub.f32 %v125, %v3033
    %3035 = vmatpush1.msra.mxu0 %v3034
    %3036 = vmatprep.subr.mxu0 0.0
    %v3037 = vand.u32 %v124, 4294901760
    %v3038 = vsub.f32 %v124, %v3037
    %3039 = vmatpush1.msra.mxu0 %v3038
    %3040 = vmatprep.subr.mxu0 0.0
    %v3041 = vand.u32 %v123, 4294901760
    %v3042 = vsub.f32 %v123, %v3041
    %3043 = vmatpush1.msra.mxu0 %v3042
    %3044 = vmatprep.subr.mxu0 0.0
    %v3045 = vand.u32 %v122, 4294901760
    %v3046 = vsub.f32 %v122, %v3045
    %3047 = vmatpush1.msra.mxu0 %v3046
    %3048 = vmatprep.subr.mxu0 0.0
    %v3049 = vand.u32 %v121, 4294901760
    %v3050 = vsub.f32 %v121, %v3049
    %3051 = vmatpush1.msra.mxu0 %v3050
    %3052 = vmatprep.subr.mxu0 0.0
    %v3053 = vand.u32 %v120, 4294901760
    %v3054 = vsub.f32 %v120, %v3053
    %3055 = vmatpush1.msra.mxu0 %v3054
    %3056 = vmatprep.subr.mxu0 0.0
    %v3057 = vand.u32 %v119, 4294901760
    %v3058 = vsub.f32 %v119, %v3057
    %3059 = vmatpush1.msra.mxu0 %v3058
    %3060 = vmatprep.subr.mxu0 0.0
    %v3061 = vand.u32 %v118, 4294901760
    %v3062 = vsub.f32 %v118, %v3061
    %3063 = vmatpush1.msra.mxu0 %v3062
    %3064 = vmatprep.subr.mxu0 0.0
    %v3065 = vand.u32 %v117, 4294901760
    %v3066 = vsub.f32 %v117, %v3065
    %3067 = vmatpush1.msra.mxu0 %v3066
    %3068 = vmatprep.subr.mxu0 0.0
    %v3069 = vand.u32 %v116, 4294901760
    %v3070 = vsub.f32 %v116, %v3069
    %3071 = vmatpush1.msra.mxu0 %v3070
    %3072 = vmatprep.subr.mxu0 0.0
    %v3073 = vand.u32 %v115, 4294901760
    %v3074 = vsub.f32 %v115, %v3073
    %3075 = vmatpush1.msra.mxu0 %v3074
    %3076 = vmatprep.subr.mxu0 0.0
    %v3077 = vand.u32 %v114, 4294901760
    %v3078 = vsub.f32 %v114, %v3077
    %3079 = vmatpush1.msra.mxu0 %v3078
    %3080 = vmatprep.subr.mxu0 0.0
    %v3081 = vand.u32 %v113, 4294901760
    %v3082 = vsub.f32 %v113, %v3081
    %3083 = vmatpush1.msra.mxu0 %v3082
    %3084 = vmatprep.subr.mxu0 0.0
    %v3085 = vand.u32 %v112, 4294901760
    %v3086 = vsub.f32 %v112, %v3085
    %3087 = vmatpush1.msra.mxu0 %v3086
    %3088 = vmatprep.subr.mxu0 0.0
    %v3089 = vand.u32 %v111, 4294901760
    %v3090 = vsub.f32 %v111, %v3089
    %3091 = vmatpush1.msra.mxu0 %v3090
    %3092 = vmatprep.subr.mxu0 0.0
    %v3093 = vand.u32 %v110, 4294901760
    %v3094 = vsub.f32 %v110, %v3093
    %3095 = vmatpush1.msra.mxu0 %v3094
    %3096 = vmatprep.subr.mxu0 0.0
    %3097 = vmatpush2.msra.mxu0 0.0
    %3098 = vmatprep.subr.mxu0 0.0
    %3099 = vmatpush2.msra.mxu0 0.0
    %3100 = vmatprep.subr.mxu0 0.0
    %3101 = vmatpush2.msra.mxu0 0.0
    %3102 = vmatprep.subr.mxu0 0.0
    %3103 = vmatpush2.msra.mxu0 0.0
    %3104 = vmatprep.subr.mxu0 0.0
    %3105 = vmatpush2.msra.mxu0 0.0
    %3106 = vmatprep.subr.mxu0 0.0
    %3107 = vmatpush2.msra.mxu0 0.0
    %3108 = vmatprep.subr.mxu0 0.0
    %3109 = vmatpush2.msra.mxu0 0.0
    %3110 = vmatprep.subr.mxu0 0.0
    %3111 = vmatpush2.msra.mxu0 0.0
    %3112 = vmatprep.subr.mxu0 0.0
    %3113 = vmatpush2.msra.mxu0 0.0
    %3114 = vmatprep.subr.mxu0 0.0
    %3115 = vmatpush2.msra.mxu0 0.0
    %3116 = vmatprep.subr.mxu0 0.0
    %3117 = vmatpush2.msra.mxu0 0.0
    %3118 = vmatprep.subr.mxu0 0.0
    %3119 = vmatpush2.msra.mxu0 0.0
    %3120 = vmatprep.subr.mxu0 0.0
    %3121 = vmatpush2.msra.mxu0 0.0
    %3122 = vmatprep.subr.mxu0 0.0
    %3123 = vmatpush2.msra.mxu0 0.0
    %3124 = vmatprep.subr.mxu0 0.0
    %3125 = vmatpush2.msra.mxu0 0.0
    %3126 = vmatprep.subr.mxu0 0.0
    %3127 = vmatpush2.msra.mxu0 0.0
    %3128 = vmatprep.mubr.f32.mxu0 0.0
    %v3129 = vand.u32 %v86, 4294901760
    %v3130 = vsub.f32 %v86, %v3129
    %3131 = vmatmul.mubr.f32.gmra.mxu0 %v3130
    %v3132 = vpop.f32.mrf.mxu0
    %v3133 = vadd.f32 %v2999, %v3132
    %v3134 = vpop.f32.mrf.mxu0
    %3135 = vmatprep.mubr.f32.mxu0 0.0
    %v3136 = vand.u32 %v87, 4294901760
    %v3137 = vsub.f32 %v87, %v3136
    %3138 = vmatmul.mubr.f32.gmra.mxu0 %v3137
    %v3139 = vpop.f32.mrf.mxu0
    %v3140 = vadd.f32 %v3005, %v3139
    %v3141 = vpop.f32.mrf.mxu0
    %3142 = vmatprep.mubr.f32.mxu0 0.0
    %v3143 = vand.u32 %v88, 4294901760
    %v3144 = vsub.f32 %v88, %v3143
    %3145 = vmatmul.mubr.f32.gmra.mxu0 %v3144
    %v3146 = vpop.f32.mrf.mxu0
    %v3147 = vadd.f32 %v3011, %v3146
    %v3148 = vpop.f32.mrf.mxu0
    %3149 = vmatprep.mubr.f32.mxu0 0.0
    %v3150 = vand.u32 %v89, 4294901760
    %v3151 = vsub.f32 %v89, %v3150
    %3152 = vmatmul.mubr.f32.gmra.mxu0 %v3151
    %v3153 = vpop.f32.mrf.mxu0
    %v3154 = vadd.f32 %v3017, %v3153
    %v3155 = vpop.f32.mrf.mxu0
    %3156 = vmatprep.mubr.f32.mxu0 0.0
    %v3157 = vand.u32 %v90, 4294901760
    %v3158 = vsub.f32 %v90, %v3157
    %3159 = vmatmul.mubr.f32.gmra.mxu0 %v3158
    %v3160 = vpop.f32.mrf.mxu0
    %v3161 = vadd.f32 %v3023, %v3160
    %v3162 = vpop.f32.mrf.mxu0
    %3163 = vmatprep.mubr.f32.mxu0 0.0
    %v3164 = vand.u32 %v91, 4294901760
    %v3165 = vsub.f32 %v91, %v3164
    %3166 = vmatmul.mubr.f32.gmra.mxu0 %v3165
    %v3167 = vpop.f32.mrf.mxu0
    %v3168 = vadd.f32 %v3029, %v3167
    %v3169 = vpop.f32.mrf.mxu0
    %3170 = vdwg.mxu0
    %3171 = vmatprep.subr.mxu0 0.0
    %v3172 = vand.u32 %v125, 4294901760
    %3173 = vmatpush1.msra.mxu0 %v3172
    %3174 = vmatprep.subr.mxu0 0.0
    %v3175 = vand.u32 %v124, 4294901760
    %3176 = vmatpush1.msra.mxu0 %v3175
    %3177 = vmatprep.subr.mxu0 0.0
    %v3178 = vand.u32 %v123, 4294901760
    %3179 = vmatpush1.msra.mxu0 %v3178
    %3180 = vmatprep.subr.mxu0 0.0
    %v3181 = vand.u32 %v122, 4294901760
    %3182 = vmatpush1.msra.mxu0 %v3181
    %3183 = vmatprep.subr.mxu0 0.0
    %v3184 = vand.u32 %v121, 4294901760
    %3185 = vmatpush1.msra.mxu0 %v3184
    %3186 = vmatprep.subr.mxu0 0.0
    %v3187 = vand.u32 %v120, 4294901760
    %3188 = vmatpush1.msra.mxu0 %v3187
    %3189 = vmatprep.subr.mxu0 0.0
    %v3190 = vand.u32 %v119, 4294901760
    %3191 = vmatpush1.msra.mxu0 %v3190
    %3192 = vmatprep.subr.mxu0 0.0
    %v3193 = vand.u32 %v118, 4294901760
    %3194 = vmatpush1.msra.mxu0 %v3193
    %3195 = vmatprep.subr.mxu0 0.0
    %v3196 = vand.u32 %v117, 4294901760
    %3197 = vmatpush1.msra.mxu0 %v3196
    %3198 = vmatprep.subr.mxu0 0.0
    %v3199 = vand.u32 %v116, 4294901760
    %3200 = vmatpush1.msra.mxu0 %v3199
    %3201 = vmatprep.subr.mxu0 0.0
    %v3202 = vand.u32 %v115, 4294901760
    %3203 = vmatpush1.msra.mxu0 %v3202
    %3204 = vmatprep.subr.mxu0 0.0
    %v3205 = vand.u32 %v114, 4294901760
    %3206 = vmatpush1.msra.mxu0 %v3205
    %3207 = vmatprep.subr.mxu0 0.0
    %v3208 = vand.u32 %v113, 4294901760
    %3209 = vmatpush1.msra.mxu0 %v3208
    %3210 = vmatprep.subr.mxu0 0.0
    %v3211 = vand.u32 %v112, 4294901760
    %3212 = vmatpush1.msra.mxu0 %v3211
    %3213 = vmatprep.subr.mxu0 0.0
    %v3214 = vand.u32 %v111, 4294901760
    %3215 = vmatpush1.msra.mxu0 %v3214
    %3216 = vmatprep.subr.mxu0 0.0
    %v3217 = vand.u32 %v110, 4294901760
    %3218 = vmatpush1.msra.mxu0 %v3217
    %3219 = vmatprep.subr.mxu0 0.0
    %3220 = vmatpush2.msra.mxu0 0.0
    %3221 = vmatprep.subr.mxu0 0.0
    %3222 = vmatpush2.msra.mxu0 0.0
    %3223 = vmatprep.subr.mxu0 0.0
    %3224 = vmatpush2.msra.mxu0 0.0
    %3225 = vmatprep.subr.mxu0 0.0
    %3226 = vmatpush2.msra.mxu0 0.0
    %3227 = vmatprep.subr.mxu0 0.0
    %3228 = vmatpush2.msra.mxu0 0.0
    %3229 = vmatprep.subr.mxu0 0.0
    %3230 = vmatpush2.msra.mxu0 0.0
    %3231 = vmatprep.subr.mxu0 0.0
    %3232 = vmatpush2.msra.mxu0 0.0
    %3233 = vmatprep.subr.mxu0 0.0
    %3234 = vmatpush2.msra.mxu0 0.0
    %3235 = vmatprep.subr.mxu0 0.0
    %3236 = vmatpush2.msra.mxu0 0.0
    %3237 = vmatprep.subr.mxu0 0.0
    %3238 = vmatpush2.msra.mxu0 0.0
    %3239 = vmatprep.subr.mxu0 0.0
    %3240 = vmatpush2.msra.mxu0 0.0
    %3241 = vmatprep.subr.mxu0 0.0
    %3242 = vmatpush2.msra.mxu0 0.0
    %3243 = vmatprep.subr.mxu0 0.0
    %3244 = vmatpush2.msra.mxu0 0.0
    %3245 = vmatprep.subr.mxu0 0.0
    %3246 = vmatpush2.msra.mxu0 0.0
    %3247 = vmatprep.subr.mxu0 0.0
    %3248 = vmatpush2.msra.mxu0 0.0
    %3249 = vmatprep.subr.mxu0 0.0
    %3250 = vmatpush2.msra.mxu0 0.0
    %3251 = vmatprep.mubr.f32.mxu0 0.0
    %v3252 = vand.u32 %v86, 4294901760
    %v3253 = vsub.f32 %v86, %v3252
    %v3254 = vand.u32 %v3253, 4294901760
    %3255 = vmatmul.mubr.f32.gmra.mxu0 %v3254
    %v3256 = vpop.f32.mrf.mxu0
    %v3257 = vadd.f32 %v3133, %v3256
    %v3258 = vpop.f32.mrf.mxu0
    %3259 = vmatprep.mubr.f32.mxu0 0.0
    %v3260 = vand.u32 %v87, 4294901760
    %v3261 = vsub.f32 %v87, %v3260
    %v3262 = vand.u32 %v3261, 4294901760
    %3263 = vmatmul.mubr.f32.gmra.mxu0 %v3262
    %v3264 = vpop.f32.mrf.mxu0
    %v3265 = vadd.f32 %v3140, %v3264
    %v3266 = vpop.f32.mrf.mxu0
    %3267 = vmatprep.mubr.f32.mxu0 0.0
    %v3268 = vand.u32 %v88, 4294901760
    %v3269 = vsub.f32 %v88, %v3268
    %v3270 = vand.u32 %v3269, 4294901760
    %3271 = vmatmul.mubr.f32.gmra.mxu0 %v3270
    %v3272 = vpop.f32.mrf.mxu0
    %v3273 = vadd.f32 %v3147, %v3272
    %v3274 = vpop.f32.mrf.mxu0
    %3275 = vmatprep.mubr.f32.mxu0 0.0
    %v3276 = vand.u32 %v89, 4294901760
    %v3277 = vsub.f32 %v89, %v3276
    %v3278 = vand.u32 %v3277, 4294901760
    %3279 = vmatmul.mubr.f32.gmra.mxu0 %v3278
    %v3280 = vpop.f32.mrf.mxu0
    %v3281 = vadd.f32 %v3154, %v3280
    %v3282 = vpop.f32.mrf.mxu0
    %3283 = vmatprep.mubr.f32.mxu0 0.0
    %v3284 = vand.u32 %v90, 4294901760
    %v3285 = vsub.f32 %v90, %v3284
    %v3286 = vand.u32 %v3285, 4294901760
    %3287 = vmatmul.mubr.f32.gmra.mxu0 %v3286
    %v3288 = vpop.f32.mrf.mxu0
    %v3289 = vadd.f32 %v3161, %v3288
    %v3290 = vpop.f32.mrf.mxu0
    %3291 = vmatprep.mubr.f32.mxu0 0.0
    %v3292 = vand.u32 %v91, 4294901760
    %v3293 = vsub.f32 %v91, %v3292
    %v3294 = vand.u32 %v3293, 4294901760
    %3295 = vmatmul.mubr.f32.gmra.mxu0 %v3294
    %v3296 = vpop.f32.mrf.mxu0
    %v3297 = vadd.f32 %v3168, %v3296
    %v3298 = vpop.f32.mrf.mxu0
    %3299 = vdwg.mxu0
    %3300 = vmatprep.subr.mxu0 0.0
    %v3301 = vand.u32 %v125, 4294901760
    %v3302 = vsub.f32 %v125, %v3301
    %v3303 = vand.u32 %v3302, 4294901760
    %3304 = vmatpush1.msra.mxu0 %v3303
    %3305 = vmatprep.subr.mxu0 0.0
    %v3306 = vand.u32 %v124, 4294901760
    %v3307 = vsub.f32 %v124, %v3306
    %v3308 = vand.u32 %v3307, 4294901760
    %3309 = vmatpush1.msra.mxu0 %v3308
    %3310 = vmatprep.subr.mxu0 0.0
    %v3311 = vand.u32 %v123, 4294901760
    %v3312 = vsub.f32 %v123, %v3311
    %v3313 = vand.u32 %v3312, 4294901760
    %3314 = vmatpush1.msra.mxu0 %v3313
    %3315 = vmatprep.subr.mxu0 0.0
    %v3316 = vand.u32 %v122, 4294901760
    %v3317 = vsub.f32 %v122, %v3316
    %v3318 = vand.u32 %v3317, 4294901760
    %3319 = vmatpush1.msra.mxu0 %v3318
    %3320 = vmatprep.subr.mxu0 0.0
    %v3321 = vand.u32 %v121, 4294901760
    %v3322 = vsub.f32 %v121, %v3321
    %v3323 = vand.u32 %v3322, 4294901760
    %3324 = vmatpush1.msra.mxu0 %v3323
    %3325 = vmatprep.subr.mxu0 0.0
    %v3326 = vand.u32 %v120, 4294901760
    %v3327 = vsub.f32 %v120, %v3326
    %v3328 = vand.u32 %v3327, 4294901760
    %3329 = vmatpush1.msra.mxu0 %v3328
    %3330 = vmatprep.subr.mxu0 0.0
    %v3331 = vand.u32 %v119, 4294901760
    %v3332 = vsub.f32 %v119, %v3331
    %v3333 = vand.u32 %v3332, 4294901760
    %3334 = vmatpush1.msra.mxu0 %v3333
    %3335 = vmatprep.subr.mxu0 0.0
    %v3336 = vand.u32 %v118, 4294901760
    %v3337 = vsub.f32 %v118, %v3336
    %v3338 = vand.u32 %v3337, 4294901760
    %3339 = vmatpush1.msra.mxu0 %v3338
    %3340 = vmatprep.subr.mxu0 0.0
    %v3341 = vand.u32 %v117, 4294901760
    %v3342 = vsub.f32 %v117, %v3341
    %v3343 = vand.u32 %v3342, 4294901760
    %3344 = vmatpush1.msra.mxu0 %v3343
    %3345 = vmatprep.subr.mxu0 0.0
    %v3346 = vand.u32 %v116, 4294901760
    %v3347 = vsub.f32 %v116, %v3346
    %v3348 = vand.u32 %v3347, 4294901760
    %3349 = vmatpush1.msra.mxu0 %v3348
    %3350 = vmatprep.subr.mxu0 0.0
    %v3351 = vand.u32 %v115, 4294901760
    %v3352 = vsub.f32 %v115, %v3351
    %v3353 = vand.u32 %v3352, 4294901760
    %3354 = vmatpush1.msra.mxu0 %v3353
    %3355 = vmatprep.subr.mxu0 0.0
    %v3356 = vand.u32 %v114, 4294901760
    %v3357 = vsub.f32 %v114, %v3356
    %v3358 = vand.u32 %v3357, 4294901760
    %3359 = vmatpush1.msra.mxu0 %v3358
    %3360 = vmatprep.subr.mxu0 0.0
    %v3361 = vand.u32 %v113, 4294901760
    %v3362 = vsub.f32 %v113, %v3361
    %v3363 = vand.u32 %v3362, 4294901760
    %3364 = vmatpush1.msra.mxu0 %v3363
    %3365 = vmatprep.subr.mxu0 0.0
    %v3366 = vand.u32 %v112, 4294901760
    %v3367 = vsub.f32 %v112, %v3366
    %v3368 = vand.u32 %v3367, 4294901760
    %3369 = vmatpush1.msra.mxu0 %v3368
    %3370 = vmatprep.subr.mxu0 0.0
    %v3371 = vand.u32 %v111, 4294901760
    %v3372 = vsub.f32 %v111, %v3371
    %v3373 = vand.u32 %v3372, 4294901760
    %3374 = vmatpush1.msra.mxu0 %v3373
    %3375 = vmatprep.subr.mxu0 0.0
    %v3376 = vand.u32 %v110, 4294901760
    %v3377 = vsub.f32 %v110, %v3376
    %v3378 = vand.u32 %v3377, 4294901760
    %3379 = vmatpush1.msra.mxu0 %v3378
    %3380 = vmatprep.subr.mxu0 0.0
    %3381 = vmatpush2.msra.mxu0 0.0
    %3382 = vmatprep.subr.mxu0 0.0
    %3383 = vmatpush2.msra.mxu0 0.0
    %3384 = vmatprep.subr.mxu0 0.0
    %3385 = vmatpush2.msra.mxu0 0.0
    %3386 = vmatprep.subr.mxu0 0.0
    %3387 = vmatpush2.msra.mxu0 0.0
    %3388 = vmatprep.subr.mxu0 0.0
    %3389 = vmatpush2.msra.mxu0 0.0
    %3390 = vmatprep.subr.mxu0 0.0
    %3391 = vmatpush2.msra.mxu0 0.0
    %3392 = vmatprep.subr.mxu0 0.0
    %3393 = vmatpush2.msra.mxu0 0.0
    %3394 = vmatprep.subr.mxu0 0.0
    %3395 = vmatpush2.msra.mxu0 0.0
    %3396 = vmatprep.subr.mxu0 0.0
    %3397 = vmatpush2.msra.mxu0 0.0
    %3398 = vmatprep.subr.mxu0 0.0
    %3399 = vmatpush2.msra.mxu0 0.0
    %3400 = vmatprep.subr.mxu0 0.0
    %3401 = vmatpush2.msra.mxu0 0.0
    %3402 = vmatprep.subr.mxu0 0.0
    %3403 = vmatpush2.msra.mxu0 0.0
    %3404 = vmatprep.subr.mxu0 0.0
    %3405 = vmatpush2.msra.mxu0 0.0
    %3406 = vmatprep.subr.mxu0 0.0
    %3407 = vmatpush2.msra.mxu0 0.0
    %3408 = vmatprep.subr.mxu0 0.0
    %3409 = vmatpush2.msra.mxu0 0.0
    %3410 = vmatprep.subr.mxu0 0.0
    %3411 = vmatpush2.msra.mxu0 0.0
    %3412 = vmatprep.mubr.f32.mxu0 0.0
    %v3413 = vand.u32 %v86, 4294901760
    %3414 = vmatmul.mubr.f32.gmra.mxu0 %v3413
    %v3415 = vpop.f32.mrf.mxu0
    %v3416 = vadd.f32 %v3257, %v3415
    %v3417 = vpop.f32.mrf.mxu0
    %3418 = vmatprep.mubr.f32.mxu0 0.0
    %v3419 = vand.u32 %v87, 4294901760
    %3420 = vmatmul.mubr.f32.gmra.mxu0 %v3419
    %v3421 = vpop.f32.mrf.mxu0
    %v3422 = vadd.f32 %v3265, %v3421
    %v3423 = vpop.f32.mrf.mxu0
    %3424 = vmatprep.mubr.f32.mxu0 0.0
    %v3425 = vand.u32 %v88, 4294901760
    %3426 = vmatmul.mubr.f32.gmra.mxu0 %v3425
    %v3427 = vpop.f32.mrf.mxu0
    %v3428 = vadd.f32 %v3273, %v3427
    %v3429 = vpop.f32.mrf.mxu0
    %3430 = vmatprep.mubr.f32.mxu0 0.0
    %v3431 = vand.u32 %v89, 4294901760
    %3432 = vmatmul.mubr.f32.gmra.mxu0 %v3431
    %v3433 = vpop.f32.mrf.mxu0
    %v3434 = vadd.f32 %v3281, %v3433
    %v3435 = vpop.f32.mrf.mxu0
    %3436 = vmatprep.mubr.f32.mxu0 0.0
    %v3437 = vand.u32 %v90, 4294901760
    %3438 = vmatmul.mubr.f32.gmra.mxu0 %v3437
    %v3439 = vpop.f32.mrf.mxu0
    %v3440 = vadd.f32 %v3289, %v3439
    %v3441 = vpop.f32.mrf.mxu0
    %3442 = vmatprep.mubr.f32.mxu0 0.0
    %v3443 = vand.u32 %v91, 4294901760
    %3444 = vmatmul.mubr.f32.gmra.mxu0 %v3443
    %v3445 = vpop.f32.mrf.mxu0
    %v3446 = vadd.f32 %v3297, %v3445
    %v3447 = vpop.f32.mrf.mxu0
    %3448 = vdwg.mxu0
    %3449 = vmatprep.subr.mxu0 0.0
    %v3450 = vand.u32 %v125, 4294901760
    %3451 = vmatpush1.msra.mxu0 %v3450
    %3452 = vmatprep.subr.mxu0 0.0
    %v3453 = vand.u32 %v124, 4294901760
    %3454 = vmatpush1.msra.mxu0 %v3453
    %3455 = vmatprep.subr.mxu0 0.0
    %v3456 = vand.u32 %v123, 4294901760
    %3457 = vmatpush1.msra.mxu0 %v3456
    %3458 = vmatprep.subr.mxu0 0.0
    %v3459 = vand.u32 %v122, 4294901760
    %3460 = vmatpush1.msra.mxu0 %v3459
    %3461 = vmatprep.subr.mxu0 0.0
    %v3462 = vand.u32 %v121, 4294901760
    %3463 = vmatpush1.msra.mxu0 %v3462
    %3464 = vmatprep.subr.mxu0 0.0
    %v3465 = vand.u32 %v120, 4294901760
    %3466 = vmatpush1.msra.mxu0 %v3465
    %3467 = vmatprep.subr.mxu0 0.0
    %v3468 = vand.u32 %v119, 4294901760
    %3469 = vmatpush1.msra.mxu0 %v3468
    %3470 = vmatprep.subr.mxu0 0.0
    %v3471 = vand.u32 %v118, 4294901760
    %3472 = vmatpush1.msra.mxu0 %v3471
    %3473 = vmatprep.subr.mxu0 0.0
    %v3474 = vand.u32 %v117, 4294901760
    %3475 = vmatpush1.msra.mxu0 %v3474
    %3476 = vmatprep.subr.mxu0 0.0
    %v3477 = vand.u32 %v116, 4294901760
    %3478 = vmatpush1.msra.mxu0 %v3477
    %3479 = vmatprep.subr.mxu0 0.0
    %v3480 = vand.u32 %v115, 4294901760
    %3481 = vmatpush1.msra.mxu0 %v3480
    %3482 = vmatprep.subr.mxu0 0.0
    %v3483 = vand.u32 %v114, 4294901760
    %3484 = vmatpush1.msra.mxu0 %v3483
    %3485 = vmatprep.subr.mxu0 0.0
    %v3486 = vand.u32 %v113, 4294901760
    %3487 = vmatpush1.msra.mxu0 %v3486
    %3488 = vmatprep.subr.mxu0 0.0
    %v3489 = vand.u32 %v112, 4294901760
    %3490 = vmatpush1.msra.mxu0 %v3489
    %3491 = vmatprep.subr.mxu0 0.0
    %v3492 = vand.u32 %v111, 4294901760
    %3493 = vmatpush1.msra.mxu0 %v3492
    %3494 = vmatprep.subr.mxu0 0.0
    %v3495 = vand.u32 %v110, 4294901760
    %3496 = vmatpush1.msra.mxu0 %v3495
    %3497 = vmatprep.subr.mxu0 0.0
    %3498 = vmatpush2.msra.mxu0 0.0
    %3499 = vmatprep.subr.mxu0 0.0
    %3500 = vmatpush2.msra.mxu0 0.0
    %3501 = vmatprep.subr.mxu0 0.0
    %3502 = vmatpush2.msra.mxu0 0.0
    %3503 = vmatprep.subr.mxu0 0.0
    %3504 = vmatpush2.msra.mxu0 0.0
    %3505 = vmatprep.subr.mxu0 0.0
    %3506 = vmatpush2.msra.mxu0 0.0
    %3507 = vmatprep.subr.mxu0 0.0
    %3508 = vmatpush2.msra.mxu0 0.0
    %3509 = vmatprep.subr.mxu0 0.0
    %3510 = vmatpush2.msra.mxu0 0.0
    %3511 = vmatprep.subr.mxu0 0.0
    %3512 = vmatpush2.msra.mxu0 0.0
    %3513 = vmatprep.subr.mxu0 0.0
    %3514 = vmatpush2.msra.mxu0 0.0
    %3515 = vmatprep.subr.mxu0 0.0
    %3516 = vmatpush2.msra.mxu0 0.0
    %3517 = vmatprep.subr.mxu0 0.0
    %3518 = vmatpush2.msra.mxu0 0.0
    %3519 = vmatprep.subr.mxu0 0.0
    %3520 = vmatpush2.msra.mxu0 0.0
    %3521 = vmatprep.subr.mxu0 0.0
    %3522 = vmatpush2.msra.mxu0 0.0
    %3523 = vmatprep.subr.mxu0 0.0
    %3524 = vmatpush2.msra.mxu0 0.0
    %3525 = vmatprep.subr.mxu0 0.0
    %3526 = vmatpush2.msra.mxu0 0.0
    %3527 = vmatprep.subr.mxu0 0.0
    %3528 = vmatpush2.msra.mxu0 0.0
    %3529 = vmatprep.mubr.f32.mxu0 0.0
    %v3530 = vand.u32 %v86, 4294901760
    %3531 = vmatmul.mubr.f32.gmra.mxu0 %v3530
    %v3532 = vpop.f32.mrf.mxu0
    %v3533 = vadd.f32 %v3416, %v3532
    %v3534 = vpop.f32.mrf.mxu0
    %3535 = vmatprep.mubr.f32.mxu0 0.0
    %v3536 = vand.u32 %v87, 4294901760
    %3537 = vmatmul.mubr.f32.gmra.mxu0 %v3536
    %v3538 = vpop.f32.mrf.mxu0
    %v3539 = vadd.f32 %v3422, %v3538
    %v3540 = vpop.f32.mrf.mxu0
    %3541 = vmatprep.mubr.f32.mxu0 0.0
    %v3542 = vand.u32 %v88, 4294901760
    %3543 = vmatmul.mubr.f32.gmra.mxu0 %v3542
    %v3544 = vpop.f32.mrf.mxu0
    %v3545 = vadd.f32 %v3428, %v3544
    %v3546 = vpop.f32.mrf.mxu0
    %3547 = vmatprep.mubr.f32.mxu0 0.0
    %v3548 = vand.u32 %v89, 4294901760
    %3549 = vmatmul.mubr.f32.gmra.mxu0 %v3548
    %v3550 = vpop.f32.mrf.mxu0
    %v3551 = vadd.f32 %v3434, %v3550
    %v3552 = vpop.f32.mrf.mxu0
    %3553 = vmatprep.mubr.f32.mxu0 0.0
    %v3554 = vand.u32 %v90, 4294901760
    %3555 = vmatmul.mubr.f32.gmra.mxu0 %v3554
    %v3556 = vpop.f32.mrf.mxu0
    %v3557 = vadd.f32 %v3440, %v3556
    %v3558 = vpop.f32.mrf.mxu0
    %3559 = vmatprep.mubr.f32.mxu0 0.0
    %v3560 = vand.u32 %v91, 4294901760
    %3561 = vmatmul.mubr.f32.gmra.mxu0 %v3560
    %v3562 = vpop.f32.mrf.mxu0
    %v3563 = vadd.f32 %v3446, %v3562
    %v3564 = vpop.f32.mrf.mxu0
    %3565 = vdwg.mxu0
    %3566 = vmatprep.subr.mxu0 0.0
    %v3567 = vand.u32 %v141, 4294901760
    %3568 = vmatpush1.msra.mxu0 %v3567
    %3569 = vmatprep.subr.mxu0 0.0
    %v3570 = vand.u32 %v140, 4294901760
    %3571 = vmatpush1.msra.mxu0 %v3570
    %3572 = vmatprep.subr.mxu0 0.0
    %v3573 = vand.u32 %v139, 4294901760
    %3574 = vmatpush1.msra.mxu0 %v3573
    %3575 = vmatprep.subr.mxu0 0.0
    %v3576 = vand.u32 %v138, 4294901760
    %3577 = vmatpush1.msra.mxu0 %v3576
    %3578 = vmatprep.subr.mxu0 0.0
    %v3579 = vand.u32 %v137, 4294901760
    %3580 = vmatpush1.msra.mxu0 %v3579
    %3581 = vmatprep.subr.mxu0 0.0
    %v3582 = vand.u32 %v136, 4294901760
    %3583 = vmatpush1.msra.mxu0 %v3582
    %3584 = vmatprep.subr.mxu0 0.0
    %v3585 = vand.u32 %v135, 4294901760
    %3586 = vmatpush1.msra.mxu0 %v3585
    %3587 = vmatprep.subr.mxu0 0.0
    %v3588 = vand.u32 %v134, 4294901760
    %3589 = vmatpush1.msra.mxu0 %v3588
    %3590 = vmatprep.subr.mxu0 0.0
    %v3591 = vand.u32 %v133, 4294901760
    %3592 = vmatpush1.msra.mxu0 %v3591
    %3593 = vmatprep.subr.mxu0 0.0
    %v3594 = vand.u32 %v132, 4294901760
    %3595 = vmatpush1.msra.mxu0 %v3594
    %3596 = vmatprep.subr.mxu0 0.0
    %v3597 = vand.u32 %v131, 4294901760
    %3598 = vmatpush1.msra.mxu0 %v3597
    %3599 = vmatprep.subr.mxu0 0.0
    %v3600 = vand.u32 %v130, 4294901760
    %3601 = vmatpush1.msra.mxu0 %v3600
    %3602 = vmatprep.subr.mxu0 0.0
    %v3603 = vand.u32 %v129, 4294901760
    %3604 = vmatpush1.msra.mxu0 %v3603
    %3605 = vmatprep.subr.mxu0 0.0
    %v3606 = vand.u32 %v128, 4294901760
    %3607 = vmatpush1.msra.mxu0 %v3606
    %3608 = vmatprep.subr.mxu0 0.0
    %v3609 = vand.u32 %v127, 4294901760
    %3610 = vmatpush1.msra.mxu0 %v3609
    %3611 = vmatprep.subr.mxu0 0.0
    %v3612 = vand.u32 %v126, 4294901760
    %3613 = vmatpush1.msra.mxu0 %v3612
    %3614 = vmatprep.subr.mxu0 0.0
    %3615 = vmatpush2.msra.mxu0 0.0
    %3616 = vmatprep.subr.mxu0 0.0
    %3617 = vmatpush2.msra.mxu0 0.0
    %3618 = vmatprep.subr.mxu0 0.0
    %3619 = vmatpush2.msra.mxu0 0.0
    %3620 = vmatprep.subr.mxu0 0.0
    %3621 = vmatpush2.msra.mxu0 0.0
    %3622 = vmatprep.subr.mxu0 0.0
    %3623 = vmatpush2.msra.mxu0 0.0
    %3624 = vmatprep.subr.mxu0 0.0
    %3625 = vmatpush2.msra.mxu0 0.0
    %3626 = vmatprep.subr.mxu0 0.0
    %3627 = vmatpush2.msra.mxu0 0.0
    %3628 = vmatprep.subr.mxu0 0.0
    %3629 = vmatpush2.msra.mxu0 0.0
    %3630 = vmatprep.subr.mxu0 0.0
    %3631 = vmatpush2.msra.mxu0 0.0
    %3632 = vmatprep.subr.mxu0 0.0
    %3633 = vmatpush2.msra.mxu0 0.0
    %3634 = vmatprep.subr.mxu0 0.0
    %3635 = vmatpush2.msra.mxu0 0.0
    %3636 = vmatprep.subr.mxu0 0.0
    %3637 = vmatpush2.msra.mxu0 0.0
    %3638 = vmatprep.subr.mxu0 0.0
    %3639 = vmatpush2.msra.mxu0 0.0
    %3640 = vmatprep.subr.mxu0 0.0
    %3641 = vmatpush2.msra.mxu0 0.0
    %3642 = vmatprep.subr.mxu0 0.0
    %3643 = vmatpush2.msra.mxu0 0.0
    %3644 = vmatprep.subr.mxu0 0.0
    %3645 = vmatpush2.msra.mxu0 0.0
    %3646 = vmatprep.mubr.f32.mxu0 0.0
    %v3647 = vand.u32 %v86, 4294901760
    %v3648 = vsub.f32 %v86, %v3647
    %v3649 = vand.u32 %v3648, 4294901760
    %v3650 = vsub.f32 %v3648, %v3649
    %v3651 = vand.u32 %v3650, 4294901760
    %3652 = vmatmul.mubr.f32.gmra.mxu0 %v3651
    %v3653 = vpop.f32.mrf.mxu0
    %v3654 = vadd.f32 0.0, %v3653
    %v3655 = vpop.f32.mrf.mxu0
    %3656 = vmatprep.mubr.f32.mxu0 0.0
    %v3657 = vand.u32 %v87, 4294901760
    %v3658 = vsub.f32 %v87, %v3657
    %v3659 = vand.u32 %v3658, 4294901760
    %v3660 = vsub.f32 %v3658, %v3659
    %v3661 = vand.u32 %v3660, 4294901760
    %3662 = vmatmul.mubr.f32.gmra.mxu0 %v3661
    %v3663 = vpop.f32.mrf.mxu0
    %v3664 = vadd.f32 0.0, %v3663
    %v3665 = vpop.f32.mrf.mxu0
    %3666 = vmatprep.mubr.f32.mxu0 0.0
    %v3667 = vand.u32 %v88, 4294901760
    %v3668 = vsub.f32 %v88, %v3667
    %v3669 = vand.u32 %v3668, 4294901760
    %v3670 = vsub.f32 %v3668, %v3669
    %v3671 = vand.u32 %v3670, 4294901760
    %3672 = vmatmul.mubr.f32.gmra.mxu0 %v3671
    %v3673 = vpop.f32.mrf.mxu0
    %v3674 = vadd.f32 0.0, %v3673
    %v3675 = vpop.f32.mrf.mxu0
    %3676 = vmatprep.mubr.f32.mxu0 0.0
    %v3677 = vand.u32 %v89, 4294901760
    %v3678 = vsub.f32 %v89, %v3677
    %v3679 = vand.u32 %v3678, 4294901760
    %v3680 = vsub.f32 %v3678, %v3679
    %v3681 = vand.u32 %v3680, 4294901760
    %3682 = vmatmul.mubr.f32.gmra.mxu0 %v3681
    %v3683 = vpop.f32.mrf.mxu0
    %v3684 = vadd.f32 0.0, %v3683
    %v3685 = vpop.f32.mrf.mxu0
    %3686 = vmatprep.mubr.f32.mxu0 0.0
    %v3687 = vand.u32 %v90, 4294901760
    %v3688 = vsub.f32 %v90, %v3687
    %v3689 = vand.u32 %v3688, 4294901760
    %v3690 = vsub.f32 %v3688, %v3689
    %v3691 = vand.u32 %v3690, 4294901760
    %3692 = vmatmul.mubr.f32.gmra.mxu0 %v3691
    %v3693 = vpop.f32.mrf.mxu0
    %v3694 = vadd.f32 0.0, %v3693
    %v3695 = vpop.f32.mrf.mxu0
    %3696 = vmatprep.mubr.f32.mxu0 0.0
    %v3697 = vand.u32 %v91, 4294901760
    %v3698 = vsub.f32 %v91, %v3697
    %v3699 = vand.u32 %v3698, 4294901760
    %v3700 = vsub.f32 %v3698, %v3699
    %v3701 = vand.u32 %v3700, 4294901760
    %3702 = vmatmul.mubr.f32.gmra.mxu0 %v3701
    %v3703 = vpop.f32.mrf.mxu0
    %v3704 = vadd.f32 0.0, %v3703
    %v3705 = vpop.f32.mrf.mxu0
    %3706 = vdwg.mxu0
    %3707 = vmatprep.subr.mxu0 0.0
    %v3708 = vand.u32 %v141, 4294901760
    %v3709 = vsub.f32 %v141, %v3708
    %v3710 = vand.u32 %v3709, 4294901760
    %v3711 = vsub.f32 %v3709, %v3710
    %v3712 = vand.u32 %v3711, 4294901760
    %3713 = vmatpush1.msra.mxu0 %v3712
    %3714 = vmatprep.subr.mxu0 0.0
    %v3715 = vand.u32 %v140, 4294901760
    %v3716 = vsub.f32 %v140, %v3715
    %v3717 = vand.u32 %v3716, 4294901760
    %v3718 = vsub.f32 %v3716, %v3717
    %v3719 = vand.u32 %v3718, 4294901760
    %3720 = vmatpush1.msra.mxu0 %v3719
    %3721 = vmatprep.subr.mxu0 0.0
    %v3722 = vand.u32 %v139, 4294901760
    %v3723 = vsub.f32 %v139, %v3722
    %v3724 = vand.u32 %v3723, 4294901760
    %v3725 = vsub.f32 %v3723, %v3724
    %v3726 = vand.u32 %v3725, 4294901760
    %3727 = vmatpush1.msra.mxu0 %v3726
    %3728 = vmatprep.subr.mxu0 0.0
    %v3729 = vand.u32 %v138, 4294901760
    %v3730 = vsub.f32 %v138, %v3729
    %v3731 = vand.u32 %v3730, 4294901760
    %v3732 = vsub.f32 %v3730, %v3731
    %v3733 = vand.u32 %v3732, 4294901760
    %3734 = vmatpush1.msra.mxu0 %v3733
    %3735 = vmatprep.subr.mxu0 0.0
    %v3736 = vand.u32 %v137, 4294901760
    %v3737 = vsub.f32 %v137, %v3736
    %v3738 = vand.u32 %v3737, 4294901760
    %v3739 = vsub.f32 %v3737, %v3738
    %v3740 = vand.u32 %v3739, 4294901760
    %3741 = vmatpush1.msra.mxu0 %v3740
    %3742 = vmatprep.subr.mxu0 0.0
    %v3743 = vand.u32 %v136, 4294901760
    %v3744 = vsub.f32 %v136, %v3743
    %v3745 = vand.u32 %v3744, 4294901760
    %v3746 = vsub.f32 %v3744, %v3745
    %v3747 = vand.u32 %v3746, 4294901760
    %3748 = vmatpush1.msra.mxu0 %v3747
    %3749 = vmatprep.subr.mxu0 0.0
    %v3750 = vand.u32 %v135, 4294901760
    %v3751 = vsub.f32 %v135, %v3750
    %v3752 = vand.u32 %v3751, 4294901760
    %v3753 = vsub.f32 %v3751, %v3752
    %v3754 = vand.u32 %v3753, 4294901760
    %3755 = vmatpush1.msra.mxu0 %v3754
    %3756 = vmatprep.subr.mxu0 0.0
    %v3757 = vand.u32 %v134, 4294901760
    %v3758 = vsub.f32 %v134, %v3757
    %v3759 = vand.u32 %v3758, 4294901760
    %v3760 = vsub.f32 %v3758, %v3759
    %v3761 = vand.u32 %v3760, 4294901760
    %3762 = vmatpush1.msra.mxu0 %v3761
    %3763 = vmatprep.subr.mxu0 0.0
    %v3764 = vand.u32 %v133, 4294901760
    %v3765 = vsub.f32 %v133, %v3764
    %v3766 = vand.u32 %v3765, 4294901760
    %v3767 = vsub.f32 %v3765, %v3766
    %v3768 = vand.u32 %v3767, 4294901760
    %3769 = vmatpush1.msra.mxu0 %v3768
    %3770 = vmatprep.subr.mxu0 0.0
    %v3771 = vand.u32 %v132, 4294901760
    %v3772 = vsub.f32 %v132, %v3771
    %v3773 = vand.u32 %v3772, 4294901760
    %v3774 = vsub.f32 %v3772, %v3773
    %v3775 = vand.u32 %v3774, 4294901760
    %3776 = vmatpush1.msra.mxu0 %v3775
    %3777 = vmatprep.subr.mxu0 0.0
    %v3778 = vand.u32 %v131, 4294901760
    %v3779 = vsub.f32 %v131, %v3778
    %v3780 = vand.u32 %v3779, 4294901760
    %v3781 = vsub.f32 %v3779, %v3780
    %v3782 = vand.u32 %v3781, 4294901760
    %3783 = vmatpush1.msra.mxu0 %v3782
    %3784 = vmatprep.subr.mxu0 0.0
    %v3785 = vand.u32 %v130, 4294901760
    %v3786 = vsub.f32 %v130, %v3785
    %v3787 = vand.u32 %v3786, 4294901760
    %v3788 = vsub.f32 %v3786, %v3787
    %v3789 = vand.u32 %v3788, 4294901760
    %3790 = vmatpush1.msra.mxu0 %v3789
    %3791 = vmatprep.subr.mxu0 0.0
    %v3792 = vand.u32 %v129, 4294901760
    %v3793 = vsub.f32 %v129, %v3792
    %v3794 = vand.u32 %v3793, 4294901760
    %v3795 = vsub.f32 %v3793, %v3794
    %v3796 = vand.u32 %v3795, 4294901760
    %3797 = vmatpush1.msra.mxu0 %v3796
    %3798 = vmatprep.subr.mxu0 0.0
    %v3799 = vand.u32 %v128, 4294901760
    %v3800 = vsub.f32 %v128, %v3799
    %v3801 = vand.u32 %v3800, 4294901760
    %v3802 = vsub.f32 %v3800, %v3801
    %v3803 = vand.u32 %v3802, 4294901760
    %3804 = vmatpush1.msra.mxu0 %v3803
    %3805 = vmatprep.subr.mxu0 0.0
    %v3806 = vand.u32 %v127, 4294901760
    %v3807 = vsub.f32 %v127, %v3806
    %v3808 = vand.u32 %v3807, 4294901760
    %v3809 = vsub.f32 %v3807, %v3808
    %v3810 = vand.u32 %v3809, 4294901760
    %3811 = vmatpush1.msra.mxu0 %v3810
    %3812 = vmatprep.subr.mxu0 0.0
    %v3813 = vand.u32 %v126, 4294901760
    %v3814 = vsub.f32 %v126, %v3813
    %v3815 = vand.u32 %v3814, 4294901760
    %v3816 = vsub.f32 %v3814, %v3815
    %v3817 = vand.u32 %v3816, 4294901760
    %3818 = vmatpush1.msra.mxu0 %v3817
    %3819 = vmatprep.subr.mxu0 0.0
    %3820 = vmatpush2.msra.mxu0 0.0
    %3821 = vmatprep.subr.mxu0 0.0
    %3822 = vmatpush2.msra.mxu0 0.0
    %3823 = vmatprep.subr.mxu0 0.0
    %3824 = vmatpush2.msra.mxu0 0.0
    %3825 = vmatprep.subr.mxu0 0.0
    %3826 = vmatpush2.msra.mxu0 0.0
    %3827 = vmatprep.subr.mxu0 0.0
    %3828 = vmatpush2.msra.mxu0 0.0
    %3829 = vmatprep.subr.mxu0 0.0
    %3830 = vmatpush2.msra.mxu0 0.0
    %3831 = vmatprep.subr.mxu0 0.0
    %3832 = vmatpush2.msra.mxu0 0.0
    %3833 = vmatprep.subr.mxu0 0.0
    %3834 = vmatpush2.msra.mxu0 0.0
    %3835 = vmatprep.subr.mxu0 0.0
    %3836 = vmatpush2.msra.mxu0 0.0
    %3837 = vmatprep.subr.mxu0 0.0
    %3838 = vmatpush2.msra.mxu0 0.0
    %3839 = vmatprep.subr.mxu0 0.0
    %3840 = vmatpush2.msra.mxu0 0.0
    %3841 = vmatprep.subr.mxu0 0.0
    %3842 = vmatpush2.msra.mxu0 0.0
    %3843 = vmatprep.subr.mxu0 0.0
    %3844 = vmatpush2.msra.mxu0 0.0
    %3845 = vmatprep.subr.mxu0 0.0
    %3846 = vmatpush2.msra.mxu0 0.0
    %3847 = vmatprep.subr.mxu0 0.0
    %3848 = vmatpush2.msra.mxu0 0.0
    %3849 = vmatprep.subr.mxu0 0.0
    %3850 = vmatpush2.msra.mxu0 0.0
    %3851 = vmatprep.mubr.f32.mxu0 0.0
    %v3852 = vand.u32 %v86, 4294901760
    %3853 = vmatmul.mubr.f32.gmra.mxu0 %v3852
    %v3854 = vpop.f32.mrf.mxu0
    %v3855 = vadd.f32 %v3654, %v3854
    %v3856 = vpop.f32.mrf.mxu0
    %3857 = vmatprep.mubr.f32.mxu0 0.0
    %v3858 = vand.u32 %v87, 4294901760
    %3859 = vmatmul.mubr.f32.gmra.mxu0 %v3858
    %v3860 = vpop.f32.mrf.mxu0
    %v3861 = vadd.f32 %v3664, %v3860
    %v3862 = vpop.f32.mrf.mxu0
    %3863 = vmatprep.mubr.f32.mxu0 0.0
    %v3864 = vand.u32 %v88, 4294901760
    %3865 = vmatmul.mubr.f32.gmra.mxu0 %v3864
    %v3866 = vpop.f32.mrf.mxu0
    %v3867 = vadd.f32 %v3674, %v3866
    %v3868 = vpop.f32.mrf.mxu0
    %3869 = vmatprep.mubr.f32.mxu0 0.0
    %v3870 = vand.u32 %v89, 4294901760
    %3871 = vmatmul.mubr.f32.gmra.mxu0 %v3870
    %v3872 = vpop.f32.mrf.mxu0
    %v3873 = vadd.f32 %v3684, %v3872
    %v3874 = vpop.f32.mrf.mxu0
    %3875 = vmatprep.mubr.f32.mxu0 0.0
    %v3876 = vand.u32 %v90, 4294901760
    %3877 = vmatmul.mubr.f32.gmra.mxu0 %v3876
    %v3878 = vpop.f32.mrf.mxu0
    %v3879 = vadd.f32 %v3694, %v3878
    %v3880 = vpop.f32.mrf.mxu0
    %3881 = vmatprep.mubr.f32.mxu0 0.0
    %v3882 = vand.u32 %v91, 4294901760
    %3883 = vmatmul.mubr.f32.gmra.mxu0 %v3882
    %v3884 = vpop.f32.mrf.mxu0
    %v3885 = vadd.f32 %v3704, %v3884
    %v3886 = vpop.f32.mrf.mxu0
    %3887 = vdwg.mxu0
    %3888 = vmatprep.subr.mxu0 0.0
    %v3889 = vand.u32 %v141, 4294901760
    %v3890 = vsub.f32 %v141, %v3889
    %3891 = vmatpush1.msra.mxu0 %v3890
    %3892 = vmatprep.subr.mxu0 0.0
    %v3893 = vand.u32 %v140, 4294901760
    %v3894 = vsub.f32 %v140, %v3893
    %3895 = vmatpush1.msra.mxu0 %v3894
    %3896 = vmatprep.subr.mxu0 0.0
    %v3897 = vand.u32 %v139, 4294901760
    %v3898 = vsub.f32 %v139, %v3897
    %3899 = vmatpush1.msra.mxu0 %v3898
    %3900 = vmatprep.subr.mxu0 0.0
    %v3901 = vand.u32 %v138, 4294901760
    %v3902 = vsub.f32 %v138, %v3901
    %3903 = vmatpush1.msra.mxu0 %v3902
    %3904 = vmatprep.subr.mxu0 0.0
    %v3905 = vand.u32 %v137, 4294901760
    %v3906 = vsub.f32 %v137, %v3905
    %3907 = vmatpush1.msra.mxu0 %v3906
    %3908 = vmatprep.subr.mxu0 0.0
    %v3909 = vand.u32 %v136, 4294901760
    %v3910 = vsub.f32 %v136, %v3909
    %3911 = vmatpush1.msra.mxu0 %v3910
    %3912 = vmatprep.subr.mxu0 0.0
    %v3913 = vand.u32 %v135, 4294901760
    %v3914 = vsub.f32 %v135, %v3913
    %3915 = vmatpush1.msra.mxu0 %v3914
    %3916 = vmatprep.subr.mxu0 0.0
    %v3917 = vand.u32 %v134, 4294901760
    %v3918 = vsub.f32 %v134, %v3917
    %3919 = vmatpush1.msra.mxu0 %v3918
    %3920 = vmatprep.subr.mxu0 0.0
    %v3921 = vand.u32 %v133, 4294901760
    %v3922 = vsub.f32 %v133, %v3921
    %3923 = vmatpush1.msra.mxu0 %v3922
    %3924 = vmatprep.subr.mxu0 0.0
    %v3925 = vand.u32 %v132, 4294901760
    %v3926 = vsub.f32 %v132, %v3925
    %3927 = vmatpush1.msra.mxu0 %v3926
    %3928 = vmatprep.subr.mxu0 0.0
    %v3929 = vand.u32 %v131, 4294901760
    %v3930 = vsub.f32 %v131, %v3929
    %3931 = vmatpush1.msra.mxu0 %v3930
    %3932 = vmatprep.subr.mxu0 0.0
    %v3933 = vand.u32 %v130, 4294901760
    %v3934 = vsub.f32 %v130, %v3933
    %3935 = vmatpush1.msra.mxu0 %v3934
    %3936 = vmatprep.subr.mxu0 0.0
    %v3937 = vand.u32 %v129, 4294901760
    %v3938 = vsub.f32 %v129, %v3937
    %3939 = vmatpush1.msra.mxu0 %v3938
    %3940 = vmatprep.subr.mxu0 0.0
    %v3941 = vand.u32 %v128, 4294901760
    %v3942 = vsub.f32 %v128, %v3941
    %3943 = vmatpush1.msra.mxu0 %v3942
    %3944 = vmatprep.subr.mxu0 0.0
    %v3945 = vand.u32 %v127, 4294901760
    %v3946 = vsub.f32 %v127, %v3945
    %3947 = vmatpush1.msra.mxu0 %v3946
    %3948 = vmatprep.subr.mxu0 0.0
    %v3949 = vand.u32 %v126, 4294901760
    %v3950 = vsub.f32 %v126, %v3949
    %3951 = vmatpush1.msra.mxu0 %v3950
    %3952 = vmatprep.subr.mxu0 0.0
    %3953 = vmatpush2.msra.mxu0 0.0
    %3954 = vmatprep.subr.mxu0 0.0
    %3955 = vmatpush2.msra.mxu0 0.0
    %3956 = vmatprep.subr.mxu0 0.0
    %3957 = vmatpush2.msra.mxu0 0.0
    %3958 = vmatprep.subr.mxu0 0.0
    %3959 = vmatpush2.msra.mxu0 0.0
    %3960 = vmatprep.subr.mxu0 0.0
    %3961 = vmatpush2.msra.mxu0 0.0
    %3962 = vmatprep.subr.mxu0 0.0
    %3963 = vmatpush2.msra.mxu0 0.0
    %3964 = vmatprep.subr.mxu0 0.0
    %3965 = vmatpush2.msra.mxu0 0.0
    %3966 = vmatprep.subr.mxu0 0.0
    %3967 = vmatpush2.msra.mxu0 0.0
    %3968 = vmatprep.subr.mxu0 0.0
    %3969 = vmatpush2.msra.mxu0 0.0
    %3970 = vmatprep.subr.mxu0 0.0
    %3971 = vmatpush2.msra.mxu0 0.0
    %3972 = vmatprep.subr.mxu0 0.0
    %3973 = vmatpush2.msra.mxu0 0.0
    %3974 = vmatprep.subr.mxu0 0.0
    %3975 = vmatpush2.msra.mxu0 0.0
    %3976 = vmatprep.subr.mxu0 0.0
    %3977 = vmatpush2.msra.mxu0 0.0
    %3978 = vmatprep.subr.mxu0 0.0
    %3979 = vmatpush2.msra.mxu0 0.0
    %3980 = vmatprep.subr.mxu0 0.0
    %3981 = vmatpush2.msra.mxu0 0.0
    %3982 = vmatprep.subr.mxu0 0.0
    %3983 = vmatpush2.msra.mxu0 0.0
    %3984 = vmatprep.mubr.f32.mxu0 0.0
    %v3985 = vand.u32 %v86, 4294901760
    %v3986 = vsub.f32 %v86, %v3985
    %3987 = vmatmul.mubr.f32.gmra.mxu0 %v3986
    %v3988 = vpop.f32.mrf.mxu0
    %v3989 = vadd.f32 %v3855, %v3988
    %v3990 = vpop.f32.mrf.mxu0
    %3991 = vmatprep.mubr.f32.mxu0 0.0
    %v3992 = vand.u32 %v87, 4294901760
    %v3993 = vsub.f32 %v87, %v3992
    %3994 = vmatmul.mubr.f32.gmra.mxu0 %v3993
    %v3995 = vpop.f32.mrf.mxu0
    %v3996 = vadd.f32 %v3861, %v3995
    %v3997 = vpop.f32.mrf.mxu0
    %3998 = vmatprep.mubr.f32.mxu0 0.0
    %v3999 = vand.u32 %v88, 4294901760
    %v4000 = vsub.f32 %v88, %v3999
    %4001 = vmatmul.mubr.f32.gmra.mxu0 %v4000
    %v4002 = vpop.f32.mrf.mxu0
    %v4003 = vadd.f32 %v3867, %v4002
    %v4004 = vpop.f32.mrf.mxu0
    %4005 = vmatprep.mubr.f32.mxu0 0.0
    %v4006 = vand.u32 %v89, 4294901760
    %v4007 = vsub.f32 %v89, %v4006
    %4008 = vmatmul.mubr.f32.gmra.mxu0 %v4007
    %v4009 = vpop.f32.mrf.mxu0
    %v4010 = vadd.f32 %v3873, %v4009
    %v4011 = vpop.f32.mrf.mxu0
    %4012 = vmatprep.mubr.f32.mxu0 0.0
    %v4013 = vand.u32 %v90, 4294901760
    %v4014 = vsub.f32 %v90, %v4013
    %4015 = vmatmul.mubr.f32.gmra.mxu0 %v4014
    %v4016 = vpop.f32.mrf.mxu0
    %v4017 = vadd.f32 %v3879, %v4016
    %v4018 = vpop.f32.mrf.mxu0
    %4019 = vmatprep.mubr.f32.mxu0 0.0
    %v4020 = vand.u32 %v91, 4294901760
    %v4021 = vsub.f32 %v91, %v4020
    %4022 = vmatmul.mubr.f32.gmra.mxu0 %v4021
    %v4023 = vpop.f32.mrf.mxu0
    %v4024 = vadd.f32 %v3885, %v4023
    %v4025 = vpop.f32.mrf.mxu0
    %4026 = vdwg.mxu0
    %4027 = vmatprep.subr.mxu0 0.0
    %v4028 = vand.u32 %v141, 4294901760
    %4029 = vmatpush1.msra.mxu0 %v4028
    %4030 = vmatprep.subr.mxu0 0.0
    %v4031 = vand.u32 %v140, 4294901760
    %4032 = vmatpush1.msra.mxu0 %v4031
    %4033 = vmatprep.subr.mxu0 0.0
    %v4034 = vand.u32 %v139, 4294901760
    %4035 = vmatpush1.msra.mxu0 %v4034
    %4036 = vmatprep.subr.mxu0 0.0
    %v4037 = vand.u32 %v138, 4294901760
    %4038 = vmatpush1.msra.mxu0 %v4037
    %4039 = vmatprep.subr.mxu0 0.0
    %v4040 = vand.u32 %v137, 4294901760
    %4041 = vmatpush1.msra.mxu0 %v4040
    %4042 = vmatprep.subr.mxu0 0.0
    %v4043 = vand.u32 %v136, 4294901760
    %4044 = vmatpush1.msra.mxu0 %v4043
    %4045 = vmatprep.subr.mxu0 0.0
    %v4046 = vand.u32 %v135, 4294901760
    %4047 = vmatpush1.msra.mxu0 %v4046
    %4048 = vmatprep.subr.mxu0 0.0
    %v4049 = vand.u32 %v134, 4294901760
    %4050 = vmatpush1.msra.mxu0 %v4049
    %4051 = vmatprep.subr.mxu0 0.0
    %v4052 = vand.u32 %v133, 4294901760
    %4053 = vmatpush1.msra.mxu0 %v4052
    %4054 = vmatprep.subr.mxu0 0.0
    %v4055 = vand.u32 %v132, 4294901760
    %4056 = vmatpush1.msra.mxu0 %v4055
    %4057 = vmatprep.subr.mxu0 0.0
    %v4058 = vand.u32 %v131, 4294901760
    %4059 = vmatpush1.msra.mxu0 %v4058
    %4060 = vmatprep.subr.mxu0 0.0
    %v4061 = vand.u32 %v130, 4294901760
    %4062 = vmatpush1.msra.mxu0 %v4061
    %4063 = vmatprep.subr.mxu0 0.0
    %v4064 = vand.u32 %v129, 4294901760
    %4065 = vmatpush1.msra.mxu0 %v4064
    %4066 = vmatprep.subr.mxu0 0.0
    %v4067 = vand.u32 %v128, 4294901760
    %4068 = vmatpush1.msra.mxu0 %v4067
    %4069 = vmatprep.subr.mxu0 0.0
    %v4070 = vand.u32 %v127, 4294901760
    %4071 = vmatpush1.msra.mxu0 %v4070
    %4072 = vmatprep.subr.mxu0 0.0
    %v4073 = vand.u32 %v126, 4294901760
    %4074 = vmatpush1.msra.mxu0 %v4073
    %4075 = vmatprep.subr.mxu0 0.0
    %4076 = vmatpush2.msra.mxu0 0.0
    %4077 = vmatprep.subr.mxu0 0.0
    %4078 = vmatpush2.msra.mxu0 0.0
    %4079 = vmatprep.subr.mxu0 0.0
    %4080 = vmatpush2.msra.mxu0 0.0
    %4081 = vmatprep.subr.mxu0 0.0
    %4082 = vmatpush2.msra.mxu0 0.0
    %4083 = vmatprep.subr.mxu0 0.0
    %4084 = vmatpush2.msra.mxu0 0.0
    %4085 = vmatprep.subr.mxu0 0.0
    %4086 = vmatpush2.msra.mxu0 0.0
    %4087 = vmatprep.subr.mxu0 0.0
    %4088 = vmatpush2.msra.mxu0 0.0
    %4089 = vmatprep.subr.mxu0 0.0
    %4090 = vmatpush2.msra.mxu0 0.0
    %4091 = vmatprep.subr.mxu0 0.0
    %4092 = vmatpush2.msra.mxu0 0.0
    %4093 = vmatprep.subr.mxu0 0.0
    %4094 = vmatpush2.msra.mxu0 0.0
    %4095 = vmatprep.subr.mxu0 0.0
    %4096 = vmatpush2.msra.mxu0 0.0
    %4097 = vmatprep.subr.mxu0 0.0
    %4098 = vmatpush2.msra.mxu0 0.0
    %4099 = vmatprep.subr.mxu0 0.0
    %4100 = vmatpush2.msra.mxu0 0.0
    %4101 = vmatprep.subr.mxu0 0.0
    %4102 = vmatpush2.msra.mxu0 0.0
    %4103 = vmatprep.subr.mxu0 0.0
    %4104 = vmatpush2.msra.mxu0 0.0
    %4105 = vmatprep.subr.mxu0 0.0
    %4106 = vmatpush2.msra.mxu0 0.0
    %4107 = vmatprep.mubr.f32.mxu0 0.0
    %v4108 = vand.u32 %v86, 4294901760
    %v4109 = vsub.f32 %v86, %v4108
    %v4110 = vand.u32 %v4109, 4294901760
    %4111 = vmatmul.mubr.f32.gmra.mxu0 %v4110
    %v4112 = vpop.f32.mrf.mxu0
    %v4113 = vadd.f32 %v3989, %v4112
    %v4114 = vpop.f32.mrf.mxu0
    %4115 = vmatprep.mubr.f32.mxu0 0.0
    %v4116 = vand.u32 %v87, 4294901760
    %v4117 = vsub.f32 %v87, %v4116
    %v4118 = vand.u32 %v4117, 4294901760
    %4119 = vmatmul.mubr.f32.gmra.mxu0 %v4118
    %v4120 = vpop.f32.mrf.mxu0
    %v4121 = vadd.f32 %v3996, %v4120
    %v4122 = vpop.f32.mrf.mxu0
    %4123 = vmatprep.mubr.f32.mxu0 0.0
    %v4124 = vand.u32 %v88, 4294901760
    %v4125 = vsub.f32 %v88, %v4124
    %v4126 = vand.u32 %v4125, 4294901760
    %4127 = vmatmul.mubr.f32.gmra.mxu0 %v4126
    %v4128 = vpop.f32.mrf.mxu0
    %v4129 = vadd.f32 %v4003, %v4128
    %v4130 = vpop.f32.mrf.mxu0
    %4131 = vmatprep.mubr.f32.mxu0 0.0
    %v4132 = vand.u32 %v89, 4294901760
    %v4133 = vsub.f32 %v89, %v4132
    %v4134 = vand.u32 %v4133, 4294901760
    %4135 = vmatmul.mubr.f32.gmra.mxu0 %v4134
    %v4136 = vpop.f32.mrf.mxu0
    %v4137 = vadd.f32 %v4010, %v4136
    %v4138 = vpop.f32.mrf.mxu0
    %4139 = vmatprep.mubr.f32.mxu0 0.0
    %v4140 = vand.u32 %v90, 4294901760
    %v4141 = vsub.f32 %v90, %v4140
    %v4142 = vand.u32 %v4141, 4294901760
    %4143 = vmatmul.mubr.f32.gmra.mxu0 %v4142
    %v4144 = vpop.f32.mrf.mxu0
    %v4145 = vadd.f32 %v4017, %v4144
    %v4146 = vpop.f32.mrf.mxu0
    %4147 = vmatprep.mubr.f32.mxu0 0.0
    %v4148 = vand.u32 %v91, 4294901760
    %v4149 = vsub.f32 %v91, %v4148
    %v4150 = vand.u32 %v4149, 4294901760
    %4151 = vmatmul.mubr.f32.gmra.mxu0 %v4150
    %v4152 = vpop.f32.mrf.mxu0
    %v4153 = vadd.f32 %v4024, %v4152
    %v4154 = vpop.f32.mrf.mxu0
    %4155 = vdwg.mxu0
    %4156 = vmatprep.subr.mxu0 0.0
    %v4157 = vand.u32 %v141, 4294901760
    %v4158 = vsub.f32 %v141, %v4157
    %v4159 = vand.u32 %v4158, 4294901760
    %4160 = vmatpush1.msra.mxu0 %v4159
    %4161 = vmatprep.subr.mxu0 0.0
    %v4162 = vand.u32 %v140, 4294901760
    %v4163 = vsub.f32 %v140, %v4162
    %v4164 = vand.u32 %v4163, 4294901760
    %4165 = vmatpush1.msra.mxu0 %v4164
    %4166 = vmatprep.subr.mxu0 0.0
    %v4167 = vand.u32 %v139, 4294901760
    %v4168 = vsub.f32 %v139, %v4167
    %v4169 = vand.u32 %v4168, 4294901760
    %4170 = vmatpush1.msra.mxu0 %v4169
    %4171 = vmatprep.subr.mxu0 0.0
    %v4172 = vand.u32 %v138, 4294901760
    %v4173 = vsub.f32 %v138, %v4172
    %v4174 = vand.u32 %v4173, 4294901760
    %4175 = vmatpush1.msra.mxu0 %v4174
    %4176 = vmatprep.subr.mxu0 0.0
    %v4177 = vand.u32 %v137, 4294901760
    %v4178 = vsub.f32 %v137, %v4177
    %v4179 = vand.u32 %v4178, 4294901760
    %4180 = vmatpush1.msra.mxu0 %v4179
    %4181 = vmatprep.subr.mxu0 0.0
    %v4182 = vand.u32 %v136, 4294901760
    %v4183 = vsub.f32 %v136, %v4182
    %v4184 = vand.u32 %v4183, 4294901760
    %4185 = vmatpush1.msra.mxu0 %v4184
    %4186 = vmatprep.subr.mxu0 0.0
    %v4187 = vand.u32 %v135, 4294901760
    %v4188 = vsub.f32 %v135, %v4187
    %v4189 = vand.u32 %v4188, 4294901760
    %4190 = vmatpush1.msra.mxu0 %v4189
    %4191 = vmatprep.subr.mxu0 0.0
    %v4192 = vand.u32 %v134, 4294901760
    %v4193 = vsub.f32 %v134, %v4192
    %v4194 = vand.u32 %v4193, 4294901760
    %4195 = vmatpush1.msra.mxu0 %v4194
    %4196 = vmatprep.subr.mxu0 0.0
    %v4197 = vand.u32 %v133, 4294901760
    %v4198 = vsub.f32 %v133, %v4197
    %v4199 = vand.u32 %v4198, 4294901760
    %4200 = vmatpush1.msra.mxu0 %v4199
    %4201 = vmatprep.subr.mxu0 0.0
    %v4202 = vand.u32 %v132, 4294901760
    %v4203 = vsub.f32 %v132, %v4202
    %v4204 = vand.u32 %v4203, 4294901760
    %4205 = vmatpush1.msra.mxu0 %v4204
    %4206 = vmatprep.subr.mxu0 0.0
    %v4207 = vand.u32 %v131, 4294901760
    %v4208 = vsub.f32 %v131, %v4207
    %v4209 = vand.u32 %v4208, 4294901760
    %4210 = vmatpush1.msra.mxu0 %v4209
    %4211 = vmatprep.subr.mxu0 0.0
    %v4212 = vand.u32 %v130, 4294901760
    %v4213 = vsub.f32 %v130, %v4212
    %v4214 = vand.u32 %v4213, 4294901760
    %4215 = vmatpush1.msra.mxu0 %v4214
    %4216 = vmatprep.subr.mxu0 0.0
    %v4217 = vand.u32 %v129, 4294901760
    %v4218 = vsub.f32 %v129, %v4217
    %v4219 = vand.u32 %v4218, 4294901760
    %4220 = vmatpush1.msra.mxu0 %v4219
    %4221 = vmatprep.subr.mxu0 0.0
    %v4222 = vand.u32 %v128, 4294901760
    %v4223 = vsub.f32 %v128, %v4222
    %v4224 = vand.u32 %v4223, 4294901760
    %4225 = vmatpush1.msra.mxu0 %v4224
    %4226 = vmatprep.subr.mxu0 0.0
    %v4227 = vand.u32 %v127, 4294901760
    %v4228 = vsub.f32 %v127, %v4227
    %v4229 = vand.u32 %v4228, 4294901760
    %4230 = vmatpush1.msra.mxu0 %v4229
    %4231 = vmatprep.subr.mxu0 0.0
    %v4232 = vand.u32 %v126, 4294901760
    %v4233 = vsub.f32 %v126, %v4232
    %v4234 = vand.u32 %v4233, 4294901760
    %4235 = vmatpush1.msra.mxu0 %v4234
    %4236 = vmatprep.subr.mxu0 0.0
    %4237 = vmatpush2.msra.mxu0 0.0
    %4238 = vmatprep.subr.mxu0 0.0
    %4239 = vmatpush2.msra.mxu0 0.0
    %4240 = vmatprep.subr.mxu0 0.0
    %4241 = vmatpush2.msra.mxu0 0.0
    %4242 = vmatprep.subr.mxu0 0.0
    %4243 = vmatpush2.msra.mxu0 0.0
    %4244 = vmatprep.subr.mxu0 0.0
    %4245 = vmatpush2.msra.mxu0 0.0
    %4246 = vmatprep.subr.mxu0 0.0
    %4247 = vmatpush2.msra.mxu0 0.0
    %4248 = vmatprep.subr.mxu0 0.0
    %4249 = vmatpush2.msra.mxu0 0.0
    %4250 = vmatprep.subr.mxu0 0.0
    %4251 = vmatpush2.msra.mxu0 0.0
    %4252 = vmatprep.subr.mxu0 0.0
    %4253 = vmatpush2.msra.mxu0 0.0
    %4254 = vmatprep.subr.mxu0 0.0
    %4255 = vmatpush2.msra.mxu0 0.0
    %4256 = vmatprep.subr.mxu0 0.0
    %4257 = vmatpush2.msra.mxu0 0.0
    %4258 = vmatprep.subr.mxu0 0.0
    %4259 = vmatpush2.msra.mxu0 0.0
    %4260 = vmatprep.subr.mxu0 0.0
    %4261 = vmatpush2.msra.mxu0 0.0
    %4262 = vmatprep.subr.mxu0 0.0
    %4263 = vmatpush2.msra.mxu0 0.0
    %4264 = vmatprep.subr.mxu0 0.0
    %4265 = vmatpush2.msra.mxu0 0.0
    %4266 = vmatprep.subr.mxu0 0.0
    %4267 = vmatpush2.msra.mxu0 0.0
    %4268 = vmatprep.mubr.f32.mxu0 0.0
    %v4269 = vand.u32 %v86, 4294901760
    %4270 = vmatmul.mubr.f32.gmra.mxu0 %v4269
    %v4271 = vpop.f32.mrf.mxu0
    %v4272 = vadd.f32 %v4113, %v4271
    %v4273 = vpop.f32.mrf.mxu0
    %4274 = vmatprep.mubr.f32.mxu0 0.0
    %v4275 = vand.u32 %v87, 4294901760
    %4276 = vmatmul.mubr.f32.gmra.mxu0 %v4275
    %v4277 = vpop.f32.mrf.mxu0
    %v4278 = vadd.f32 %v4121, %v4277
    %v4279 = vpop.f32.mrf.mxu0
    %4280 = vmatprep.mubr.f32.mxu0 0.0
    %v4281 = vand.u32 %v88, 4294901760
    %4282 = vmatmul.mubr.f32.gmra.mxu0 %v4281
    %v4283 = vpop.f32.mrf.mxu0
    %v4284 = vadd.f32 %v4129, %v4283
    %v4285 = vpop.f32.mrf.mxu0
    %4286 = vmatprep.mubr.f32.mxu0 0.0
    %v4287 = vand.u32 %v89, 4294901760
    %4288 = vmatmul.mubr.f32.gmra.mxu0 %v4287
    %v4289 = vpop.f32.mrf.mxu0
    %v4290 = vadd.f32 %v4137, %v4289
    %v4291 = vpop.f32.mrf.mxu0
    %4292 = vmatprep.mubr.f32.mxu0 0.0
    %v4293 = vand.u32 %v90, 4294901760
    %4294 = vmatmul.mubr.f32.gmra.mxu0 %v4293
    %v4295 = vpop.f32.mrf.mxu0
    %v4296 = vadd.f32 %v4145, %v4295
    %v4297 = vpop.f32.mrf.mxu0
    %4298 = vmatprep.mubr.f32.mxu0 0.0
    %v4299 = vand.u32 %v91, 4294901760
    %4300 = vmatmul.mubr.f32.gmra.mxu0 %v4299
    %v4301 = vpop.f32.mrf.mxu0
    %v4302 = vadd.f32 %v4153, %v4301
    %v4303 = vpop.f32.mrf.mxu0
    %4304 = vdwg.mxu0
    %4305 = vmatprep.subr.mxu0 0.0
    %v4306 = vand.u32 %v141, 4294901760
    %4307 = vmatpush1.msra.mxu0 %v4306
    %4308 = vmatprep.subr.mxu0 0.0
    %v4309 = vand.u32 %v140, 4294901760
    %4310 = vmatpush1.msra.mxu0 %v4309
    %4311 = vmatprep.subr.mxu0 0.0
    %v4312 = vand.u32 %v139, 4294901760
    %4313 = vmatpush1.msra.mxu0 %v4312
    %4314 = vmatprep.subr.mxu0 0.0
    %v4315 = vand.u32 %v138, 4294901760
    %4316 = vmatpush1.msra.mxu0 %v4315
    %4317 = vmatprep.subr.mxu0 0.0
    %v4318 = vand.u32 %v137, 4294901760
    %4319 = vmatpush1.msra.mxu0 %v4318
    %4320 = vmatprep.subr.mxu0 0.0
    %v4321 = vand.u32 %v136, 4294901760
    %4322 = vmatpush1.msra.mxu0 %v4321
    %4323 = vmatprep.subr.mxu0 0.0
    %v4324 = vand.u32 %v135, 4294901760
    %4325 = vmatpush1.msra.mxu0 %v4324
    %4326 = vmatprep.subr.mxu0 0.0
    %v4327 = vand.u32 %v134, 4294901760
    %4328 = vmatpush1.msra.mxu0 %v4327
    %4329 = vmatprep.subr.mxu0 0.0
    %v4330 = vand.u32 %v133, 4294901760
    %4331 = vmatpush1.msra.mxu0 %v4330
    %4332 = vmatprep.subr.mxu0 0.0
    %v4333 = vand.u32 %v132, 4294901760
    %4334 = vmatpush1.msra.mxu0 %v4333
    %4335 = vmatprep.subr.mxu0 0.0
    %v4336 = vand.u32 %v131, 4294901760
    %4337 = vmatpush1.msra.mxu0 %v4336
    %4338 = vmatprep.subr.mxu0 0.0
    %v4339 = vand.u32 %v130, 4294901760
    %4340 = vmatpush1.msra.mxu0 %v4339
    %4341 = vmatprep.subr.mxu0 0.0
    %v4342 = vand.u32 %v129, 4294901760
    %4343 = vmatpush1.msra.mxu0 %v4342
    %4344 = vmatprep.subr.mxu0 0.0
    %v4345 = vand.u32 %v128, 4294901760
    %4346 = vmatpush1.msra.mxu0 %v4345
    %4347 = vmatprep.subr.mxu0 0.0
    %v4348 = vand.u32 %v127, 4294901760
    %4349 = vmatpush1.msra.mxu0 %v4348
    %4350 = vmatprep.subr.mxu0 0.0
    %v4351 = vand.u32 %v126, 4294901760
    %4352 = vmatpush1.msra.mxu0 %v4351
    %4353 = vmatprep.subr.mxu0 0.0
    %4354 = vmatpush2.msra.mxu0 0.0
    %4355 = vmatprep.subr.mxu0 0.0
    %4356 = vmatpush2.msra.mxu0 0.0
    %4357 = vmatprep.subr.mxu0 0.0
    %4358 = vmatpush2.msra.mxu0 0.0
    %4359 = vmatprep.subr.mxu0 0.0
    %4360 = vmatpush2.msra.mxu0 0.0
    %4361 = vmatprep.subr.mxu0 0.0
    %4362 = vmatpush2.msra.mxu0 0.0
    %4363 = vmatprep.subr.mxu0 0.0
    %4364 = vmatpush2.msra.mxu0 0.0
    %4365 = vmatprep.subr.mxu0 0.0
    %4366 = vmatpush2.msra.mxu0 0.0
    %4367 = vmatprep.subr.mxu0 0.0
    %4368 = vmatpush2.msra.mxu0 0.0
    %4369 = vmatprep.subr.mxu0 0.0
    %4370 = vmatpush2.msra.mxu0 0.0
    %4371 = vmatprep.subr.mxu0 0.0
    %4372 = vmatpush2.msra.mxu0 0.0
    %4373 = vmatprep.subr.mxu0 0.0
    %4374 = vmatpush2.msra.mxu0 0.0
    %4375 = vmatprep.subr.mxu0 0.0
    %4376 = vmatpush2.msra.mxu0 0.0
    %4377 = vmatprep.subr.mxu0 0.0
    %4378 = vmatpush2.msra.mxu0 0.0
    %4379 = vmatprep.subr.mxu0 0.0
    %4380 = vmatpush2.msra.mxu0 0.0
    %4381 = vmatprep.subr.mxu0 0.0
    %4382 = vmatpush2.msra.mxu0 0.0
    %4383 = vmatprep.subr.mxu0 0.0
    %4384 = vmatpush2.msra.mxu0 0.0
    %4385 = vmatprep.mubr.f32.mxu0 0.0
    %v4386 = vand.u32 %v86, 4294901760
    %4387 = vmatmul.mubr.f32.gmra.mxu0 %v4386
    %v4388 = vpop.f32.mrf.mxu0
    %v4389 = vadd.f32 %v4272, %v4388
    %v4390 = vpop.f32.mrf.mxu0
    %4391 = vmatprep.mubr.f32.mxu0 0.0
    %v4392 = vand.u32 %v87, 4294901760
    %4393 = vmatmul.mubr.f32.gmra.mxu0 %v4392
    %v4394 = vpop.f32.mrf.mxu0
    %v4395 = vadd.f32 %v4278, %v4394
    %v4396 = vpop.f32.mrf.mxu0
    %4397 = vmatprep.mubr.f32.mxu0 0.0
    %v4398 = vand.u32 %v88, 4294901760
    %4399 = vmatmul.mubr.f32.gmra.mxu0 %v4398
    %v4400 = vpop.f32.mrf.mxu0
    %v4401 = vadd.f32 %v4284, %v4400
    %v4402 = vpop.f32.mrf.mxu0
    %4403 = vmatprep.mubr.f32.mxu0 0.0
    %v4404 = vand.u32 %v89, 4294901760
    %4405 = vmatmul.mubr.f32.gmra.mxu0 %v4404
    %v4406 = vpop.f32.mrf.mxu0
    %v4407 = vadd.f32 %v4290, %v4406
    %v4408 = vpop.f32.mrf.mxu0
    %4409 = vmatprep.mubr.f32.mxu0 0.0
    %v4410 = vand.u32 %v90, 4294901760
    %4411 = vmatmul.mubr.f32.gmra.mxu0 %v4410
    %v4412 = vpop.f32.mrf.mxu0
    %v4413 = vadd.f32 %v4296, %v4412
    %v4414 = vpop.f32.mrf.mxu0
    %4415 = vmatprep.mubr.f32.mxu0 0.0
    %v4416 = vand.u32 %v91, 4294901760
    %4417 = vmatmul.mubr.f32.gmra.mxu0 %v4416
    %v4418 = vpop.f32.mrf.mxu0
    %v4419 = vadd.f32 %v4302, %v4418
    %v4420 = vpop.f32.mrf.mxu0
    %4421 = vdwg.mxu0
    %vm4422 = vcmask 130048
    %v4424 = vsel %vm4422, %v965, 0
    %v4427 = vsel %vm4422, %v971, 0
    %v4430 = vsel %vm4422, %v977, 0
    %v4433 = vsel %vm4422, %v983, 0
    %v4436 = vsel %vm4422, %v989, 0
    %v4439 = vsel %vm4422, %v995, 0
    %v4442 = vsel %vm4422, %v1821, 0
    %v4445 = vsel %vm4422, %v1827, 0
    %v4448 = vsel %vm4422, %v1833, 0
    %v4451 = vsel %vm4422, %v1839, 0
    %v4454 = vsel %vm4422, %v1845, 0
    %v4457 = vsel %vm4422, %v1851, 0
    %v4460 = vsel %vm4422, %v2677, 0
    %v4463 = vsel %vm4422, %v2683, 0
    %v4466 = vsel %vm4422, %v2689, 0
    %v4469 = vsel %vm4422, %v2695, 0
    %v4472 = vsel %vm4422, %v2701, 0
    %v4475 = vsel %vm4422, %v2707, 0
    %v4478 = vsel %vm4422, %v3533, 0
    %v4481 = vsel %vm4422, %v3539, 0
    %v4484 = vsel %vm4422, %v3545, 0
    %v4487 = vsel %vm4422, %v3551, 0
    %v4490 = vsel %vm4422, %v3557, 0
    %v4493 = vsel %vm4422, %v3563, 0
    %v4496 = vsel %vm4422, %v4389, 0
    %v4499 = vsel %vm4422, %v4395, 0
    %v4502 = vsel %vm4422, %v4401, 0
    %v4505 = vsel %vm4422, %v4407, 0
    %v4508 = vsel %vm4422, %v4413, 0
    %v4511 = vsel %vm4422, %v4419, 0
    %4513 = vmatprep.subr.mxu0 0.0
    %4514 = vmatpush1.msra.mxu0 0.0
    %4515 = vmatprep.subr.mxu0 0.0
    %4516 = vmatpush1.msra.mxu0 0.0
    %4517 = vmatprep.subr.mxu0 0.0
    %4518 = vmatpush1.msra.mxu0 0.0
    %4519 = vmatprep.subr.mxu0 0.0
    %4520 = vmatpush1.msra.mxu0 0.0
    %4521 = vmatprep.subr.mxu0 0.0
    %4522 = vmatpush1.msra.mxu0 0.0
    %4523 = vmatprep.subr.mxu0 0.0
    %4524 = vmatpush1.msra.mxu0 0.0
    %4525 = vmatprep.subr.mxu0 0.0
    %4526 = vmatpush1.msra.mxu0 0.0
    %4527 = vmatprep.subr.mxu0 0.0
    %4528 = vmatpush1.msra.mxu0 0.0
    %4529 = vmatprep.subr.mxu0 0.0
    %4530 = vmatpush1.msra.mxu0 0.0
    %4531 = vmatprep.subr.mxu0 0.0
    %4532 = vmatpush1.msra.mxu0 0.0
    %4533 = vmatprep.subr.mxu0 0.0
    %4534 = vmatpush1.msra.mxu0 0.0
    %4535 = vmatprep.subr.mxu0 0.0
    %4536 = vmatpush1.msra.mxu0 0.0
    %4537 = vmatprep.subr.mxu0 0.0
    %4538 = vmatpush1.msra.mxu0 0.0
    %4539 = vmatprep.subr.mxu0 0.0
    %4540 = vmatpush1.msra.mxu0 0.0
    %4541 = vmatprep.subr.mxu0 0.0
    %v4542 = vand.u32 %v93, 4294901760
    %4543 = vmatpush1.msra.mxu0 %v4542
    %4544 = vmatprep.subr.mxu0 0.0
    %v4545 = vand.u32 %v92, 4294901760
    %4546 = vmatpush1.msra.mxu0 %v4545
    %4547 = vmatprep.subr.mxu0 0.0
    %4548 = vmatpush2.msra.mxu0 0.0
    %4549 = vmatprep.subr.mxu0 0.0
    %4550 = vmatpush2.msra.mxu0 0.0
    %4551 = vmatprep.subr.mxu0 0.0
    %4552 = vmatpush2.msra.mxu0 0.0
    %4553 = vmatprep.subr.mxu0 0.0
    %4554 = vmatpush2.msra.mxu0 0.0
    %4555 = vmatprep.subr.mxu0 0.0
    %4556 = vmatpush2.msra.mxu0 0.0
    %4557 = vmatprep.subr.mxu0 0.0
    %4558 = vmatpush2.msra.mxu0 0.0
    %4559 = vmatprep.subr.mxu0 0.0
    %4560 = vmatpush2.msra.mxu0 0.0
    %4561 = vmatprep.subr.mxu0 0.0
    %4562 = vmatpush2.msra.mxu0 0.0
    %4563 = vmatprep.subr.mxu0 0.0
    %4564 = vmatpush2.msra.mxu0 0.0
    %4565 = vmatprep.subr.mxu0 0.0
    %4566 = vmatpush2.msra.mxu0 0.0
    %4567 = vmatprep.subr.mxu0 0.0
    %4568 = vmatpush2.msra.mxu0 0.0
    %4569 = vmatprep.subr.mxu0 0.0
    %4570 = vmatpush2.msra.mxu0 0.0
    %4571 = vmatprep.subr.mxu0 0.0
    %4572 = vmatpush2.msra.mxu0 0.0
    %4573 = vmatprep.subr.mxu0 0.0
    %4574 = vmatpush2.msra.mxu0 0.0
    %4575 = vmatprep.subr.mxu0 0.0
    %4576 = vmatpush2.msra.mxu0 0.0
    %4577 = vmatprep.subr.mxu0 0.0
    %4578 = vmatpush2.msra.mxu0 0.0
    %4579 = vmatprep.mubr.f32.mxu0 0.0
    %v4580 = vand.u32 %v4424, 4294901760
    %v4581 = vsub.f32 %v4424, %v4580
    %v4582 = vand.u32 %v4581, 4294901760
    %v4583 = vsub.f32 %v4581, %v4582
    %v4584 = vand.u32 %v4583, 4294901760
    %4585 = vmatmul.mubr.f32.gmra.mxu0 %v4584
    %v4586 = vpop.f32.mrf.mxu0
    %v4587 = vadd.f32 0.0, %v4586
    %v4588 = vpop.f32.mrf.mxu0
    %4589 = vmatprep.mubr.f32.mxu0 0.0
    %v4590 = vand.u32 %v4427, 4294901760
    %v4591 = vsub.f32 %v4427, %v4590
    %v4592 = vand.u32 %v4591, 4294901760
    %v4593 = vsub.f32 %v4591, %v4592
    %v4594 = vand.u32 %v4593, 4294901760
    %4595 = vmatmul.mubr.f32.gmra.mxu0 %v4594
    %v4596 = vpop.f32.mrf.mxu0
    %v4597 = vadd.f32 0.0, %v4596
    %v4598 = vpop.f32.mrf.mxu0
    %4599 = vmatprep.mubr.f32.mxu0 0.0
    %v4600 = vand.u32 %v4430, 4294901760
    %v4601 = vsub.f32 %v4430, %v4600
    %v4602 = vand.u32 %v4601, 4294901760
    %v4603 = vsub.f32 %v4601, %v4602
    %v4604 = vand.u32 %v4603, 4294901760
    %4605 = vmatmul.mubr.f32.gmra.mxu0 %v4604
    %v4606 = vpop.f32.mrf.mxu0
    %v4607 = vadd.f32 0.0, %v4606
    %v4608 = vpop.f32.mrf.mxu0
    %4609 = vmatprep.mubr.f32.mxu0 0.0
    %v4610 = vand.u32 %v4433, 4294901760
    %v4611 = vsub.f32 %v4433, %v4610
    %v4612 = vand.u32 %v4611, 4294901760
    %v4613 = vsub.f32 %v4611, %v4612
    %v4614 = vand.u32 %v4613, 4294901760
    %4615 = vmatmul.mubr.f32.gmra.mxu0 %v4614
    %v4616 = vpop.f32.mrf.mxu0
    %v4617 = vadd.f32 0.0, %v4616
    %v4618 = vpop.f32.mrf.mxu0
    %4619 = vmatprep.mubr.f32.mxu0 0.0
    %v4620 = vand.u32 %v4436, 4294901760
    %v4621 = vsub.f32 %v4436, %v4620
    %v4622 = vand.u32 %v4621, 4294901760
    %v4623 = vsub.f32 %v4621, %v4622
    %v4624 = vand.u32 %v4623, 4294901760
    %4625 = vmatmul.mubr.f32.gmra.mxu0 %v4624
    %v4626 = vpop.f32.mrf.mxu0
    %v4627 = vadd.f32 0.0, %v4626
    %v4628 = vpop.f32.mrf.mxu0
    %4629 = vmatprep.mubr.f32.mxu0 0.0
    %v4630 = vand.u32 %v4439, 4294901760
    %v4631 = vsub.f32 %v4439, %v4630
    %v4632 = vand.u32 %v4631, 4294901760
    %v4633 = vsub.f32 %v4631, %v4632
    %v4634 = vand.u32 %v4633, 4294901760
    %4635 = vmatmul.mubr.f32.gmra.mxu0 %v4634
    %v4636 = vpop.f32.mrf.mxu0
    %v4637 = vadd.f32 0.0, %v4636
    %v4638 = vpop.f32.mrf.mxu0
    %4639 = vmatprep.mubr.f32.mxu0 0.0
    %v4640 = vand.u32 %v4442, 4294901760
    %v4641 = vsub.f32 %v4442, %v4640
    %v4642 = vand.u32 %v4641, 4294901760
    %v4643 = vsub.f32 %v4641, %v4642
    %v4644 = vand.u32 %v4643, 4294901760
    %4645 = vmatmul.mubr.f32.gmra.mxu0 %v4644
    %v4646 = vpop.f32.mrf.mxu0
    %v4647 = vadd.f32 0.0, %v4646
    %v4648 = vpop.f32.mrf.mxu0
    %4649 = vmatprep.mubr.f32.mxu0 0.0
    %v4650 = vand.u32 %v4445, 4294901760
    %v4651 = vsub.f32 %v4445, %v4650
    %v4652 = vand.u32 %v4651, 4294901760
    %v4653 = vsub.f32 %v4651, %v4652
    %v4654 = vand.u32 %v4653, 4294901760
    %4655 = vmatmul.mubr.f32.gmra.mxu0 %v4654
    %v4656 = vpop.f32.mrf.mxu0
    %v4657 = vadd.f32 0.0, %v4656
    %v4658 = vpop.f32.mrf.mxu0
    %4659 = vmatprep.mubr.f32.mxu0 0.0
    %v4660 = vand.u32 %v4448, 4294901760
    %v4661 = vsub.f32 %v4448, %v4660
    %v4662 = vand.u32 %v4661, 4294901760
    %v4663 = vsub.f32 %v4661, %v4662
    %v4664 = vand.u32 %v4663, 4294901760
    %4665 = vmatmul.mubr.f32.gmra.mxu0 %v4664
    %v4666 = vpop.f32.mrf.mxu0
    %v4667 = vadd.f32 0.0, %v4666
    %v4668 = vpop.f32.mrf.mxu0
    %4669 = vmatprep.mubr.f32.mxu0 0.0
    %v4670 = vand.u32 %v4451, 4294901760
    %v4671 = vsub.f32 %v4451, %v4670
    %v4672 = vand.u32 %v4671, 4294901760
    %v4673 = vsub.f32 %v4671, %v4672
    %v4674 = vand.u32 %v4673, 4294901760
    %4675 = vmatmul.mubr.f32.gmra.mxu0 %v4674
    %v4676 = vpop.f32.mrf.mxu0
    %v4677 = vadd.f32 0.0, %v4676
    %v4678 = vpop.f32.mrf.mxu0
    %4679 = vmatprep.mubr.f32.mxu0 0.0
    %v4680 = vand.u32 %v4454, 4294901760
    %v4681 = vsub.f32 %v4454, %v4680
    %v4682 = vand.u32 %v4681, 4294901760
    %v4683 = vsub.f32 %v4681, %v4682
    %v4684 = vand.u32 %v4683, 4294901760
    %4685 = vmatmul.mubr.f32.gmra.mxu0 %v4684
    %v4686 = vpop.f32.mrf.mxu0
    %v4687 = vadd.f32 0.0, %v4686
    %v4688 = vpop.f32.mrf.mxu0
    %4689 = vmatprep.mubr.f32.mxu0 0.0
    %v4690 = vand.u32 %v4457, 4294901760
    %v4691 = vsub.f32 %v4457, %v4690
    %v4692 = vand.u32 %v4691, 4294901760
    %v4693 = vsub.f32 %v4691, %v4692
    %v4694 = vand.u32 %v4693, 4294901760
    %4695 = vmatmul.mubr.f32.gmra.mxu0 %v4694
    %v4696 = vpop.f32.mrf.mxu0
    %v4697 = vadd.f32 0.0, %v4696
    %v4698 = vpop.f32.mrf.mxu0
    %4699 = vmatprep.mubr.f32.mxu0 0.0
    %v4700 = vand.u32 %v4460, 4294901760
    %v4701 = vsub.f32 %v4460, %v4700
    %v4702 = vand.u32 %v4701, 4294901760
    %v4703 = vsub.f32 %v4701, %v4702
    %v4704 = vand.u32 %v4703, 4294901760
    %4705 = vmatmul.mubr.f32.gmra.mxu0 %v4704
    %v4706 = vpop.f32.mrf.mxu0
    %v4707 = vadd.f32 0.0, %v4706
    %v4708 = vpop.f32.mrf.mxu0
    %4709 = vmatprep.mubr.f32.mxu0 0.0
    %v4710 = vand.u32 %v4463, 4294901760
    %v4711 = vsub.f32 %v4463, %v4710
    %v4712 = vand.u32 %v4711, 4294901760
    %v4713 = vsub.f32 %v4711, %v4712
    %v4714 = vand.u32 %v4713, 4294901760
    %4715 = vmatmul.mubr.f32.gmra.mxu0 %v4714
    %v4716 = vpop.f32.mrf.mxu0
    %v4717 = vadd.f32 0.0, %v4716
    %v4718 = vpop.f32.mrf.mxu0
    %4719 = vmatprep.mubr.f32.mxu0 0.0
    %v4720 = vand.u32 %v4466, 4294901760
    %v4721 = vsub.f32 %v4466, %v4720
    %v4722 = vand.u32 %v4721, 4294901760
    %v4723 = vsub.f32 %v4721, %v4722
    %v4724 = vand.u32 %v4723, 4294901760
    %4725 = vmatmul.mubr.f32.gmra.mxu0 %v4724
    %v4726 = vpop.f32.mrf.mxu0
    %v4727 = vadd.f32 0.0, %v4726
    %v4728 = vpop.f32.mrf.mxu0
    %4729 = vmatprep.mubr.f32.mxu0 0.0
    %v4730 = vand.u32 %v4469, 4294901760
    %v4731 = vsub.f32 %v4469, %v4730
    %v4732 = vand.u32 %v4731, 4294901760
    %v4733 = vsub.f32 %v4731, %v4732
    %v4734 = vand.u32 %v4733, 4294901760
    %4735 = vmatmul.mubr.f32.gmra.mxu0 %v4734
    %v4736 = vpop.f32.mrf.mxu0
    %v4737 = vadd.f32 0.0, %v4736
    %v4738 = vpop.f32.mrf.mxu0
    %4739 = vmatprep.mubr.f32.mxu0 0.0
    %v4740 = vand.u32 %v4472, 4294901760
    %v4741 = vsub.f32 %v4472, %v4740
    %v4742 = vand.u32 %v4741, 4294901760
    %v4743 = vsub.f32 %v4741, %v4742
    %v4744 = vand.u32 %v4743, 4294901760
    %4745 = vmatmul.mubr.f32.gmra.mxu0 %v4744
    %v4746 = vpop.f32.mrf.mxu0
    %v4747 = vadd.f32 0.0, %v4746
    %v4748 = vpop.f32.mrf.mxu0
    %4749 = vmatprep.mubr.f32.mxu0 0.0
    %v4750 = vand.u32 %v4475, 4294901760
    %v4751 = vsub.f32 %v4475, %v4750
    %v4752 = vand.u32 %v4751, 4294901760
    %v4753 = vsub.f32 %v4751, %v4752
    %v4754 = vand.u32 %v4753, 4294901760
    %4755 = vmatmul.mubr.f32.gmra.mxu0 %v4754
    %v4756 = vpop.f32.mrf.mxu0
    %v4757 = vadd.f32 0.0, %v4756
    %v4758 = vpop.f32.mrf.mxu0
    %4759 = vmatprep.mubr.f32.mxu0 0.0
    %v4760 = vand.u32 %v4478, 4294901760
    %v4761 = vsub.f32 %v4478, %v4760
    %v4762 = vand.u32 %v4761, 4294901760
    %v4763 = vsub.f32 %v4761, %v4762
    %v4764 = vand.u32 %v4763, 4294901760
    %4765 = vmatmul.mubr.f32.gmra.mxu0 %v4764
    %v4766 = vpop.f32.mrf.mxu0
    %v4767 = vadd.f32 0.0, %v4766
    %v4768 = vpop.f32.mrf.mxu0
    %4769 = vmatprep.mubr.f32.mxu0 0.0
    %v4770 = vand.u32 %v4481, 4294901760
    %v4771 = vsub.f32 %v4481, %v4770
    %v4772 = vand.u32 %v4771, 4294901760
    %v4773 = vsub.f32 %v4771, %v4772
    %v4774 = vand.u32 %v4773, 4294901760
    %4775 = vmatmul.mubr.f32.gmra.mxu0 %v4774
    %v4776 = vpop.f32.mrf.mxu0
    %v4777 = vadd.f32 0.0, %v4776
    %v4778 = vpop.f32.mrf.mxu0
    %4779 = vmatprep.mubr.f32.mxu0 0.0
    %v4780 = vand.u32 %v4484, 4294901760
    %v4781 = vsub.f32 %v4484, %v4780
    %v4782 = vand.u32 %v4781, 4294901760
    %v4783 = vsub.f32 %v4781, %v4782
    %v4784 = vand.u32 %v4783, 4294901760
    %4785 = vmatmul.mubr.f32.gmra.mxu0 %v4784
    %v4786 = vpop.f32.mrf.mxu0
    %v4787 = vadd.f32 0.0, %v4786
    %v4788 = vpop.f32.mrf.mxu0
    %4789 = vmatprep.mubr.f32.mxu0 0.0
    %v4790 = vand.u32 %v4487, 4294901760
    %v4791 = vsub.f32 %v4487, %v4790
    %v4792 = vand.u32 %v4791, 4294901760
    %v4793 = vsub.f32 %v4791, %v4792
    %v4794 = vand.u32 %v4793, 4294901760
    %4795 = vmatmul.mubr.f32.gmra.mxu0 %v4794
    %v4796 = vpop.f32.mrf.mxu0
    %v4797 = vadd.f32 0.0, %v4796
    %v4798 = vpop.f32.mrf.mxu0
    %4799 = vmatprep.mubr.f32.mxu0 0.0
    %v4800 = vand.u32 %v4490, 4294901760
    %v4801 = vsub.f32 %v4490, %v4800
    %v4802 = vand.u32 %v4801, 4294901760
    %v4803 = vsub.f32 %v4801, %v4802
    %v4804 = vand.u32 %v4803, 4294901760
    %4805 = vmatmul.mubr.f32.gmra.mxu0 %v4804
    %v4806 = vpop.f32.mrf.mxu0
    %v4807 = vadd.f32 0.0, %v4806
    %v4808 = vpop.f32.mrf.mxu0
    %4809 = vmatprep.mubr.f32.mxu0 0.0
    %v4810 = vand.u32 %v4493, 4294901760
    %v4811 = vsub.f32 %v4493, %v4810
    %v4812 = vand.u32 %v4811, 4294901760
    %v4813 = vsub.f32 %v4811, %v4812
    %v4814 = vand.u32 %v4813, 4294901760
    %4815 = vmatmul.mubr.f32.gmra.mxu0 %v4814
    %v4816 = vpop.f32.mrf.mxu0
    %v4817 = vadd.f32 0.0, %v4816
    %v4818 = vpop.f32.mrf.mxu0
    %4819 = vmatprep.mubr.f32.mxu0 0.0
    %v4820 = vand.u32 %v4496, 4294901760
    %v4821 = vsub.f32 %v4496, %v4820
    %v4822 = vand.u32 %v4821, 4294901760
    %v4823 = vsub.f32 %v4821, %v4822
    %v4824 = vand.u32 %v4823, 4294901760
    %4825 = vmatmul.mubr.f32.gmra.mxu0 %v4824
    %v4826 = vpop.f32.mrf.mxu0
    %v4827 = vadd.f32 0.0, %v4826
    %v4828 = vpop.f32.mrf.mxu0
    %4829 = vmatprep.mubr.f32.mxu0 0.0
    %v4830 = vand.u32 %v4499, 4294901760
    %v4831 = vsub.f32 %v4499, %v4830
    %v4832 = vand.u32 %v4831, 4294901760
    %v4833 = vsub.f32 %v4831, %v4832
    %v4834 = vand.u32 %v4833, 4294901760
    %4835 = vmatmul.mubr.f32.gmra.mxu0 %v4834
    %v4836 = vpop.f32.mrf.mxu0
    %v4837 = vadd.f32 0.0, %v4836
    %v4838 = vpop.f32.mrf.mxu0
    %4839 = vmatprep.mubr.f32.mxu0 0.0
    %v4840 = vand.u32 %v4502, 4294901760
    %v4841 = vsub.f32 %v4502, %v4840
    %v4842 = vand.u32 %v4841, 4294901760
    %v4843 = vsub.f32 %v4841, %v4842
    %v4844 = vand.u32 %v4843, 4294901760
    %4845 = vmatmul.mubr.f32.gmra.mxu0 %v4844
    %v4846 = vpop.f32.mrf.mxu0
    %v4847 = vadd.f32 0.0, %v4846
    %v4848 = vpop.f32.mrf.mxu0
    %4849 = vmatprep.mubr.f32.mxu0 0.0
    %v4850 = vand.u32 %v4505, 4294901760
    %v4851 = vsub.f32 %v4505, %v4850
    %v4852 = vand.u32 %v4851, 4294901760
    %v4853 = vsub.f32 %v4851, %v4852
    %v4854 = vand.u32 %v4853, 4294901760
    %4855 = vmatmul.mubr.f32.gmra.mxu0 %v4854
    %v4856 = vpop.f32.mrf.mxu0
    %v4857 = vadd.f32 0.0, %v4856
    %v4858 = vpop.f32.mrf.mxu0
    %4859 = vmatprep.mubr.f32.mxu0 0.0
    %v4860 = vand.u32 %v4508, 4294901760
    %v4861 = vsub.f32 %v4508, %v4860
    %v4862 = vand.u32 %v4861, 4294901760
    %v4863 = vsub.f32 %v4861, %v4862
    %v4864 = vand.u32 %v4863, 4294901760
    %4865 = vmatmul.mubr.f32.gmra.mxu0 %v4864
    %v4866 = vpop.f32.mrf.mxu0
    %v4867 = vadd.f32 0.0, %v4866
    %v4868 = vpop.f32.mrf.mxu0
    %4869 = vmatprep.mubr.f32.mxu0 0.0
    %v4870 = vand.u32 %v4511, 4294901760
    %v4871 = vsub.f32 %v4511, %v4870
    %v4872 = vand.u32 %v4871, 4294901760
    %v4873 = vsub.f32 %v4871, %v4872
    %v4874 = vand.u32 %v4873, 4294901760
    %4875 = vmatmul.mubr.f32.gmra.mxu0 %v4874
    %v4876 = vpop.f32.mrf.mxu0
    %v4877 = vadd.f32 0.0, %v4876
    %v4878 = vpop.f32.mrf.mxu0
    %4879 = vdwg.mxu0
    %4880 = vmatprep.subr.mxu0 0.0
    %4881 = vmatpush1.msra.mxu0 0.0
    %4882 = vmatprep.subr.mxu0 0.0
    %4883 = vmatpush1.msra.mxu0 0.0
    %4884 = vmatprep.subr.mxu0 0.0
    %4885 = vmatpush1.msra.mxu0 0.0
    %4886 = vmatprep.subr.mxu0 0.0
    %4887 = vmatpush1.msra.mxu0 0.0
    %4888 = vmatprep.subr.mxu0 0.0
    %4889 = vmatpush1.msra.mxu0 0.0
    %4890 = vmatprep.subr.mxu0 0.0
    %4891 = vmatpush1.msra.mxu0 0.0
    %4892 = vmatprep.subr.mxu0 0.0
    %4893 = vmatpush1.msra.mxu0 0.0
    %4894 = vmatprep.subr.mxu0 0.0
    %4895 = vmatpush1.msra.mxu0 0.0
    %4896 = vmatprep.subr.mxu0 0.0
    %4897 = vmatpush1.msra.mxu0 0.0
    %4898 = vmatprep.subr.mxu0 0.0
    %4899 = vmatpush1.msra.mxu0 0.0
    %4900 = vmatprep.subr.mxu0 0.0
    %4901 = vmatpush1.msra.mxu0 0.0
    %4902 = vmatprep.subr.mxu0 0.0
    %4903 = vmatpush1.msra.mxu0 0.0
    %4904 = vmatprep.subr.mxu0 0.0
    %4905 = vmatpush1.msra.mxu0 0.0
    %4906 = vmatprep.subr.mxu0 0.0
    %4907 = vmatpush1.msra.mxu0 0.0
    %4908 = vmatprep.subr.mxu0 0.0
    %v4909 = vand.u32 %v93, 4294901760
    %v4910 = vsub.f32 %v93, %v4909
    %v4911 = vand.u32 %v4910, 4294901760
    %v4912 = vsub.f32 %v4910, %v4911
    %v4913 = vand.u32 %v4912, 4294901760
    %4914 = vmatpush1.msra.mxu0 %v4913
    %4915 = vmatprep.subr.mxu0 0.0
    %v4916 = vand.u32 %v92, 4294901760
    %v4917 = vsub.f32 %v92, %v4916
    %v4918 = vand.u32 %v4917, 4294901760
    %v4919 = vsub.f32 %v4917, %v4918
    %v4920 = vand.u32 %v4919, 4294901760
    %4921 = vmatpush1.msra.mxu0 %v4920
    %4922 = vmatprep.subr.mxu0 0.0
    %4923 = vmatpush2.msra.mxu0 0.0
    %4924 = vmatprep.subr.mxu0 0.0
    %4925 = vmatpush2.msra.mxu0 0.0
    %4926 = vmatprep.subr.mxu0 0.0
    %4927 = vmatpush2.msra.mxu0 0.0
    %4928 = vmatprep.subr.mxu0 0.0
    %4929 = vmatpush2.msra.mxu0 0.0
    %4930 = vmatprep.subr.mxu0 0.0
    %4931 = vmatpush2.msra.mxu0 0.0
    %4932 = vmatprep.subr.mxu0 0.0
    %4933 = vmatpush2.msra.mxu0 0.0
    %4934 = vmatprep.subr.mxu0 0.0
    %4935 = vmatpush2.msra.mxu0 0.0
    %4936 = vmatprep.subr.mxu0 0.0
    %4937 = vmatpush2.msra.mxu0 0.0
    %4938 = vmatprep.subr.mxu0 0.0
    %4939 = vmatpush2.msra.mxu0 0.0
    %4940 = vmatprep.subr.mxu0 0.0
    %4941 = vmatpush2.msra.mxu0 0.0
    %4942 = vmatprep.subr.mxu0 0.0
    %4943 = vmatpush2.msra.mxu0 0.0
    %4944 = vmatprep.subr.mxu0 0.0
    %4945 = vmatpush2.msra.mxu0 0.0
    %4946 = vmatprep.subr.mxu0 0.0
    %4947 = vmatpush2.msra.mxu0 0.0
    %4948 = vmatprep.subr.mxu0 0.0
    %4949 = vmatpush2.msra.mxu0 0.0
    %4950 = vmatprep.subr.mxu0 0.0
    %4951 = vmatpush2.msra.mxu0 0.0
    %4952 = vmatprep.subr.mxu0 0.0
    %4953 = vmatpush2.msra.mxu0 0.0
    %4954 = vmatprep.mubr.f32.mxu0 0.0
    %v4955 = vand.u32 %v4424, 4294901760
    %4956 = vmatmul.mubr.f32.gmra.mxu0 %v4955
    %v4957 = vpop.f32.mrf.mxu0
    %v4958 = vadd.f32 %v4587, %v4957
    %v4959 = vpop.f32.mrf.mxu0
    %4960 = vmatprep.mubr.f32.mxu0 0.0
    %v4961 = vand.u32 %v4427, 4294901760
    %4962 = vmatmul.mubr.f32.gmra.mxu0 %v4961
    %v4963 = vpop.f32.mrf.mxu0
    %v4964 = vadd.f32 %v4597, %v4963
    %v4965 = vpop.f32.mrf.mxu0
    %4966 = vmatprep.mubr.f32.mxu0 0.0
    %v4967 = vand.u32 %v4430, 4294901760
    %4968 = vmatmul.mubr.f32.gmra.mxu0 %v4967
    %v4969 = vpop.f32.mrf.mxu0
    %v4970 = vadd.f32 %v4607, %v4969
    %v4971 = vpop.f32.mrf.mxu0
    %4972 = vmatprep.mubr.f32.mxu0 0.0
    %v4973 = vand.u32 %v4433, 4294901760
    %4974 = vmatmul.mubr.f32.gmra.mxu0 %v4973
    %v4975 = vpop.f32.mrf.mxu0
    %v4976 = vadd.f32 %v4617, %v4975
    %v4977 = vpop.f32.mrf.mxu0
    %4978 = vmatprep.mubr.f32.mxu0 0.0
    %v4979 = vand.u32 %v4436, 4294901760
    %4980 = vmatmul.mubr.f32.gmra.mxu0 %v4979
    %v4981 = vpop.f32.mrf.mxu0
    %v4982 = vadd.f32 %v4627, %v4981
    %v4983 = vpop.f32.mrf.mxu0
    %4984 = vmatprep.mubr.f32.mxu0 0.0
    %v4985 = vand.u32 %v4439, 4294901760
    %4986 = vmatmul.mubr.f32.gmra.mxu0 %v4985
    %v4987 = vpop.f32.mrf.mxu0
    %v4988 = vadd.f32 %v4637, %v4987
    %v4989 = vpop.f32.mrf.mxu0
    %4990 = vmatprep.mubr.f32.mxu0 0.0
    %v4991 = vand.u32 %v4442, 4294901760
    %4992 = vmatmul.mubr.f32.gmra.mxu0 %v4991
    %v4993 = vpop.f32.mrf.mxu0
    %v4994 = vadd.f32 %v4647, %v4993
    %v4995 = vpop.f32.mrf.mxu0
    %4996 = vmatprep.mubr.f32.mxu0 0.0
    %v4997 = vand.u32 %v4445, 4294901760
    %4998 = vmatmul.mubr.f32.gmra.mxu0 %v4997
    %v4999 = vpop.f32.mrf.mxu0
    %v5000 = vadd.f32 %v4657, %v4999
    %v5001 = vpop.f32.mrf.mxu0
    %5002 = vmatprep.mubr.f32.mxu0 0.0
    %v5003 = vand.u32 %v4448, 4294901760
    %5004 = vmatmul.mubr.f32.gmra.mxu0 %v5003
    %v5005 = vpop.f32.mrf.mxu0
    %v5006 = vadd.f32 %v4667, %v5005
    %v5007 = vpop.f32.mrf.mxu0
    %5008 = vmatprep.mubr.f32.mxu0 0.0
    %v5009 = vand.u32 %v4451, 4294901760
    %5010 = vmatmul.mubr.f32.gmra.mxu0 %v5009
    %v5011 = vpop.f32.mrf.mxu0
    %v5012 = vadd.f32 %v4677, %v5011
    %v5013 = vpop.f32.mrf.mxu0
    %5014 = vmatprep.mubr.f32.mxu0 0.0
    %v5015 = vand.u32 %v4454, 4294901760
    %5016 = vmatmul.mubr.f32.gmra.mxu0 %v5015
    %v5017 = vpop.f32.mrf.mxu0
    %v5018 = vadd.f32 %v4687, %v5017
    %v5019 = vpop.f32.mrf.mxu0
    %5020 = vmatprep.mubr.f32.mxu0 0.0
    %v5021 = vand.u32 %v4457, 4294901760
    %5022 = vmatmul.mubr.f32.gmra.mxu0 %v5021
    %v5023 = vpop.f32.mrf.mxu0
    %v5024 = vadd.f32 %v4697, %v5023
    %v5025 = vpop.f32.mrf.mxu0
    %5026 = vmatprep.mubr.f32.mxu0 0.0
    %v5027 = vand.u32 %v4460, 4294901760
    %5028 = vmatmul.mubr.f32.gmra.mxu0 %v5027
    %v5029 = vpop.f32.mrf.mxu0
    %v5030 = vadd.f32 %v4707, %v5029
    %v5031 = vpop.f32.mrf.mxu0
    %5032 = vmatprep.mubr.f32.mxu0 0.0
    %v5033 = vand.u32 %v4463, 4294901760
    %5034 = vmatmul.mubr.f32.gmra.mxu0 %v5033
    %v5035 = vpop.f32.mrf.mxu0
    %v5036 = vadd.f32 %v4717, %v5035
    %v5037 = vpop.f32.mrf.mxu0
    %5038 = vmatprep.mubr.f32.mxu0 0.0
    %v5039 = vand.u32 %v4466, 4294901760
    %5040 = vmatmul.mubr.f32.gmra.mxu0 %v5039
    %v5041 = vpop.f32.mrf.mxu0
    %v5042 = vadd.f32 %v4727, %v5041
    %v5043 = vpop.f32.mrf.mxu0
    %5044 = vmatprep.mubr.f32.mxu0 0.0
    %v5045 = vand.u32 %v4469, 4294901760
    %5046 = vmatmul.mubr.f32.gmra.mxu0 %v5045
    %v5047 = vpop.f32.mrf.mxu0
    %v5048 = vadd.f32 %v4737, %v5047
    %v5049 = vpop.f32.mrf.mxu0
    %5050 = vmatprep.mubr.f32.mxu0 0.0
    %v5051 = vand.u32 %v4472, 4294901760
    %5052 = vmatmul.mubr.f32.gmra.mxu0 %v5051
    %v5053 = vpop.f32.mrf.mxu0
    %v5054 = vadd.f32 %v4747, %v5053
    %v5055 = vpop.f32.mrf.mxu0
    %5056 = vmatprep.mubr.f32.mxu0 0.0
    %v5057 = vand.u32 %v4475, 4294901760
    %5058 = vmatmul.mubr.f32.gmra.mxu0 %v5057
    %v5059 = vpop.f32.mrf.mxu0
    %v5060 = vadd.f32 %v4757, %v5059
    %v5061 = vpop.f32.mrf.mxu0
    %5062 = vmatprep.mubr.f32.mxu0 0.0
    %v5063 = vand.u32 %v4478, 4294901760
    %5064 = vmatmul.mubr.f32.gmra.mxu0 %v5063
    %v5065 = vpop.f32.mrf.mxu0
    %v5066 = vadd.f32 %v4767, %v5065
    %v5067 = vpop.f32.mrf.mxu0
    %5068 = vmatprep.mubr.f32.mxu0 0.0
    %v5069 = vand.u32 %v4481, 4294901760
    %5070 = vmatmul.mubr.f32.gmra.mxu0 %v5069
    %v5071 = vpop.f32.mrf.mxu0
    %v5072 = vadd.f32 %v4777, %v5071
    %v5073 = vpop.f32.mrf.mxu0
    %5074 = vmatprep.mubr.f32.mxu0 0.0
    %v5075 = vand.u32 %v4484, 4294901760
    %5076 = vmatmul.mubr.f32.gmra.mxu0 %v5075
    %v5077 = vpop.f32.mrf.mxu0
    %v5078 = vadd.f32 %v4787, %v5077
    %v5079 = vpop.f32.mrf.mxu0
    %5080 = vmatprep.mubr.f32.mxu0 0.0
    %v5081 = vand.u32 %v4487, 4294901760
    %5082 = vmatmul.mubr.f32.gmra.mxu0 %v5081
    %v5083 = vpop.f32.mrf.mxu0
    %v5084 = vadd.f32 %v4797, %v5083
    %v5085 = vpop.f32.mrf.mxu0
    %5086 = vmatprep.mubr.f32.mxu0 0.0
    %v5087 = vand.u32 %v4490, 4294901760
    %5088 = vmatmul.mubr.f32.gmra.mxu0 %v5087
    %v5089 = vpop.f32.mrf.mxu0
    %v5090 = vadd.f32 %v4807, %v5089
    %v5091 = vpop.f32.mrf.mxu0
    %5092 = vmatprep.mubr.f32.mxu0 0.0
    %v5093 = vand.u32 %v4493, 4294901760
    %5094 = vmatmul.mubr.f32.gmra.mxu0 %v5093
    %v5095 = vpop.f32.mrf.mxu0
    %v5096 = vadd.f32 %v4817, %v5095
    %v5097 = vpop.f32.mrf.mxu0
    %5098 = vmatprep.mubr.f32.mxu0 0.0
    %v5099 = vand.u32 %v4496, 4294901760
    %5100 = vmatmul.mubr.f32.gmra.mxu0 %v5099
    %v5101 = vpop.f32.mrf.mxu0
    %v5102 = vadd.f32 %v4827, %v5101
    %v5103 = vpop.f32.mrf.mxu0
    %5104 = vmatprep.mubr.f32.mxu0 0.0
    %v5105 = vand.u32 %v4499, 4294901760
    %5106 = vmatmul.mubr.f32.gmra.mxu0 %v5105
    %v5107 = vpop.f32.mrf.mxu0
    %v5108 = vadd.f32 %v4837, %v5107
    %v5109 = vpop.f32.mrf.mxu0
    %5110 = vmatprep.mubr.f32.mxu0 0.0
    %v5111 = vand.u32 %v4502, 4294901760
    %5112 = vmatmul.mubr.f32.gmra.mxu0 %v5111
    %v5113 = vpop.f32.mrf.mxu0
    %v5114 = vadd.f32 %v4847, %v5113
    %v5115 = vpop.f32.mrf.mxu0
    %5116 = vmatprep.mubr.f32.mxu0 0.0
    %v5117 = vand.u32 %v4505, 4294901760
    %5118 = vmatmul.mubr.f32.gmra.mxu0 %v5117
    %v5119 = vpop.f32.mrf.mxu0
    %v5120 = vadd.f32 %v4857, %v5119
    %v5121 = vpop.f32.mrf.mxu0
    %5122 = vmatprep.mubr.f32.mxu0 0.0
    %v5123 = vand.u32 %v4508, 4294901760
    %5124 = vmatmul.mubr.f32.gmra.mxu0 %v5123
    %v5125 = vpop.f32.mrf.mxu0
    %v5126 = vadd.f32 %v4867, %v5125
    %v5127 = vpop.f32.mrf.mxu0
    %5128 = vmatprep.mubr.f32.mxu0 0.0
    %v5129 = vand.u32 %v4511, 4294901760
    %5130 = vmatmul.mubr.f32.gmra.mxu0 %v5129
    %v5131 = vpop.f32.mrf.mxu0
    %v5132 = vadd.f32 %v4877, %v5131
    %v5133 = vpop.f32.mrf.mxu0
    %5134 = vdwg.mxu0
    %5135 = vmatprep.subr.mxu0 0.0
    %5136 = vmatpush1.msra.mxu0 0.0
    %5137 = vmatprep.subr.mxu0 0.0
    %5138 = vmatpush1.msra.mxu0 0.0
    %5139 = vmatprep.subr.mxu0 0.0
    %5140 = vmatpush1.msra.mxu0 0.0
    %5141 = vmatprep.subr.mxu0 0.0
    %5142 = vmatpush1.msra.mxu0 0.0
    %5143 = vmatprep.subr.mxu0 0.0
    %5144 = vmatpush1.msra.mxu0 0.0
    %5145 = vmatprep.subr.mxu0 0.0
    %5146 = vmatpush1.msra.mxu0 0.0
    %5147 = vmatprep.subr.mxu0 0.0
    %5148 = vmatpush1.msra.mxu0 0.0
    %5149 = vmatprep.subr.mxu0 0.0
    %5150 = vmatpush1.msra.mxu0 0.0
    %5151 = vmatprep.subr.mxu0 0.0
    %5152 = vmatpush1.msra.mxu0 0.0
    %5153 = vmatprep.subr.mxu0 0.0
    %5154 = vmatpush1.msra.mxu0 0.0
    %5155 = vmatprep.subr.mxu0 0.0
    %5156 = vmatpush1.msra.mxu0 0.0
    %5157 = vmatprep.subr.mxu0 0.0
    %5158 = vmatpush1.msra.mxu0 0.0
    %5159 = vmatprep.subr.mxu0 0.0
    %5160 = vmatpush1.msra.mxu0 0.0
    %5161 = vmatprep.subr.mxu0 0.0
    %5162 = vmatpush1.msra.mxu0 0.0
    %5163 = vmatprep.subr.mxu0 0.0
    %v5164 = vand.u32 %v93, 4294901760
    %v5165 = vsub.f32 %v93, %v5164
    %5166 = vmatpush1.msra.mxu0 %v5165
    %5167 = vmatprep.subr.mxu0 0.0
    %v5168 = vand.u32 %v92, 4294901760
    %v5169 = vsub.f32 %v92, %v5168
    %5170 = vmatpush1.msra.mxu0 %v5169
    %5171 = vmatprep.subr.mxu0 0.0
    %5172 = vmatpush2.msra.mxu0 0.0
    %5173 = vmatprep.subr.mxu0 0.0
    %5174 = vmatpush2.msra.mxu0 0.0
    %5175 = vmatprep.subr.mxu0 0.0
    %5176 = vmatpush2.msra.mxu0 0.0
    %5177 = vmatprep.subr.mxu0 0.0
    %5178 = vmatpush2.msra.mxu0 0.0
    %5179 = vmatprep.subr.mxu0 0.0
    %5180 = vmatpush2.msra.mxu0 0.0
    %5181 = vmatprep.subr.mxu0 0.0
    %5182 = vmatpush2.msra.mxu0 0.0
    %5183 = vmatprep.subr.mxu0 0.0
    %5184 = vmatpush2.msra.mxu0 0.0
    %5185 = vmatprep.subr.mxu0 0.0
    %5186 = vmatpush2.msra.mxu0 0.0
    %5187 = vmatprep.subr.mxu0 0.0
    %5188 = vmatpush2.msra.mxu0 0.0
    %5189 = vmatprep.subr.mxu0 0.0
    %5190 = vmatpush2.msra.mxu0 0.0
    %5191 = vmatprep.subr.mxu0 0.0
    %5192 = vmatpush2.msra.mxu0 0.0
    %5193 = vmatprep.subr.mxu0 0.0
    %5194 = vmatpush2.msra.mxu0 0.0
    %5195 = vmatprep.subr.mxu0 0.0
    %5196 = vmatpush2.msra.mxu0 0.0
    %5197 = vmatprep.subr.mxu0 0.0
    %5198 = vmatpush2.msra.mxu0 0.0
    %5199 = vmatprep.subr.mxu0 0.0
    %5200 = vmatpush2.msra.mxu0 0.0
    %5201 = vmatprep.subr.mxu0 0.0
    %5202 = vmatpush2.msra.mxu0 0.0
    %5203 = vmatprep.mubr.f32.mxu0 0.0
    %v5204 = vand.u32 %v4424, 4294901760
    %v5205 = vsub.f32 %v4424, %v5204
    %5206 = vmatmul.mubr.f32.gmra.mxu0 %v5205
    %v5207 = vpop.f32.mrf.mxu0
    %v5208 = vadd.f32 %v4958, %v5207
    %v5209 = vpop.f32.mrf.mxu0
    %5210 = vmatprep.mubr.f32.mxu0 0.0
    %v5211 = vand.u32 %v4427, 4294901760
    %v5212 = vsub.f32 %v4427, %v5211
    %5213 = vmatmul.mubr.f32.gmra.mxu0 %v5212
    %v5214 = vpop.f32.mrf.mxu0
    %v5215 = vadd.f32 %v4964, %v5214
    %v5216 = vpop.f32.mrf.mxu0
    %5217 = vmatprep.mubr.f32.mxu0 0.0
    %v5218 = vand.u32 %v4430, 4294901760
    %v5219 = vsub.f32 %v4430, %v5218
    %5220 = vmatmul.mubr.f32.gmra.mxu0 %v5219
    %v5221 = vpop.f32.mrf.mxu0
    %v5222 = vadd.f32 %v4970, %v5221
    %v5223 = vpop.f32.mrf.mxu0
    %5224 = vmatprep.mubr.f32.mxu0 0.0
    %v5225 = vand.u32 %v4433, 4294901760
    %v5226 = vsub.f32 %v4433, %v5225
    %5227 = vmatmul.mubr.f32.gmra.mxu0 %v5226
    %v5228 = vpop.f32.mrf.mxu0
    %v5229 = vadd.f32 %v4976, %v5228
    %v5230 = vpop.f32.mrf.mxu0
    %5231 = vmatprep.mubr.f32.mxu0 0.0
    %v5232 = vand.u32 %v4436, 4294901760
    %v5233 = vsub.f32 %v4436, %v5232
    %5234 = vmatmul.mubr.f32.gmra.mxu0 %v5233
    %v5235 = vpop.f32.mrf.mxu0
    %v5236 = vadd.f32 %v4982, %v5235
    %v5237 = vpop.f32.mrf.mxu0
    %5238 = vmatprep.mubr.f32.mxu0 0.0
    %v5239 = vand.u32 %v4439, 4294901760
    %v5240 = vsub.f32 %v4439, %v5239
    %5241 = vmatmul.mubr.f32.gmra.mxu0 %v5240
    %v5242 = vpop.f32.mrf.mxu0
    %v5243 = vadd.f32 %v4988, %v5242
    %v5244 = vpop.f32.mrf.mxu0
    %5245 = vmatprep.mubr.f32.mxu0 0.0
    %v5246 = vand.u32 %v4442, 4294901760
    %v5247 = vsub.f32 %v4442, %v5246
    %5248 = vmatmul.mubr.f32.gmra.mxu0 %v5247
    %v5249 = vpop.f32.mrf.mxu0
    %v5250 = vadd.f32 %v4994, %v5249
    %v5251 = vpop.f32.mrf.mxu0
    %5252 = vmatprep.mubr.f32.mxu0 0.0
    %v5253 = vand.u32 %v4445, 4294901760
    %v5254 = vsub.f32 %v4445, %v5253
    %5255 = vmatmul.mubr.f32.gmra.mxu0 %v5254
    %v5256 = vpop.f32.mrf.mxu0
    %v5257 = vadd.f32 %v5000, %v5256
    %v5258 = vpop.f32.mrf.mxu0
    %5259 = vmatprep.mubr.f32.mxu0 0.0
    %v5260 = vand.u32 %v4448, 4294901760
    %v5261 = vsub.f32 %v4448, %v5260
    %5262 = vmatmul.mubr.f32.gmra.mxu0 %v5261
    %v5263 = vpop.f32.mrf.mxu0
    %v5264 = vadd.f32 %v5006, %v5263
    %v5265 = vpop.f32.mrf.mxu0
    %5266 = vmatprep.mubr.f32.mxu0 0.0
    %v5267 = vand.u32 %v4451, 4294901760
    %v5268 = vsub.f32 %v4451, %v5267
    %5269 = vmatmul.mubr.f32.gmra.mxu0 %v5268
    %v5270 = vpop.f32.mrf.mxu0
    %v5271 = vadd.f32 %v5012, %v5270
    %v5272 = vpop.f32.mrf.mxu0
    %5273 = vmatprep.mubr.f32.mxu0 0.0
    %v5274 = vand.u32 %v4454, 4294901760
    %v5275 = vsub.f32 %v4454, %v5274
    %5276 = vmatmul.mubr.f32.gmra.mxu0 %v5275
    %v5277 = vpop.f32.mrf.mxu0
    %v5278 = vadd.f32 %v5018, %v5277
    %v5279 = vpop.f32.mrf.mxu0
    %5280 = vmatprep.mubr.f32.mxu0 0.0
    %v5281 = vand.u32 %v4457, 4294901760
    %v5282 = vsub.f32 %v4457, %v5281
    %5283 = vmatmul.mubr.f32.gmra.mxu0 %v5282
    %v5284 = vpop.f32.mrf.mxu0
    %v5285 = vadd.f32 %v5024, %v5284
    %v5286 = vpop.f32.mrf.mxu0
    %5287 = vmatprep.mubr.f32.mxu0 0.0
    %v5288 = vand.u32 %v4460, 4294901760
    %v5289 = vsub.f32 %v4460, %v5288
    %5290 = vmatmul.mubr.f32.gmra.mxu0 %v5289
    %v5291 = vpop.f32.mrf.mxu0
    %v5292 = vadd.f32 %v5030, %v5291
    %v5293 = vpop.f32.mrf.mxu0
    %5294 = vmatprep.mubr.f32.mxu0 0.0
    %v5295 = vand.u32 %v4463, 4294901760
    %v5296 = vsub.f32 %v4463, %v5295
    %5297 = vmatmul.mubr.f32.gmra.mxu0 %v5296
    %v5298 = vpop.f32.mrf.mxu0
    %v5299 = vadd.f32 %v5036, %v5298
    %v5300 = vpop.f32.mrf.mxu0
    %5301 = vmatprep.mubr.f32.mxu0 0.0
    %v5302 = vand.u32 %v4466, 4294901760
    %v5303 = vsub.f32 %v4466, %v5302
    %5304 = vmatmul.mubr.f32.gmra.mxu0 %v5303
    %v5305 = vpop.f32.mrf.mxu0
    %v5306 = vadd.f32 %v5042, %v5305
    %v5307 = vpop.f32.mrf.mxu0
    %5308 = vmatprep.mubr.f32.mxu0 0.0
    %v5309 = vand.u32 %v4469, 4294901760
    %v5310 = vsub.f32 %v4469, %v5309
    %5311 = vmatmul.mubr.f32.gmra.mxu0 %v5310
    %v5312 = vpop.f32.mrf.mxu0
    %v5313 = vadd.f32 %v5048, %v5312
    %v5314 = vpop.f32.mrf.mxu0
    %5315 = vmatprep.mubr.f32.mxu0 0.0
    %v5316 = vand.u32 %v4472, 4294901760
    %v5317 = vsub.f32 %v4472, %v5316
    %5318 = vmatmul.mubr.f32.gmra.mxu0 %v5317
    %v5319 = vpop.f32.mrf.mxu0
    %v5320 = vadd.f32 %v5054, %v5319
    %v5321 = vpop.f32.mrf.mxu0
    %5322 = vmatprep.mubr.f32.mxu0 0.0
    %v5323 = vand.u32 %v4475, 4294901760
    %v5324 = vsub.f32 %v4475, %v5323
    %5325 = vmatmul.mubr.f32.gmra.mxu0 %v5324
    %v5326 = vpop.f32.mrf.mxu0
    %v5327 = vadd.f32 %v5060, %v5326
    %v5328 = vpop.f32.mrf.mxu0
    %5329 = vmatprep.mubr.f32.mxu0 0.0
    %v5330 = vand.u32 %v4478, 4294901760
    %v5331 = vsub.f32 %v4478, %v5330
    %5332 = vmatmul.mubr.f32.gmra.mxu0 %v5331
    %v5333 = vpop.f32.mrf.mxu0
    %v5334 = vadd.f32 %v5066, %v5333
    %v5335 = vpop.f32.mrf.mxu0
    %5336 = vmatprep.mubr.f32.mxu0 0.0
    %v5337 = vand.u32 %v4481, 4294901760
    %v5338 = vsub.f32 %v4481, %v5337
    %5339 = vmatmul.mubr.f32.gmra.mxu0 %v5338
    %v5340 = vpop.f32.mrf.mxu0
    %v5341 = vadd.f32 %v5072, %v5340
    %v5342 = vpop.f32.mrf.mxu0
    %5343 = vmatprep.mubr.f32.mxu0 0.0
    %v5344 = vand.u32 %v4484, 4294901760
    %v5345 = vsub.f32 %v4484, %v5344
    %5346 = vmatmul.mubr.f32.gmra.mxu0 %v5345
    %v5347 = vpop.f32.mrf.mxu0
    %v5348 = vadd.f32 %v5078, %v5347
    %v5349 = vpop.f32.mrf.mxu0
    %5350 = vmatprep.mubr.f32.mxu0 0.0
    %v5351 = vand.u32 %v4487, 4294901760
    %v5352 = vsub.f32 %v4487, %v5351
    %5353 = vmatmul.mubr.f32.gmra.mxu0 %v5352
    %v5354 = vpop.f32.mrf.mxu0
    %v5355 = vadd.f32 %v5084, %v5354
    %v5356 = vpop.f32.mrf.mxu0
    %5357 = vmatprep.mubr.f32.mxu0 0.0
    %v5358 = vand.u32 %v4490, 4294901760
    %v5359 = vsub.f32 %v4490, %v5358
    %5360 = vmatmul.mubr.f32.gmra.mxu0 %v5359
    %v5361 = vpop.f32.mrf.mxu0
    %v5362 = vadd.f32 %v5090, %v5361
    %v5363 = vpop.f32.mrf.mxu0
    %5364 = vmatprep.mubr.f32.mxu0 0.0
    %v5365 = vand.u32 %v4493, 4294901760
    %v5366 = vsub.f32 %v4493, %v5365
    %5367 = vmatmul.mubr.f32.gmra.mxu0 %v5366
    %v5368 = vpop.f32.mrf.mxu0
    %v5369 = vadd.f32 %v5096, %v5368
    %v5370 = vpop.f32.mrf.mxu0
    %5371 = vmatprep.mubr.f32.mxu0 0.0
    %v5372 = vand.u32 %v4496, 4294901760
    %v5373 = vsub.f32 %v4496, %v5372
    %5374 = vmatmul.mubr.f32.gmra.mxu0 %v5373
    %v5375 = vpop.f32.mrf.mxu0
    %v5376 = vadd.f32 %v5102, %v5375
    %v5377 = vpop.f32.mrf.mxu0
    %5378 = vmatprep.mubr.f32.mxu0 0.0
    %v5379 = vand.u32 %v4499, 4294901760
    %v5380 = vsub.f32 %v4499, %v5379
    %5381 = vmatmul.mubr.f32.gmra.mxu0 %v5380
    %v5382 = vpop.f32.mrf.mxu0
    %v5383 = vadd.f32 %v5108, %v5382
    %v5384 = vpop.f32.mrf.mxu0
    %5385 = vmatprep.mubr.f32.mxu0 0.0
    %v5386 = vand.u32 %v4502, 4294901760
    %v5387 = vsub.f32 %v4502, %v5386
    %5388 = vmatmul.mubr.f32.gmra.mxu0 %v5387
    %v5389 = vpop.f32.mrf.mxu0
    %v5390 = vadd.f32 %v5114, %v5389
    %v5391 = vpop.f32.mrf.mxu0
    %5392 = vmatprep.mubr.f32.mxu0 0.0
    %v5393 = vand.u32 %v4505, 4294901760
    %v5394 = vsub.f32 %v4505, %v5393
    %5395 = vmatmul.mubr.f32.gmra.mxu0 %v5394
    %v5396 = vpop.f32.mrf.mxu0
    %v5397 = vadd.f32 %v5120, %v5396
    %v5398 = vpop.f32.mrf.mxu0
    %5399 = vmatprep.mubr.f32.mxu0 0.0
    %v5400 = vand.u32 %v4508, 4294901760
    %v5401 = vsub.f32 %v4508, %v5400
    %5402 = vmatmul.mubr.f32.gmra.mxu0 %v5401
    %v5403 = vpop.f32.mrf.mxu0
    %v5404 = vadd.f32 %v5126, %v5403
    %v5405 = vpop.f32.mrf.mxu0
    %5406 = vmatprep.mubr.f32.mxu0 0.0
    %v5407 = vand.u32 %v4511, 4294901760
    %v5408 = vsub.f32 %v4511, %v5407
    %5409 = vmatmul.mubr.f32.gmra.mxu0 %v5408
    %v5410 = vpop.f32.mrf.mxu0
    %v5411 = vadd.f32 %v5132, %v5410
    %v5412 = vpop.f32.mrf.mxu0
    %5413 = vdwg.mxu0
    %5414 = vmatprep.subr.mxu0 0.0
    %5415 = vmatpush1.msra.mxu0 0.0
    %5416 = vmatprep.subr.mxu0 0.0
    %5417 = vmatpush1.msra.mxu0 0.0
    %5418 = vmatprep.subr.mxu0 0.0
    %5419 = vmatpush1.msra.mxu0 0.0
    %5420 = vmatprep.subr.mxu0 0.0
    %5421 = vmatpush1.msra.mxu0 0.0
    %5422 = vmatprep.subr.mxu0 0.0
    %5423 = vmatpush1.msra.mxu0 0.0
    %5424 = vmatprep.subr.mxu0 0.0
    %5425 = vmatpush1.msra.mxu0 0.0
    %5426 = vmatprep.subr.mxu0 0.0
    %5427 = vmatpush1.msra.mxu0 0.0
    %5428 = vmatprep.subr.mxu0 0.0
    %5429 = vmatpush1.msra.mxu0 0.0
    %5430 = vmatprep.subr.mxu0 0.0
    %5431 = vmatpush1.msra.mxu0 0.0
    %5432 = vmatprep.subr.mxu0 0.0
    %5433 = vmatpush1.msra.mxu0 0.0
    %5434 = vmatprep.subr.mxu0 0.0
    %5435 = vmatpush1.msra.mxu0 0.0
    %5436 = vmatprep.subr.mxu0 0.0
    %5437 = vmatpush1.msra.mxu0 0.0
    %5438 = vmatprep.subr.mxu0 0.0
    %5439 = vmatpush1.msra.mxu0 0.0
    %5440 = vmatprep.subr.mxu0 0.0
    %5441 = vmatpush1.msra.mxu0 0.0
    %5442 = vmatprep.subr.mxu0 0.0
    %v5443 = vand.u32 %v93, 4294901760
    %5444 = vmatpush1.msra.mxu0 %v5443
    %5445 = vmatprep.subr.mxu0 0.0
    %v5446 = vand.u32 %v92, 4294901760
    %5447 = vmatpush1.msra.mxu0 %v5446
    %5448 = vmatprep.subr.mxu0 0.0
    %5449 = vmatpush2.msra.mxu0 0.0
    %5450 = vmatprep.subr.mxu0 0.0
    %5451 = vmatpush2.msra.mxu0 0.0
    %5452 = vmatprep.subr.mxu0 0.0
    %5453 = vmatpush2.msra.mxu0 0.0
    %5454 = vmatprep.subr.mxu0 0.0
    %5455 = vmatpush2.msra.mxu0 0.0
    %5456 = vmatprep.subr.mxu0 0.0
    %5457 = vmatpush2.msra.mxu0 0.0
    %5458 = vmatprep.subr.mxu0 0.0
    %5459 = vmatpush2.msra.mxu0 0.0
    %5460 = vmatprep.subr.mxu0 0.0
    %5461 = vmatpush2.msra.mxu0 0.0
    %5462 = vmatprep.subr.mxu0 0.0
    %5463 = vmatpush2.msra.mxu0 0.0
    %5464 = vmatprep.subr.mxu0 0.0
    %5465 = vmatpush2.msra.mxu0 0.0
    %5466 = vmatprep.subr.mxu0 0.0
    %5467 = vmatpush2.msra.mxu0 0.0
    %5468 = vmatprep.subr.mxu0 0.0
    %5469 = vmatpush2.msra.mxu0 0.0
    %5470 = vmatprep.subr.mxu0 0.0
    %5471 = vmatpush2.msra.mxu0 0.0
    %5472 = vmatprep.subr.mxu0 0.0
    %5473 = vmatpush2.msra.mxu0 0.0
    %5474 = vmatprep.subr.mxu0 0.0
    %5475 = vmatpush2.msra.mxu0 0.0
    %5476 = vmatprep.subr.mxu0 0.0
    %5477 = vmatpush2.msra.mxu0 0.0
    %5478 = vmatprep.subr.mxu0 0.0
    %5479 = vmatpush2.msra.mxu0 0.0
    %5480 = vmatprep.mubr.f32.mxu0 0.0
    %v5481 = vand.u32 %v4424, 4294901760
    %v5482 = vsub.f32 %v4424, %v5481
    %v5483 = vand.u32 %v5482, 4294901760
    %5484 = vmatmul.mubr.f32.gmra.mxu0 %v5483
    %v5485 = vpop.f32.mrf.mxu0
    %v5486 = vadd.f32 %v5208, %v5485
    %v5487 = vpop.f32.mrf.mxu0
    %5488 = vmatprep.mubr.f32.mxu0 0.0
    %v5489 = vand.u32 %v4427, 4294901760
    %v5490 = vsub.f32 %v4427, %v5489
    %v5491 = vand.u32 %v5490, 4294901760
    %5492 = vmatmul.mubr.f32.gmra.mxu0 %v5491
    %v5493 = vpop.f32.mrf.mxu0
    %v5494 = vadd.f32 %v5215, %v5493
    %v5495 = vpop.f32.mrf.mxu0
    %5496 = vmatprep.mubr.f32.mxu0 0.0
    %v5497 = vand.u32 %v4430, 4294901760
    %v5498 = vsub.f32 %v4430, %v5497
    %v5499 = vand.u32 %v5498, 4294901760
    %5500 = vmatmul.mubr.f32.gmra.mxu0 %v5499
    %v5501 = vpop.f32.mrf.mxu0
    %v5502 = vadd.f32 %v5222, %v5501
    %v5503 = vpop.f32.mrf.mxu0
    %5504 = vmatprep.mubr.f32.mxu0 0.0
    %v5505 = vand.u32 %v4433, 4294901760
    %v5506 = vsub.f32 %v4433, %v5505
    %v5507 = vand.u32 %v5506, 4294901760
    %5508 = vmatmul.mubr.f32.gmra.mxu0 %v5507
    %v5509 = vpop.f32.mrf.mxu0
    %v5510 = vadd.f32 %v5229, %v5509
    %v5511 = vpop.f32.mrf.mxu0
    %5512 = vmatprep.mubr.f32.mxu0 0.0
    %v5513 = vand.u32 %v4436, 4294901760
    %v5514 = vsub.f32 %v4436, %v5513
    %v5515 = vand.u32 %v5514, 4294901760
    %5516 = vmatmul.mubr.f32.gmra.mxu0 %v5515
    %v5517 = vpop.f32.mrf.mxu0
    %v5518 = vadd.f32 %v5236, %v5517
    %v5519 = vpop.f32.mrf.mxu0
    %5520 = vmatprep.mubr.f32.mxu0 0.0
    %v5521 = vand.u32 %v4439, 4294901760
    %v5522 = vsub.f32 %v4439, %v5521
    %v5523 = vand.u32 %v5522, 4294901760
    %5524 = vmatmul.mubr.f32.gmra.mxu0 %v5523
    %v5525 = vpop.f32.mrf.mxu0
    %v5526 = vadd.f32 %v5243, %v5525
    %v5527 = vpop.f32.mrf.mxu0
    %5528 = vmatprep.mubr.f32.mxu0 0.0
    %v5529 = vand.u32 %v4442, 4294901760
    %v5530 = vsub.f32 %v4442, %v5529
    %v5531 = vand.u32 %v5530, 4294901760
    %5532 = vmatmul.mubr.f32.gmra.mxu0 %v5531
    %v5533 = vpop.f32.mrf.mxu0
    %v5534 = vadd.f32 %v5250, %v5533
    %v5535 = vpop.f32.mrf.mxu0
    %5536 = vmatprep.mubr.f32.mxu0 0.0
    %v5537 = vand.u32 %v4445, 4294901760
    %v5538 = vsub.f32 %v4445, %v5537
    %v5539 = vand.u32 %v5538, 4294901760
    %5540 = vmatmul.mubr.f32.gmra.mxu0 %v5539
    %v5541 = vpop.f32.mrf.mxu0
    %v5542 = vadd.f32 %v5257, %v5541
    %v5543 = vpop.f32.mrf.mxu0
    %5544 = vmatprep.mubr.f32.mxu0 0.0
    %v5545 = vand.u32 %v4448, 4294901760
    %v5546 = vsub.f32 %v4448, %v5545
    %v5547 = vand.u32 %v5546, 4294901760
    %5548 = vmatmul.mubr.f32.gmra.mxu0 %v5547
    %v5549 = vpop.f32.mrf.mxu0
    %v5550 = vadd.f32 %v5264, %v5549
    %v5551 = vpop.f32.mrf.mxu0
    %5552 = vmatprep.mubr.f32.mxu0 0.0
    %v5553 = vand.u32 %v4451, 4294901760
    %v5554 = vsub.f32 %v4451, %v5553
    %v5555 = vand.u32 %v5554, 4294901760
    %5556 = vmatmul.mubr.f32.gmra.mxu0 %v5555
    %v5557 = vpop.f32.mrf.mxu0
    %v5558 = vadd.f32 %v5271, %v5557
    %v5559 = vpop.f32.mrf.mxu0
    %5560 = vmatprep.mubr.f32.mxu0 0.0
    %v5561 = vand.u32 %v4454, 4294901760
    %v5562 = vsub.f32 %v4454, %v5561
    %v5563 = vand.u32 %v5562, 4294901760
    %5564 = vmatmul.mubr.f32.gmra.mxu0 %v5563
    %v5565 = vpop.f32.mrf.mxu0
    %v5566 = vadd.f32 %v5278, %v5565
    %v5567 = vpop.f32.mrf.mxu0
    %5568 = vmatprep.mubr.f32.mxu0 0.0
    %v5569 = vand.u32 %v4457, 4294901760
    %v5570 = vsub.f32 %v4457, %v5569
    %v5571 = vand.u32 %v5570, 4294901760
    %5572 = vmatmul.mubr.f32.gmra.mxu0 %v5571
    %v5573 = vpop.f32.mrf.mxu0
    %v5574 = vadd.f32 %v5285, %v5573
    %v5575 = vpop.f32.mrf.mxu0
    %5576 = vmatprep.mubr.f32.mxu0 0.0
    %v5577 = vand.u32 %v4460, 4294901760
    %v5578 = vsub.f32 %v4460, %v5577
    %v5579 = vand.u32 %v5578, 4294901760
    %5580 = vmatmul.mubr.f32.gmra.mxu0 %v5579
    %v5581 = vpop.f32.mrf.mxu0
    %v5582 = vadd.f32 %v5292, %v5581
    %v5583 = vpop.f32.mrf.mxu0
    %5584 = vmatprep.mubr.f32.mxu0 0.0
    %v5585 = vand.u32 %v4463, 4294901760
    %v5586 = vsub.f32 %v4463, %v5585
    %v5587 = vand.u32 %v5586, 4294901760
    %5588 = vmatmul.mubr.f32.gmra.mxu0 %v5587
    %v5589 = vpop.f32.mrf.mxu0
    %v5590 = vadd.f32 %v5299, %v5589
    %v5591 = vpop.f32.mrf.mxu0
    %5592 = vmatprep.mubr.f32.mxu0 0.0
    %v5593 = vand.u32 %v4466, 4294901760
    %v5594 = vsub.f32 %v4466, %v5593
    %v5595 = vand.u32 %v5594, 4294901760
    %5596 = vmatmul.mubr.f32.gmra.mxu0 %v5595
    %v5597 = vpop.f32.mrf.mxu0
    %v5598 = vadd.f32 %v5306, %v5597
    %v5599 = vpop.f32.mrf.mxu0
    %5600 = vmatprep.mubr.f32.mxu0 0.0
    %v5601 = vand.u32 %v4469, 4294901760
    %v5602 = vsub.f32 %v4469, %v5601
    %v5603 = vand.u32 %v5602, 4294901760
    %5604 = vmatmul.mubr.f32.gmra.mxu0 %v5603
    %v5605 = vpop.f32.mrf.mxu0
    %v5606 = vadd.f32 %v5313, %v5605
    %v5607 = vpop.f32.mrf.mxu0
    %5608 = vmatprep.mubr.f32.mxu0 0.0
    %v5609 = vand.u32 %v4472, 4294901760
    %v5610 = vsub.f32 %v4472, %v5609
    %v5611 = vand.u32 %v5610, 4294901760
    %5612 = vmatmul.mubr.f32.gmra.mxu0 %v5611
    %v5613 = vpop.f32.mrf.mxu0
    %v5614 = vadd.f32 %v5320, %v5613
    %v5615 = vpop.f32.mrf.mxu0
    %5616 = vmatprep.mubr.f32.mxu0 0.0
    %v5617 = vand.u32 %v4475, 4294901760
    %v5618 = vsub.f32 %v4475, %v5617
    %v5619 = vand.u32 %v5618, 4294901760
    %5620 = vmatmul.mubr.f32.gmra.mxu0 %v5619
    %v5621 = vpop.f32.mrf.mxu0
    %v5622 = vadd.f32 %v5327, %v5621
    %v5623 = vpop.f32.mrf.mxu0
    %5624 = vmatprep.mubr.f32.mxu0 0.0
    %v5625 = vand.u32 %v4478, 4294901760
    %v5626 = vsub.f32 %v4478, %v5625
    %v5627 = vand.u32 %v5626, 4294901760
    %5628 = vmatmul.mubr.f32.gmra.mxu0 %v5627
    %v5629 = vpop.f32.mrf.mxu0
    %v5630 = vadd.f32 %v5334, %v5629
    %v5631 = vpop.f32.mrf.mxu0
    %5632 = vmatprep.mubr.f32.mxu0 0.0
    %v5633 = vand.u32 %v4481, 4294901760
    %v5634 = vsub.f32 %v4481, %v5633
    %v5635 = vand.u32 %v5634, 4294901760
    %5636 = vmatmul.mubr.f32.gmra.mxu0 %v5635
    %v5637 = vpop.f32.mrf.mxu0
    %v5638 = vadd.f32 %v5341, %v5637
    %v5639 = vpop.f32.mrf.mxu0
    %5640 = vmatprep.mubr.f32.mxu0 0.0
    %v5641 = vand.u32 %v4484, 4294901760
    %v5642 = vsub.f32 %v4484, %v5641
    %v5643 = vand.u32 %v5642, 4294901760
    %5644 = vmatmul.mubr.f32.gmra.mxu0 %v5643
    %v5645 = vpop.f32.mrf.mxu0
    %v5646 = vadd.f32 %v5348, %v5645
    %v5647 = vpop.f32.mrf.mxu0
    %5648 = vmatprep.mubr.f32.mxu0 0.0
    %v5649 = vand.u32 %v4487, 4294901760
    %v5650 = vsub.f32 %v4487, %v5649
    %v5651 = vand.u32 %v5650, 4294901760
    %5652 = vmatmul.mubr.f32.gmra.mxu0 %v5651
    %v5653 = vpop.f32.mrf.mxu0
    %v5654 = vadd.f32 %v5355, %v5653
    %v5655 = vpop.f32.mrf.mxu0
    %5656 = vmatprep.mubr.f32.mxu0 0.0
    %v5657 = vand.u32 %v4490, 4294901760
    %v5658 = vsub.f32 %v4490, %v5657
    %v5659 = vand.u32 %v5658, 4294901760
    %5660 = vmatmul.mubr.f32.gmra.mxu0 %v5659
    %v5661 = vpop.f32.mrf.mxu0
    %v5662 = vadd.f32 %v5362, %v5661
    %v5663 = vpop.f32.mrf.mxu0
    %5664 = vmatprep.mubr.f32.mxu0 0.0
    %v5665 = vand.u32 %v4493, 4294901760
    %v5666 = vsub.f32 %v4493, %v5665
    %v5667 = vand.u32 %v5666, 4294901760
    %5668 = vmatmul.mubr.f32.gmra.mxu0 %v5667
    %v5669 = vpop.f32.mrf.mxu0
    %v5670 = vadd.f32 %v5369, %v5669
    %v5671 = vpop.f32.mrf.mxu0
    %5672 = vmatprep.mubr.f32.mxu0 0.0
    %v5673 = vand.u32 %v4496, 4294901760
    %v5674 = vsub.f32 %v4496, %v5673
    %v5675 = vand.u32 %v5674, 4294901760
    %5676 = vmatmul.mubr.f32.gmra.mxu0 %v5675
    %v5677 = vpop.f32.mrf.mxu0
    %v5678 = vadd.f32 %v5376, %v5677
    %v5679 = vpop.f32.mrf.mxu0
    %5680 = vmatprep.mubr.f32.mxu0 0.0
    %v5681 = vand.u32 %v4499, 4294901760
    %v5682 = vsub.f32 %v4499, %v5681
    %v5683 = vand.u32 %v5682, 4294901760
    %5684 = vmatmul.mubr.f32.gmra.mxu0 %v5683
    %v5685 = vpop.f32.mrf.mxu0
    %v5686 = vadd.f32 %v5383, %v5685
    %v5687 = vpop.f32.mrf.mxu0
    %5688 = vmatprep.mubr.f32.mxu0 0.0
    %v5689 = vand.u32 %v4502, 4294901760
    %v5690 = vsub.f32 %v4502, %v5689
    %v5691 = vand.u32 %v5690, 4294901760
    %5692 = vmatmul.mubr.f32.gmra.mxu0 %v5691
    %v5693 = vpop.f32.mrf.mxu0
    %v5694 = vadd.f32 %v5390, %v5693
    %v5695 = vpop.f32.mrf.mxu0
    %5696 = vmatprep.mubr.f32.mxu0 0.0
    %v5697 = vand.u32 %v4505, 4294901760
    %v5698 = vsub.f32 %v4505, %v5697
    %v5699 = vand.u32 %v5698, 4294901760
    %5700 = vmatmul.mubr.f32.gmra.mxu0 %v5699
    %v5701 = vpop.f32.mrf.mxu0
    %v5702 = vadd.f32 %v5397, %v5701
    %v5703 = vpop.f32.mrf.mxu0
    %5704 = vmatprep.mubr.f32.mxu0 0.0
    %v5705 = vand.u32 %v4508, 4294901760
    %v5706 = vsub.f32 %v4508, %v5705
    %v5707 = vand.u32 %v5706, 4294901760
    %5708 = vmatmul.mubr.f32.gmra.mxu0 %v5707
    %v5709 = vpop.f32.mrf.mxu0
    %v5710 = vadd.f32 %v5404, %v5709
    %v5711 = vpop.f32.mrf.mxu0
    %5712 = vmatprep.mubr.f32.mxu0 0.0
    %v5713 = vand.u32 %v4511, 4294901760
    %v5714 = vsub.f32 %v4511, %v5713
    %v5715 = vand.u32 %v5714, 4294901760
    %5716 = vmatmul.mubr.f32.gmra.mxu0 %v5715
    %v5717 = vpop.f32.mrf.mxu0
    %v5718 = vadd.f32 %v5411, %v5717
    %v5719 = vpop.f32.mrf.mxu0
    %5720 = vdwg.mxu0
    %5721 = vmatprep.subr.mxu0 0.0
    %5722 = vmatpush1.msra.mxu0 0.0
    %5723 = vmatprep.subr.mxu0 0.0
    %5724 = vmatpush1.msra.mxu0 0.0
    %5725 = vmatprep.subr.mxu0 0.0
    %5726 = vmatpush1.msra.mxu0 0.0
    %5727 = vmatprep.subr.mxu0 0.0
    %5728 = vmatpush1.msra.mxu0 0.0
    %5729 = vmatprep.subr.mxu0 0.0
    %5730 = vmatpush1.msra.mxu0 0.0
    %5731 = vmatprep.subr.mxu0 0.0
    %5732 = vmatpush1.msra.mxu0 0.0
    %5733 = vmatprep.subr.mxu0 0.0
    %5734 = vmatpush1.msra.mxu0 0.0
    %5735 = vmatprep.subr.mxu0 0.0
    %5736 = vmatpush1.msra.mxu0 0.0
    %5737 = vmatprep.subr.mxu0 0.0
    %5738 = vmatpush1.msra.mxu0 0.0
    %5739 = vmatprep.subr.mxu0 0.0
    %5740 = vmatpush1.msra.mxu0 0.0
    %5741 = vmatprep.subr.mxu0 0.0
    %5742 = vmatpush1.msra.mxu0 0.0
    %5743 = vmatprep.subr.mxu0 0.0
    %5744 = vmatpush1.msra.mxu0 0.0
    %5745 = vmatprep.subr.mxu0 0.0
    %5746 = vmatpush1.msra.mxu0 0.0
    %5747 = vmatprep.subr.mxu0 0.0
    %5748 = vmatpush1.msra.mxu0 0.0
    %5749 = vmatprep.subr.mxu0 0.0
    %v5750 = vand.u32 %v93, 4294901760
    %v5751 = vsub.f32 %v93, %v5750
    %v5752 = vand.u32 %v5751, 4294901760
    %5753 = vmatpush1.msra.mxu0 %v5752
    %5754 = vmatprep.subr.mxu0 0.0
    %v5755 = vand.u32 %v92, 4294901760
    %v5756 = vsub.f32 %v92, %v5755
    %v5757 = vand.u32 %v5756, 4294901760
    %5758 = vmatpush1.msra.mxu0 %v5757
    %5759 = vmatprep.subr.mxu0 0.0
    %5760 = vmatpush2.msra.mxu0 0.0
    %5761 = vmatprep.subr.mxu0 0.0
    %5762 = vmatpush2.msra.mxu0 0.0
    %5763 = vmatprep.subr.mxu0 0.0
    %5764 = vmatpush2.msra.mxu0 0.0
    %5765 = vmatprep.subr.mxu0 0.0
    %5766 = vmatpush2.msra.mxu0 0.0
    %5767 = vmatprep.subr.mxu0 0.0
    %5768 = vmatpush2.msra.mxu0 0.0
    %5769 = vmatprep.subr.mxu0 0.0
    %5770 = vmatpush2.msra.mxu0 0.0
    %5771 = vmatprep.subr.mxu0 0.0
    %5772 = vmatpush2.msra.mxu0 0.0
    %5773 = vmatprep.subr.mxu0 0.0
    %5774 = vmatpush2.msra.mxu0 0.0
    %5775 = vmatprep.subr.mxu0 0.0
    %5776 = vmatpush2.msra.mxu0 0.0
    %5777 = vmatprep.subr.mxu0 0.0
    %5778 = vmatpush2.msra.mxu0 0.0
    %5779 = vmatprep.subr.mxu0 0.0
    %5780 = vmatpush2.msra.mxu0 0.0
    %5781 = vmatprep.subr.mxu0 0.0
    %5782 = vmatpush2.msra.mxu0 0.0
    %5783 = vmatprep.subr.mxu0 0.0
    %5784 = vmatpush2.msra.mxu0 0.0
    %5785 = vmatprep.subr.mxu0 0.0
    %5786 = vmatpush2.msra.mxu0 0.0
    %5787 = vmatprep.subr.mxu0 0.0
    %5788 = vmatpush2.msra.mxu0 0.0
    %5789 = vmatprep.subr.mxu0 0.0
    %5790 = vmatpush2.msra.mxu0 0.0
    %5791 = vmatprep.mubr.f32.mxu0 0.0
    %v5792 = vand.u32 %v4424, 4294901760
    %5793 = vmatmul.mubr.f32.gmra.mxu0 %v5792
    %v5794 = vpop.f32.mrf.mxu0
    %v5795 = vadd.f32 %v5486, %v5794
    %v5796 = vpop.f32.mrf.mxu0
    %5797 = vmatprep.mubr.f32.mxu0 0.0
    %v5798 = vand.u32 %v4427, 4294901760
    %5799 = vmatmul.mubr.f32.gmra.mxu0 %v5798
    %v5800 = vpop.f32.mrf.mxu0
    %v5801 = vadd.f32 %v5494, %v5800
    %v5802 = vpop.f32.mrf.mxu0
    %5803 = vmatprep.mubr.f32.mxu0 0.0
    %v5804 = vand.u32 %v4430, 4294901760
    %5805 = vmatmul.mubr.f32.gmra.mxu0 %v5804
    %v5806 = vpop.f32.mrf.mxu0
    %v5807 = vadd.f32 %v5502, %v5806
    %v5808 = vpop.f32.mrf.mxu0
    %5809 = vmatprep.mubr.f32.mxu0 0.0
    %v5810 = vand.u32 %v4433, 4294901760
    %5811 = vmatmul.mubr.f32.gmra.mxu0 %v5810
    %v5812 = vpop.f32.mrf.mxu0
    %v5813 = vadd.f32 %v5510, %v5812
    %v5814 = vpop.f32.mrf.mxu0
    %5815 = vmatprep.mubr.f32.mxu0 0.0
    %v5816 = vand.u32 %v4436, 4294901760
    %5817 = vmatmul.mubr.f32.gmra.mxu0 %v5816
    %v5818 = vpop.f32.mrf.mxu0
    %v5819 = vadd.f32 %v5518, %v5818
    %v5820 = vpop.f32.mrf.mxu0
    %5821 = vmatprep.mubr.f32.mxu0 0.0
    %v5822 = vand.u32 %v4439, 4294901760
    %5823 = vmatmul.mubr.f32.gmra.mxu0 %v5822
    %v5824 = vpop.f32.mrf.mxu0
    %v5825 = vadd.f32 %v5526, %v5824
    %v5826 = vpop.f32.mrf.mxu0
    %5827 = vmatprep.mubr.f32.mxu0 0.0
    %v5828 = vand.u32 %v4442, 4294901760
    %5829 = vmatmul.mubr.f32.gmra.mxu0 %v5828
    %v5830 = vpop.f32.mrf.mxu0
    %v5831 = vadd.f32 %v5534, %v5830
    %v5832 = vpop.f32.mrf.mxu0
    %5833 = vmatprep.mubr.f32.mxu0 0.0
    %v5834 = vand.u32 %v4445, 4294901760
    %5835 = vmatmul.mubr.f32.gmra.mxu0 %v5834
    %v5836 = vpop.f32.mrf.mxu0
    %v5837 = vadd.f32 %v5542, %v5836
    %v5838 = vpop.f32.mrf.mxu0
    %5839 = vmatprep.mubr.f32.mxu0 0.0
    %v5840 = vand.u32 %v4448, 4294901760
    %5841 = vmatmul.mubr.f32.gmra.mxu0 %v5840
    %v5842 = vpop.f32.mrf.mxu0
    %v5843 = vadd.f32 %v5550, %v5842
    %v5844 = vpop.f32.mrf.mxu0
    %5845 = vmatprep.mubr.f32.mxu0 0.0
    %v5846 = vand.u32 %v4451, 4294901760
    %5847 = vmatmul.mubr.f32.gmra.mxu0 %v5846
    %v5848 = vpop.f32.mrf.mxu0
    %v5849 = vadd.f32 %v5558, %v5848
    %v5850 = vpop.f32.mrf.mxu0
    %5851 = vmatprep.mubr.f32.mxu0 0.0
    %v5852 = vand.u32 %v4454, 4294901760
    %5853 = vmatmul.mubr.f32.gmra.mxu0 %v5852
    %v5854 = vpop.f32.mrf.mxu0
    %v5855 = vadd.f32 %v5566, %v5854
    %v5856 = vpop.f32.mrf.mxu0
    %5857 = vmatprep.mubr.f32.mxu0 0.0
    %v5858 = vand.u32 %v4457, 4294901760
    %5859 = vmatmul.mubr.f32.gmra.mxu0 %v5858
    %v5860 = vpop.f32.mrf.mxu0
    %v5861 = vadd.f32 %v5574, %v5860
    %v5862 = vpop.f32.mrf.mxu0
    %5863 = vmatprep.mubr.f32.mxu0 0.0
    %v5864 = vand.u32 %v4460, 4294901760
    %5865 = vmatmul.mubr.f32.gmra.mxu0 %v5864
    %v5866 = vpop.f32.mrf.mxu0
    %v5867 = vadd.f32 %v5582, %v5866
    %v5868 = vpop.f32.mrf.mxu0
    %5869 = vmatprep.mubr.f32.mxu0 0.0
    %v5870 = vand.u32 %v4463, 4294901760
    %5871 = vmatmul.mubr.f32.gmra.mxu0 %v5870
    %v5872 = vpop.f32.mrf.mxu0
    %v5873 = vadd.f32 %v5590, %v5872
    %v5874 = vpop.f32.mrf.mxu0
    %5875 = vmatprep.mubr.f32.mxu0 0.0
    %v5876 = vand.u32 %v4466, 4294901760
    %5877 = vmatmul.mubr.f32.gmra.mxu0 %v5876
    %v5878 = vpop.f32.mrf.mxu0
    %v5879 = vadd.f32 %v5598, %v5878
    %v5880 = vpop.f32.mrf.mxu0
    %5881 = vmatprep.mubr.f32.mxu0 0.0
    %v5882 = vand.u32 %v4469, 4294901760
    %5883 = vmatmul.mubr.f32.gmra.mxu0 %v5882
    %v5884 = vpop.f32.mrf.mxu0
    %v5885 = vadd.f32 %v5606, %v5884
    %v5886 = vpop.f32.mrf.mxu0
    %5887 = vmatprep.mubr.f32.mxu0 0.0
    %v5888 = vand.u32 %v4472, 4294901760
    %5889 = vmatmul.mubr.f32.gmra.mxu0 %v5888
    %v5890 = vpop.f32.mrf.mxu0
    %v5891 = vadd.f32 %v5614, %v5890
    %v5892 = vpop.f32.mrf.mxu0
    %5893 = vmatprep.mubr.f32.mxu0 0.0
    %v5894 = vand.u32 %v4475, 4294901760
    %5895 = vmatmul.mubr.f32.gmra.mxu0 %v5894
    %v5896 = vpop.f32.mrf.mxu0
    %v5897 = vadd.f32 %v5622, %v5896
    %v5898 = vpop.f32.mrf.mxu0
    %5899 = vmatprep.mubr.f32.mxu0 0.0
    %v5900 = vand.u32 %v4478, 4294901760
    %5901 = vmatmul.mubr.f32.gmra.mxu0 %v5900
    %v5902 = vpop.f32.mrf.mxu0
    %v5903 = vadd.f32 %v5630, %v5902
    %v5904 = vpop.f32.mrf.mxu0
    %5905 = vmatprep.mubr.f32.mxu0 0.0
    %v5906 = vand.u32 %v4481, 4294901760
    %5907 = vmatmul.mubr.f32.gmra.mxu0 %v5906
    %v5908 = vpop.f32.mrf.mxu0
    %v5909 = vadd.f32 %v5638, %v5908
    %v5910 = vpop.f32.mrf.mxu0
    %5911 = vmatprep.mubr.f32.mxu0 0.0
    %v5912 = vand.u32 %v4484, 4294901760
    %5913 = vmatmul.mubr.f32.gmra.mxu0 %v5912
    %v5914 = vpop.f32.mrf.mxu0
    %v5915 = vadd.f32 %v5646, %v5914
    %v5916 = vpop.f32.mrf.mxu0
    %5917 = vmatprep.mubr.f32.mxu0 0.0
    %v5918 = vand.u32 %v4487, 4294901760
    %5919 = vmatmul.mubr.f32.gmra.mxu0 %v5918
    %v5920 = vpop.f32.mrf.mxu0
    %v5921 = vadd.f32 %v5654, %v5920
    %v5922 = vpop.f32.mrf.mxu0
    %5923 = vmatprep.mubr.f32.mxu0 0.0
    %v5924 = vand.u32 %v4490, 4294901760
    %5925 = vmatmul.mubr.f32.gmra.mxu0 %v5924
    %v5926 = vpop.f32.mrf.mxu0
    %v5927 = vadd.f32 %v5662, %v5926
    %v5928 = vpop.f32.mrf.mxu0
    %5929 = vmatprep.mubr.f32.mxu0 0.0
    %v5930 = vand.u32 %v4493, 4294901760
    %5931 = vmatmul.mubr.f32.gmra.mxu0 %v5930
    %v5932 = vpop.f32.mrf.mxu0
    %v5933 = vadd.f32 %v5670, %v5932
    %v5934 = vpop.f32.mrf.mxu0
    %5935 = vmatprep.mubr.f32.mxu0 0.0
    %v5936 = vand.u32 %v4496, 4294901760
    %5937 = vmatmul.mubr.f32.gmra.mxu0 %v5936
    %v5938 = vpop.f32.mrf.mxu0
    %v5939 = vadd.f32 %v5678, %v5938
    %v5940 = vpop.f32.mrf.mxu0
    %5941 = vmatprep.mubr.f32.mxu0 0.0
    %v5942 = vand.u32 %v4499, 4294901760
    %5943 = vmatmul.mubr.f32.gmra.mxu0 %v5942
    %v5944 = vpop.f32.mrf.mxu0
    %v5945 = vadd.f32 %v5686, %v5944
    %v5946 = vpop.f32.mrf.mxu0
    %5947 = vmatprep.mubr.f32.mxu0 0.0
    %v5948 = vand.u32 %v4502, 4294901760
    %5949 = vmatmul.mubr.f32.gmra.mxu0 %v5948
    %v5950 = vpop.f32.mrf.mxu0
    %v5951 = vadd.f32 %v5694, %v5950
    %v5952 = vpop.f32.mrf.mxu0
    %5953 = vmatprep.mubr.f32.mxu0 0.0
    %v5954 = vand.u32 %v4505, 4294901760
    %5955 = vmatmul.mubr.f32.gmra.mxu0 %v5954
    %v5956 = vpop.f32.mrf.mxu0
    %v5957 = vadd.f32 %v5702, %v5956
    %v5958 = vpop.f32.mrf.mxu0
    %5959 = vmatprep.mubr.f32.mxu0 0.0
    %v5960 = vand.u32 %v4508, 4294901760
    %5961 = vmatmul.mubr.f32.gmra.mxu0 %v5960
    %v5962 = vpop.f32.mrf.mxu0
    %v5963 = vadd.f32 %v5710, %v5962
    %v5964 = vpop.f32.mrf.mxu0
    %5965 = vmatprep.mubr.f32.mxu0 0.0
    %v5966 = vand.u32 %v4511, 4294901760
    %5967 = vmatmul.mubr.f32.gmra.mxu0 %v5966
    %v5968 = vpop.f32.mrf.mxu0
    %v5969 = vadd.f32 %v5718, %v5968
    %v5970 = vpop.f32.mrf.mxu0
    %5971 = vdwg.mxu0
    %5972 = vmatprep.subr.mxu0 0.0
    %5973 = vmatpush1.msra.mxu0 0.0
    %5974 = vmatprep.subr.mxu0 0.0
    %5975 = vmatpush1.msra.mxu0 0.0
    %5976 = vmatprep.subr.mxu0 0.0
    %5977 = vmatpush1.msra.mxu0 0.0
    %5978 = vmatprep.subr.mxu0 0.0
    %5979 = vmatpush1.msra.mxu0 0.0
    %5980 = vmatprep.subr.mxu0 0.0
    %5981 = vmatpush1.msra.mxu0 0.0
    %5982 = vmatprep.subr.mxu0 0.0
    %5983 = vmatpush1.msra.mxu0 0.0
    %5984 = vmatprep.subr.mxu0 0.0
    %5985 = vmatpush1.msra.mxu0 0.0
    %5986 = vmatprep.subr.mxu0 0.0
    %5987 = vmatpush1.msra.mxu0 0.0
    %5988 = vmatprep.subr.mxu0 0.0
    %5989 = vmatpush1.msra.mxu0 0.0
    %5990 = vmatprep.subr.mxu0 0.0
    %5991 = vmatpush1.msra.mxu0 0.0
    %5992 = vmatprep.subr.mxu0 0.0
    %5993 = vmatpush1.msra.mxu0 0.0
    %5994 = vmatprep.subr.mxu0 0.0
    %5995 = vmatpush1.msra.mxu0 0.0
    %5996 = vmatprep.subr.mxu0 0.0
    %5997 = vmatpush1.msra.mxu0 0.0
    %5998 = vmatprep.subr.mxu0 0.0
    %5999 = vmatpush1.msra.mxu0 0.0
    %6000 = vmatprep.subr.mxu0 0.0
    %v6001 = vand.u32 %v93, 4294901760
    %6002 = vmatpush1.msra.mxu0 %v6001
    %6003 = vmatprep.subr.mxu0 0.0
    %v6004 = vand.u32 %v92, 4294901760
    %6005 = vmatpush1.msra.mxu0 %v6004
    %6006 = vmatprep.subr.mxu0 0.0
    %6007 = vmatpush2.msra.mxu0 0.0
    %6008 = vmatprep.subr.mxu0 0.0
    %6009 = vmatpush2.msra.mxu0 0.0
    %6010 = vmatprep.subr.mxu0 0.0
    %6011 = vmatpush2.msra.mxu0 0.0
    %6012 = vmatprep.subr.mxu0 0.0
    %6013 = vmatpush2.msra.mxu0 0.0
    %6014 = vmatprep.subr.mxu0 0.0
    %6015 = vmatpush2.msra.mxu0 0.0
    %6016 = vmatprep.subr.mxu0 0.0
    %6017 = vmatpush2.msra.mxu0 0.0
    %6018 = vmatprep.subr.mxu0 0.0
    %6019 = vmatpush2.msra.mxu0 0.0
    %6020 = vmatprep.subr.mxu0 0.0
    %6021 = vmatpush2.msra.mxu0 0.0
    %6022 = vmatprep.subr.mxu0 0.0
    %6023 = vmatpush2.msra.mxu0 0.0
    %6024 = vmatprep.subr.mxu0 0.0
    %6025 = vmatpush2.msra.mxu0 0.0
    %6026 = vmatprep.subr.mxu0 0.0
    %6027 = vmatpush2.msra.mxu0 0.0
    %6028 = vmatprep.subr.mxu0 0.0
    %6029 = vmatpush2.msra.mxu0 0.0
    %6030 = vmatprep.subr.mxu0 0.0
    %6031 = vmatpush2.msra.mxu0 0.0
    %6032 = vmatprep.subr.mxu0 0.0
    %6033 = vmatpush2.msra.mxu0 0.0
    %6034 = vmatprep.subr.mxu0 0.0
    %6035 = vmatpush2.msra.mxu0 0.0
    %6036 = vmatprep.subr.mxu0 0.0
    %6037 = vmatpush2.msra.mxu0 0.0
    %6038 = vmatprep.mubr.f32.mxu0 0.0
    %v6039 = vand.u32 %v4424, 4294901760
    %6040 = vmatmul.mubr.f32.gmra.mxu0 %v6039
    %v6041 = vpop.f32.mrf.mxu0
    %v6042 = vadd.f32 %v5795, %v6041
    %v6043 = vpop.f32.mrf.mxu0
    %6044 = vmatprep.mubr.f32.mxu0 0.0
    %v6045 = vand.u32 %v4427, 4294901760
    %6046 = vmatmul.mubr.f32.gmra.mxu0 %v6045
    %v6047 = vpop.f32.mrf.mxu0
    %v6048 = vadd.f32 %v5801, %v6047
    %v6049 = vpop.f32.mrf.mxu0
    %6050 = vmatprep.mubr.f32.mxu0 0.0
    %v6051 = vand.u32 %v4430, 4294901760
    %6052 = vmatmul.mubr.f32.gmra.mxu0 %v6051
    %v6053 = vpop.f32.mrf.mxu0
    %v6054 = vadd.f32 %v5807, %v6053
    %v6055 = vpop.f32.mrf.mxu0
    %6056 = vmatprep.mubr.f32.mxu0 0.0
    %v6057 = vand.u32 %v4433, 4294901760
    %6058 = vmatmul.mubr.f32.gmra.mxu0 %v6057
    %v6059 = vpop.f32.mrf.mxu0
    %v6060 = vadd.f32 %v5813, %v6059
    %v6061 = vpop.f32.mrf.mxu0
    %6062 = vmatprep.mubr.f32.mxu0 0.0
    %v6063 = vand.u32 %v4436, 4294901760
    %6064 = vmatmul.mubr.f32.gmra.mxu0 %v6063
    %v6065 = vpop.f32.mrf.mxu0
    %v6066 = vadd.f32 %v5819, %v6065
    %v6067 = vpop.f32.mrf.mxu0
    %6068 = vmatprep.mubr.f32.mxu0 0.0
    %v6069 = vand.u32 %v4439, 4294901760
    %6070 = vmatmul.mubr.f32.gmra.mxu0 %v6069
    %v6071 = vpop.f32.mrf.mxu0
    %v6072 = vadd.f32 %v5825, %v6071
    %v6073 = vpop.f32.mrf.mxu0
    %6074 = vmatprep.mubr.f32.mxu0 0.0
    %v6075 = vand.u32 %v4442, 4294901760
    %6076 = vmatmul.mubr.f32.gmra.mxu0 %v6075
    %v6077 = vpop.f32.mrf.mxu0
    %v6078 = vadd.f32 %v5831, %v6077
    %v6079 = vpop.f32.mrf.mxu0
    %6080 = vmatprep.mubr.f32.mxu0 0.0
    %v6081 = vand.u32 %v4445, 4294901760
    %6082 = vmatmul.mubr.f32.gmra.mxu0 %v6081
    %v6083 = vpop.f32.mrf.mxu0
    %v6084 = vadd.f32 %v5837, %v6083
    %v6085 = vpop.f32.mrf.mxu0
    %6086 = vmatprep.mubr.f32.mxu0 0.0
    %v6087 = vand.u32 %v4448, 4294901760
    %6088 = vmatmul.mubr.f32.gmra.mxu0 %v6087
    %v6089 = vpop.f32.mrf.mxu0
    %v6090 = vadd.f32 %v5843, %v6089
    %v6091 = vpop.f32.mrf.mxu0
    %6092 = vmatprep.mubr.f32.mxu0 0.0
    %v6093 = vand.u32 %v4451, 4294901760
    %6094 = vmatmul.mubr.f32.gmra.mxu0 %v6093
    %v6095 = vpop.f32.mrf.mxu0
    %v6096 = vadd.f32 %v5849, %v6095
    %v6097 = vpop.f32.mrf.mxu0
    %6098 = vmatprep.mubr.f32.mxu0 0.0
    %v6099 = vand.u32 %v4454, 4294901760
    %6100 = vmatmul.mubr.f32.gmra.mxu0 %v6099
    %v6101 = vpop.f32.mrf.mxu0
    %v6102 = vadd.f32 %v5855, %v6101
    %v6103 = vpop.f32.mrf.mxu0
    %6104 = vmatprep.mubr.f32.mxu0 0.0
    %v6105 = vand.u32 %v4457, 4294901760
    %6106 = vmatmul.mubr.f32.gmra.mxu0 %v6105
    %v6107 = vpop.f32.mrf.mxu0
    %v6108 = vadd.f32 %v5861, %v6107
    %v6109 = vpop.f32.mrf.mxu0
    %6110 = vmatprep.mubr.f32.mxu0 0.0
    %v6111 = vand.u32 %v4460, 4294901760
    %6112 = vmatmul.mubr.f32.gmra.mxu0 %v6111
    %v6113 = vpop.f32.mrf.mxu0
    %v6114 = vadd.f32 %v5867, %v6113
    %v6115 = vpop.f32.mrf.mxu0
    %6116 = vmatprep.mubr.f32.mxu0 0.0
    %v6117 = vand.u32 %v4463, 4294901760
    %6118 = vmatmul.mubr.f32.gmra.mxu0 %v6117
    %v6119 = vpop.f32.mrf.mxu0
    %v6120 = vadd.f32 %v5873, %v6119
    %v6121 = vpop.f32.mrf.mxu0
    %6122 = vmatprep.mubr.f32.mxu0 0.0
    %v6123 = vand.u32 %v4466, 4294901760
    %6124 = vmatmul.mubr.f32.gmra.mxu0 %v6123
    %v6125 = vpop.f32.mrf.mxu0
    %v6126 = vadd.f32 %v5879, %v6125
    %v6127 = vpop.f32.mrf.mxu0
    %6128 = vmatprep.mubr.f32.mxu0 0.0
    %v6129 = vand.u32 %v4469, 4294901760
    %6130 = vmatmul.mubr.f32.gmra.mxu0 %v6129
    %v6131 = vpop.f32.mrf.mxu0
    %v6132 = vadd.f32 %v5885, %v6131
    %v6133 = vpop.f32.mrf.mxu0
    %6134 = vmatprep.mubr.f32.mxu0 0.0
    %v6135 = vand.u32 %v4472, 4294901760
    %6136 = vmatmul.mubr.f32.gmra.mxu0 %v6135
    %v6137 = vpop.f32.mrf.mxu0
    %v6138 = vadd.f32 %v5891, %v6137
    %v6139 = vpop.f32.mrf.mxu0
    %6140 = vmatprep.mubr.f32.mxu0 0.0
    %v6141 = vand.u32 %v4475, 4294901760
    %6142 = vmatmul.mubr.f32.gmra.mxu0 %v6141
    %v6143 = vpop.f32.mrf.mxu0
    %v6144 = vadd.f32 %v5897, %v6143
    %v6145 = vpop.f32.mrf.mxu0
    %6146 = vmatprep.mubr.f32.mxu0 0.0
    %v6147 = vand.u32 %v4478, 4294901760
    %6148 = vmatmul.mubr.f32.gmra.mxu0 %v6147
    %v6149 = vpop.f32.mrf.mxu0
    %v6150 = vadd.f32 %v5903, %v6149
    %v6151 = vpop.f32.mrf.mxu0
    %6152 = vmatprep.mubr.f32.mxu0 0.0
    %v6153 = vand.u32 %v4481, 4294901760
    %6154 = vmatmul.mubr.f32.gmra.mxu0 %v6153
    %v6155 = vpop.f32.mrf.mxu0
    %v6156 = vadd.f32 %v5909, %v6155
    %v6157 = vpop.f32.mrf.mxu0
    %6158 = vmatprep.mubr.f32.mxu0 0.0
    %v6159 = vand.u32 %v4484, 4294901760
    %6160 = vmatmul.mubr.f32.gmra.mxu0 %v6159
    %v6161 = vpop.f32.mrf.mxu0
    %v6162 = vadd.f32 %v5915, %v6161
    %v6163 = vpop.f32.mrf.mxu0
    %6164 = vmatprep.mubr.f32.mxu0 0.0
    %v6165 = vand.u32 %v4487, 4294901760
    %6166 = vmatmul.mubr.f32.gmra.mxu0 %v6165
    %v6167 = vpop.f32.mrf.mxu0
    %v6168 = vadd.f32 %v5921, %v6167
    %v6169 = vpop.f32.mrf.mxu0
    %6170 = vmatprep.mubr.f32.mxu0 0.0
    %v6171 = vand.u32 %v4490, 4294901760
    %6172 = vmatmul.mubr.f32.gmra.mxu0 %v6171
    %v6173 = vpop.f32.mrf.mxu0
    %v6174 = vadd.f32 %v5927, %v6173
    %v6175 = vpop.f32.mrf.mxu0
    %6176 = vmatprep.mubr.f32.mxu0 0.0
    %v6177 = vand.u32 %v4493, 4294901760
    %6178 = vmatmul.mubr.f32.gmra.mxu0 %v6177
    %v6179 = vpop.f32.mrf.mxu0
    %v6180 = vadd.f32 %v5933, %v6179
    %v6181 = vpop.f32.mrf.mxu0
    %6182 = vmatprep.mubr.f32.mxu0 0.0
    %v6183 = vand.u32 %v4496, 4294901760
    %6184 = vmatmul.mubr.f32.gmra.mxu0 %v6183
    %v6185 = vpop.f32.mrf.mxu0
    %v6186 = vadd.f32 %v5939, %v6185
    %v6187 = vpop.f32.mrf.mxu0
    %6188 = vmatprep.mubr.f32.mxu0 0.0
    %v6189 = vand.u32 %v4499, 4294901760
    %6190 = vmatmul.mubr.f32.gmra.mxu0 %v6189
    %v6191 = vpop.f32.mrf.mxu0
    %v6192 = vadd.f32 %v5945, %v6191
    %v6193 = vpop.f32.mrf.mxu0
    %6194 = vmatprep.mubr.f32.mxu0 0.0
    %v6195 = vand.u32 %v4502, 4294901760
    %6196 = vmatmul.mubr.f32.gmra.mxu0 %v6195
    %v6197 = vpop.f32.mrf.mxu0
    %v6198 = vadd.f32 %v5951, %v6197
    %v6199 = vpop.f32.mrf.mxu0
    %6200 = vmatprep.mubr.f32.mxu0 0.0
    %v6201 = vand.u32 %v4505, 4294901760
    %6202 = vmatmul.mubr.f32.gmra.mxu0 %v6201
    %v6203 = vpop.f32.mrf.mxu0
    %v6204 = vadd.f32 %v5957, %v6203
    %v6205 = vpop.f32.mrf.mxu0
    %6206 = vmatprep.mubr.f32.mxu0 0.0
    %v6207 = vand.u32 %v4508, 4294901760
    %6208 = vmatmul.mubr.f32.gmra.mxu0 %v6207
    %v6209 = vpop.f32.mrf.mxu0
    %v6210 = vadd.f32 %v5963, %v6209
    %v6211 = vpop.f32.mrf.mxu0
    %6212 = vmatprep.mubr.f32.mxu0 0.0
    %v6213 = vand.u32 %v4511, 4294901760
    %6214 = vmatmul.mubr.f32.gmra.mxu0 %v6213
    %v6215 = vpop.f32.mrf.mxu0
    %v6216 = vadd.f32 %v5969, %v6215
    %v6217 = vpop.f32.mrf.mxu0
    %6218 = vdwg.mxu0
    %v6219 = vmul.f32 %v6042, %v6042
    %v6220 = vmul.f32 %v6048, %v6048
    %v6221 = vmul.f32 %v6054, %v6054
    %v6222 = vmul.f32 %v6060, %v6060
    %v6223 = vmul.f32 %v6066, %v6066
    %v6224 = vmul.f32 %v6072, %v6072
    %v6225 = vmul.f32 %v6078, %v6078
    %v6226 = vmul.f32 %v6084, %v6084
    %v6227 = vmul.f32 %v6090, %v6090
    %v6228 = vmul.f32 %v6096, %v6096
    %v6229 = vmul.f32 %v6102, %v6102
    %v6230 = vmul.f32 %v6108, %v6108
    %v6231 = vmul.f32 %v6042, %v6078
    %v6232 = vmul.f32 %v6048, %v6084
    %v6233 = vmul.f32 %v6054, %v6090
    %v6234 = vmul.f32 %v6060, %v6096
    %v6235 = vmul.f32 %v6066, %v6102
    %v6236 = vmul.f32 %v6072, %v6108
    %v6237 = vsub.f32 %v6114, %v6219
    %v6238 = vsub.f32 %v6120, %v6220
    %v6239 = vsub.f32 %v6126, %v6221
    %v6240 = vsub.f32 %v6132, %v6222
    %v6241 = vsub.f32 %v6138, %v6223
    %v6242 = vsub.f32 %v6144, %v6224
    %v6243 = vsub.f32 %v6150, %v6225
    %v6244 = vsub.f32 %v6156, %v6226
    %v6245 = vsub.f32 %v6162, %v6227
    %v6246 = vsub.f32 %v6168, %v6228
    %v6247 = vsub.f32 %v6174, %v6229
    %v6248 = vsub.f32 %v6180, %v6230
    %v6249 = vsub.f32 %v6186, %v6231
    %v6250 = vsub.f32 %v6192, %v6232
    %v6251 = vsub.f32 %v6198, %v6233
    %v6252 = vsub.f32 %v6204, %v6234
    %v6253 = vsub.f32 %v6210, %v6235
    %v6254 = vsub.f32 %v6216, %v6236
    %v6255 = vmul.f32 %v6249, 2.0
    %v6256 = vmul.f32 %v6250, 2.0
    %v6257 = vmul.f32 %v6251, 2.0
    %v6258 = vmul.f32 %v6252, 2.0
    %v6259 = vmul.f32 %v6253, 2.0
    %v6260 = vmul.f32 %v6254, 2.0
    %v6261 = vstv %s53
    %v6262 = vadd.f32 %v6255, %v6261
    %v6263 = vadd.f32 %v6256, %v6261
    %v6264 = vadd.f32 %v6257, %v6261
    %v6265 = vadd.f32 %v6258, %v6261
    %v6266 = vadd.f32 %v6259, %v6261
    %v6267 = vadd.f32 %v6260, %v6261
    %v6268 = vadd.f32 %v6237, %v6243
    %v6269 = vadd.f32 %v6238, %v6244
    %v6270 = vadd.f32 %v6239, %v6245
    %v6271 = vadd.f32 %v6240, %v6246
    %v6272 = vadd.f32 %v6241, %v6247
    %v6273 = vadd.f32 %v6242, %v6248
    %v6274 = vadd.f32 %v6268, %v6261
    %v6275 = vadd.f32 %v6269, %v6261
    %v6276 = vadd.f32 %v6270, %v6261
    %v6277 = vadd.f32 %v6271, %v6261
    %v6278 = vadd.f32 %v6272, %v6261
    %v6279 = vadd.f32 %v6273, %v6261
    %v6280 = vmul.f32 %v6231, 2.0
    %v6281 = vmul.f32 %v6232, 2.0
    %v6282 = vmul.f32 %v6233, 2.0
    %v6283 = vmul.f32 %v6234, 2.0
    %v6284 = vmul.f32 %v6235, 2.0
    %v6285 = vmul.f32 %v6236, 2.0
    %v6286 = vstv %s52
    %v6287 = vadd.f32 %v6280, %v6286
    %v6288 = vadd.f32 %v6281, %v6286
    %v6289 = vadd.f32 %v6282, %v6286
    %v6290 = vadd.f32 %v6283, %v6286
    %v6291 = vadd.f32 %v6284, %v6286
    %v6292 = vadd.f32 %v6285, %v6286
    %v6293 = vmul.f32 %v6287, %v6262
    %v6294 = vmul.f32 %v6288, %v6263
    %v6295 = vmul.f32 %v6289, %v6264
    %v6296 = vmul.f32 %v6290, %v6265
    %v6297 = vmul.f32 %v6291, %v6266
    %v6298 = vmul.f32 %v6292, %v6267
    %v6299 = vadd.f32 %v6219, %v6225
    %v6300 = vadd.f32 %v6220, %v6226
    %v6301 = vadd.f32 %v6221, %v6227
    %v6302 = vadd.f32 %v6222, %v6228
    %v6303 = vadd.f32 %v6223, %v6229
    %v6304 = vadd.f32 %v6224, %v6230
    %v6305 = vadd.f32 %v6299, %v6286
    %v6306 = vadd.f32 %v6300, %v6286
    %v6307 = vadd.f32 %v6301, %v6286
    %v6308 = vadd.f32 %v6302, %v6286
    %v6309 = vadd.f32 %v6303, %v6286
    %v6310 = vadd.f32 %v6304, %v6286
    %v6311 = vmul.f32 %v6305, %v6274
    %v6312 = vmul.f32 %v6306, %v6275
    %v6313 = vmul.f32 %v6307, %v6276
    %v6314 = vmul.f32 %v6308, %v6277
    %v6315 = vmul.f32 %v6309, %v6278
    %v6316 = vmul.f32 %v6310, %v6279
    %v6317 = vrcp.pop %v6311
    %v6318 = vrcp.pop %v6312
    %v6319 = vrcp.pop %v6313
    %v6320 = vrcp.pop %v6314
    %v6321 = vrcp.pop %v6315
    %v6322 = vrcp.pop %v6316
    %v6323 = vmul.f32 %v6311, %v6317
    %v6324 = vmul.f32 %v6312, %v6318
    %v6325 = vmul.f32 %v6313, %v6319
    %v6326 = vmul.f32 %v6314, %v6320
    %v6327 = vmul.f32 %v6315, %v6321
    %v6328 = vmul.f32 %v6316, %v6322
    %v6329 = vsub.f32 2.0, %v6323
    %v6330 = vsub.f32 2.0, %v6324
    %v6331 = vsub.f32 2.0, %v6325
    %v6332 = vsub.f32 2.0, %v6326
    %v6333 = vsub.f32 2.0, %v6327
    %v6334 = vsub.f32 2.0, %v6328
    %v6335 = vmul.f32 %v6317, %v6329
    %v6336 = vmul.f32 %v6318, %v6330
    %v6337 = vmul.f32 %v6319, %v6331
    %v6338 = vmul.f32 %v6320, %v6332
    %v6339 = vmul.f32 %v6321, %v6333
    %v6340 = vmul.f32 %v6322, %v6334
    %v6341 = vmul.f32 %v6293, %v6335
    %v6342 = vmul.f32 %v6294, %v6336
    %v6343 = vmul.f32 %v6295, %v6337
    %v6344 = vmul.f32 %v6296, %v6338
    %v6345 = vmul.f32 %v6297, %v6339
    %v6346 = vmul.f32 %v6298, %v6340
    %vm6347 = vcmask 48128
    %v6348 = vsel %vm6347, %v6341, 0.0
    %v6349 = vsel %vm6347, %v6342, 0.0
    %v6350 = vadd.f32 %v6348, %v6349
    %v6351 = vsel %vm6347, %v6343, 0.0
    %v6352 = vadd.f32 %v6350, %v6351
    %v6353 = vsel %vm6347, %v6344, 0.0
    %v6354 = vadd.f32 %v6352, %v6353
    %v6355 = vsel %vm6347, %v6345, 0.0
    %v6356 = vadd.f32 %v6354, %v6355
    %v6357 = vsel %vm6347, %v6346, 0.0
    %v6358 = vadd.f32 %v6356, %v6357
    %6359 = vadd.xlane.f32.xlu0 %v6358
    %v6360 = vpop.xlane.xlu0 %6359
    %v6361 = vrot.slane %v6360, 4
    %v6362 = vadd.f32 %v6360, %v6361
    %v6363 = vrot.slane %v6362, 2
    %v6364 = vadd.f32 %v6362, %v6363
    %v6365 = vrot.slane %v6364, 1
    %v6366 = vadd.f32 %v6364, %v6365
    %s6367 = vtos %v6366
    %v6368 = vstv %s6367
    %6369 = vst [vmem:[%s5] sm:$0xff] %v6368
    // Predicated region
    $region26: #{_ssim_impl.1} parent=1 // pred_check
      _
    $region27: #{_ssim_impl.1} parent=1 // pred_check_branch
      %6371 = sbr.rel (0) target = $region29
    $region28: #{_ssim_impl.1} parent=1 // pred_region
      _
    $region29: #{_ssim_impl.1} parent=1 // pred_fallthru
      _
    // Predicated region
    $region30: #{_ssim_impl.1} parent=1 // pred_check
      _
    $region31: #{_ssim_impl.1} parent=1 // pred_check_branch
      %6373 = sbr.rel (0) target = $region33
    $region32: #{_ssim_impl.1} parent=1 // pred_region
      _
    $region33: #{_ssim_impl.1} parent=1 // pred_fallthru
      _
    %6374 = vsyncpa [#allocation5], 1
    %6375 = vsyncpa [#allocation7], 1

</llo_original>
